<compile_context>
chip_gen: v5e
topology: v5e:2x2
jax: 0.10.0
libtpu: 0.0.40
codegen_flags: <defaults>
</compile_context>

<pallas_src>
import jax
import jax.numpy as jnp
from jax.experimental import pallas as pl
from jax.experimental.pallas import tpu as pltpu

# ----- hyper-parameters -----
C = 16       # HP.data_point_channel
H = 32       # HP.rnn_hidden_dim
NC = 10      # HP.classes_num
FC1 = 1024
FC2 = 512

GS = 128       # padded gate/state slab width: [fwd H | bwd H | zero pad]
GW = 3 * GS    # r / z / n gate slabs, each lane-tile aligned
OUT_PAD = 128  # lane-dense logits, sliced to NC outside the kernel


def _sigmoid(x):
    return 1.0 / (1.0 + jnp.exp(-x))


def _softplus(x):
    # matches F.softplus(beta=1, threshold=20)
    return jnp.where(x > 20.0, x, jnp.log1p(jnp.exp(jnp.minimum(x, 20.0))))


def _mish(x):
    return x * jnp.tanh(_softplus(x))


def speech_command_kernel(
    x_ref,          # (T*B, 2C)   f32  time-major, rows [x(t) | x(T-1-t)]
    lens_ref,       # (B, 1)      i32  sequence lengths
    w_in_ref,       # (2C, GW)    f32  block-structured fwd+bwd input projection
    b_in_ref,       # (1, GW)     f32  b_ih (+ b_hh for r/z) folded in
    w_rec_ref,      # (GS, GW)    bf16 block-diagonal recurrent weight
    bhn_ref,        # (1, GS)     f32  b_hh of the n-gate (both directions)
    w1_hbm,         # (GS, FC1)   bf16 HBM (pl.ANY) -> async-copied to scratch
    b1_ref,         # (1, FC1)    f32
    w2_hbm,         # (FC1, FC2)  bf16 HBM (pl.ANY)
    b2_ref,         # (1, FC2)    f32
    w3_hbm,         # (FC2, OUT_PAD) bf16 HBM (pl.ANY)
    b3_ref,         # (1, OUT_PAD) f32
    out_ref,        # (B, OUT_PAD) f32
    w1_buf, w2_buf, w3_buf,   # VMEM scratch for the MLP weights
    dma_sem,        # DMA semaphores (3,)
):
    # ---- kick off MLP weight fetches first; they hide behind the recurrence ----
    cp1 = pltpu.make_async_copy(w1_hbm, w1_buf, dma_sem.at[0]); cp1.start()
    cp2 = pltpu.make_async_copy(w2_hbm, w2_buf, dma_sem.at[1]); cp2.start()
    cp3 = pltpu.make_async_copy(w3_hbm, w3_buf, dma_sem.at[2]); cp3.start()

    TB = x_ref.shape[0]
    B = out_ref.shape[0]
    T = TB // B

    # ---- hoisted input projection: one matmul for all steps & both directions.
    # Rows are pre-interleaved [x(t) | x(T-1-t)], so this directly yields the
    # per-step blended gates (fwd lanes from t, bwd lanes from T-1-t).
    gi_all = jnp.dot(x_ref[...], w_in_ref[...],
                     preferred_element_type=jnp.float32) + b_in_ref[...]   # (T*B, GW)

    w_rec = w_rec_ref[...]                                     # bf16
    bhn = jnp.broadcast_to(bhn_ref[...], (B, GS))              # hoisted broadcast
    lens = lens_ref[...]                                       # (B, 1) i32
    lane = jax.lax.broadcasted_iota(jnp.int32, (B, GS), 1)
    is_fwd = lane < H

    # per-step keep masks (bwd lanes valid while frame T-1-i < len); these are
    # independent of the recurrent state, so they sit off the serial chain.
    masks = []
    for i in range(T):
        valid = (lens > (T - 1 - i)).astype(jnp.float32)       # (B, 1)
        masks.append(jnp.where(is_fwd, 1.0, valid))            # (B, GS)

    # ---- step 0 peeled: h == 0, so the recurrent matmul is identically zero ----
    gi0 = gi_all[0:B]
    r = _sigmoid(gi0[:, 0:GS])
    z = _sigmoid(gi0[:, GS:2 * GS])
    n = jnp.tanh(gi0[:, 2 * GS:3 * GS] + r * bhn)
    hc = masks[0] * ((1.0 - z) * n)                            # (B, GS) f32

    # ---- remaining fused fwd+bwd steps, fully unrolled (T static & tiny) ----
    for i in range(1, T):
        gi = gi_all[i * B:(i + 1) * B]                         # (B, GW)
        gh = jnp.dot(hc.astype(jnp.bfloat16), w_rec,
                     preferred_element_type=jnp.float32)       # (B, GW)
        # PyTorch GRU gate order r, z, n; all slices 128-lane-tile aligned
        r = _sigmoid(gi[:, 0:GS] + gh[:, 0:GS])
        z = _sigmoid(gi[:, GS:2 * GS] + gh[:, GS:2 * GS])
        n = jnp.tanh(gi[:, 2 * GS:3 * GS] + r * (gh[:, 2 * GS:3 * GS] + bhn))
        h_new = (1.0 - z) * n + z * hc
        # fwd lanes always update; bwd lanes only while the frame is valid
        hc = hc + masks[i] * (h_new - hc)

    # forward feature is zero for sequences shorter than T (pad_packed semantics)
    fwd_keep = (lens >= T).astype(jnp.float32)                 # (B, 1)
    fc_in = hc * jnp.where(is_fwd, fwd_keep, 1.0)              # (B, GS) [fwd|bwd|pad]

    # ---- MLP head: Linear -> Mish -> (Dropout=id) -> Linear -> Mish -> Linear ----
    # bf16 matmul operands, f32 accumulation + f32 activation math.
    cp1.wait()
    h1 = _mish(jnp.dot(fc_in.astype(jnp.bfloat16), w1_buf[...],
                       preferred_element_type=jnp.float32) + b1_ref[...])
    cp2.wait()
    h2 = _mish(jnp.dot(h1.astype(jnp.bfloat16), w2_buf[...],
                       preferred_element_type=jnp.float32) + b2_ref[...])
    cp3.wait()
    out_ref[...] = jnp.dot(h2.astype(jnp.bfloat16), w3_buf[...],
                           preferred_element_type=jnp.float32) + b3_ref[...]


def _pack_params(params):
    """Kernel-layout weights: 128-lane gate slabs, block-structured (2C, GW)
    input projection, block-diagonal bf16 recurrent weight, folded biases,
    bf16 MLP weights, lane-dense logits."""
    (wif, whf, bif, bhf, wib, whb, bib, bhb,
     w1, b1, w2, b2, w3, b3) = params

    w_in = jnp.zeros((2 * C, GW), jnp.float32)
    w_rec = jnp.zeros((GS, GW), jnp.float32)
    b_in = jnp.zeros((1, GW), jnp.float32)
    bhn = jnp.zeros((1, GS), jnp.float32)

    for g in range(3):  # gate order r, z, n
        # fwd input weights read rows 0:C (x(t)); bwd weights read rows C:2C (x(T-1-t))
        w_in = w_in.at[0:C, g * GS:g * GS + H].set(wif[:, g * H:(g + 1) * H])
        w_in = w_in.at[C:2 * C, g * GS + H:g * GS + 2 * H].set(wib[:, g * H:(g + 1) * H])
        w_rec = w_rec.at[0:H, g * GS:g * GS + H].set(whf[:, g * H:(g + 1) * H])
        w_rec = w_rec.at[H:2 * H, g * GS + H:g * GS + 2 * H].set(whb[:, g * H:(g + 1) * H])

    # fold b_ih (all gates) and b_hh (r, z only) into the hoisted input term
    for g in range(2):  # r, z
        b_in = b_in.at[:, g * GS:g * GS + H].set(
            bif[:, g * H:(g + 1) * H] + bhf[:, g * H:(g + 1) * H])
        b_in = b_in.at[:, g * GS + H:g * GS + 2 * H].set(
            bib[:, g * H:(g + 1) * H] + bhb[:, g * H:(g + 1) * H])
    b_in = b_in.at[:, 2 * GS:2 * GS + H].set(bif[:, 2 * H:3 * H])
    b_in = b_in.at[:, 2 * GS + H:2 * GS + 2 * H].set(bib[:, 2 * H:3 * H])
    # b_hh of the n-gate stays separate (multiplied by r inside the cell)
    bhn = bhn.at[:, 0:H].set(bhf[:, 2 * H:3 * H])
    bhn = bhn.at[:, H:2 * H].set(bhb[:, 2 * H:3 * H])

    w_rec = w_rec.astype(jnp.bfloat16)   # bf16 recurrent operand (f32 accumulate)

    # MLP: pad fc1 rows to the padded state width, pad logits to 128 lanes,
    # cast weights to bf16 (biases / activation math stay f32).
    w1p = jnp.zeros((GS, FC1), jnp.float32).at[0:2 * H, :].set(w1).astype(jnp.bfloat16)
    w2b = w2.astype(jnp.bfloat16)
    w3p = jnp.zeros((FC2, OUT_PAD), jnp.float32).at[:, 0:NC].set(w3).astype(jnp.bfloat16)
    b3p = jnp.zeros((1, OUT_PAD), jnp.float32).at[:, 0:NC].set(b3)

    return (w_in, b_in, w_rec, bhn, w1p, b1, w2b, b2, w3p, b3p)


def speech_command_model(mel_input, mel_lengths, params):
    """mel_input: (B, T, C) f32 (batch-first, as in the PyTorch module).
       mel_lengths: (B,) int32, sorted descending, lengths[0] == T."""
    B, T, _ = mel_input.shape
    x_tm = jnp.transpose(mel_input, (1, 0, 2))                       # (T, B, C)
    # pre-interleave fwd/bwd frames so the per-step lane blend disappears
    x_pair = jnp.concatenate([x_tm, x_tm[::-1]], axis=-1).reshape(T * B, 2 * C)
    lens = mel_lengths.astype(jnp.int32).reshape(B, 1)

    (w_in, b_in, w_rec, bhn,
     w1p, b1, w2b, b2, w3p, b3p) = _pack_params(params)

    vmem = pltpu.MemorySpace.VMEM
    args = (x_pair, lens, w_in, b_in, w_rec, bhn,
            w1p, b1, w2b, b2, w3p, b3p)
    in_specs = [
        pl.BlockSpec(memory_space=vmem),    # x_pair
        pl.BlockSpec(memory_space=vmem),    # lens
        pl.BlockSpec(memory_space=vmem),    # w_in
        pl.BlockSpec(memory_space=vmem),    # b_in
        pl.BlockSpec(memory_space=vmem),    # w_rec
        pl.BlockSpec(memory_space=vmem),    # bhn
        pl.BlockSpec(memory_space=pl.ANY),  # w1 (HBM; async-copied in kernel)
        pl.BlockSpec(memory_space=vmem),    # b1
        pl.BlockSpec(memory_space=pl.ANY),  # w2
        pl.BlockSpec(memory_space=vmem),    # b2
        pl.BlockSpec(memory_space=pl.ANY),  # w3
        pl.BlockSpec(memory_space=vmem),    # b3
    ]

    out = pl.pallas_call(
        speech_command_kernel,
        out_shape=jax.ShapeDtypeStruct((B, OUT_PAD), jnp.float32),
        in_specs=in_specs,
        out_specs=pl.BlockSpec(memory_space=vmem),
        scratch_shapes=[
            pltpu.VMEM((GS, FC1), jnp.bfloat16),
            pltpu.VMEM((FC1, FC2), jnp.bfloat16),
            pltpu.VMEM((FC2, OUT_PAD), jnp.bfloat16),
            pltpu.SemaphoreType.DMA((3,)),
        ],
        compiler_params=pltpu.CompilerParams(vmem_limit_bytes=16 << 20),
    )(*args)
    return out[:, :NC]


def init_params(key):
    ks = jax.random.split(key, 14)

    def u(k, shape, fan):
        bound = 1.0 / jnp.sqrt(fan)
        return jax.random.uniform(k, shape, jnp.float32, -bound, bound)

    # GRU weights already transposed to (in, 3H) / (H, 3H); gate order r, z, n.
    wif = u(ks[0], (C, 3 * H), H)
    whf = u(ks[1], (H, 3 * H), H)
    bif = u(ks[2], (1, 3 * H), H)
    bhf = u(ks[3], (1, 3 * H), H)
    wib = u(ks[4], (C, 3 * H), H)
    whb = u(ks[5], (H, 3 * H), H)
    bib = u(ks[6], (1, 3 * H), H)
    bhb = u(ks[7], (1, 3 * H), H)
    # FC weights as (in, out)
    w1 = u(ks[8], (2 * H, FC1), 2 * H)
    b1 = u(ks[9], (1, FC1), 2 * H)
    w2 = u(ks[10], (FC1, FC2), FC1)
    b2 = u(ks[11], (1, FC2), FC1)
    w3 = u(ks[12], (FC2, NC), FC2)
    b3 = u(ks[13], (1, NC), FC2)
    return (wif, whf, bif, bhf, wib, whb, bib, bhb, w1, b1, w2, b2, w3, b3)


if __name__ == "__main__":
    key = jax.random.PRNGKey(0)
    kx, kp = jax.random.split(key)

    B, T = 4, 8
    mel_input = jax.random.normal(kx, (B, T, C), jnp.float32)
    mel_lengths = jnp.array([8, 7, 5, 3], dtype=jnp.int32)   # sorted desc, max == T

    params = init_params(kp)

    logits = speech_command_model(mel_input, mel_lengths, params)
    logits = jax.block_until_ready(logits)

    assert logits.shape == (B, NC)
    assert bool(jnp.all(jnp.isfinite(logits)))
    print("KERNEL_OK")
</pallas_src>

<mosaic_0001>
module attributes {stable_mosaic.version = 11 : i64} {
  func.func @speech_command_kernel(%arg0: memref<32x32xf32, #tpu.memory_space<vmem>>, %arg1: memref<4x1xi32, #tpu.memory_space<vmem>>, %arg2: memref<32x384xf32, #tpu.memory_space<vmem>>, %arg3: memref<1x384xf32, #tpu.memory_space<vmem>>, %arg4: memref<128x384xbf16, #tpu.memory_space<vmem>>, %arg5: memref<1x128xf32, #tpu.memory_space<vmem>>, %arg6: memref<128x1024xbf16, #tpu.memory_space<any>>, %arg7: memref<1x1024xf32, #tpu.memory_space<vmem>>, %arg8: memref<1024x512xbf16, #tpu.memory_space<any>>, %arg9: memref<1x512xf32, #tpu.memory_space<vmem>>, %arg10: memref<512x128xbf16, #tpu.memory_space<any>>, %arg11: memref<1x128xf32, #tpu.memory_space<vmem>>, %arg12: memref<4x128xf32, #tpu.memory_space<vmem>>, %arg13: memref<128x1024xbf16, #tpu.memory_space<vmem>>, %arg14: memref<1024x512xbf16, #tpu.memory_space<vmem>>, %arg15: memref<512x128xbf16, #tpu.memory_space<vmem>>, %arg16: memref<3x!tpu.dma_semaphore, #tpu.memory_space<semaphore_mem>>) attributes {dimension_semantics = [], scalar_prefetch = 0 : i64, scratch_operands = 4 : i64, tpu.core_type = #tpu.core_type<tc>} {
    %c0_i32 = arith.constant 0 : i32
    %0 = tpu.memref_slice %arg16[%c0_i32] : memref<3x!tpu.dma_semaphore, #tpu.memory_space<semaphore_mem>> -> memref<1x!tpu.dma_semaphore, #tpu.memory_space<semaphore_mem>>
    %1 = tpu.memref_squeeze %0 : memref<1x!tpu.dma_semaphore, #tpu.memory_space<semaphore_mem>> -> memref<!tpu.dma_semaphore, #tpu.memory_space<semaphore_mem>>
    tpu.enqueue_dma source(%arg6 : memref<128x1024xbf16, #tpu.memory_space<any>>) target(%arg13 : memref<128x1024xbf16, #tpu.memory_space<vmem>>) target_semaphore(%1 : memref<!tpu.dma_semaphore, #tpu.memory_space<semaphore_mem>>)
    %c1_i32 = arith.constant 1 : i32
    %2 = tpu.memref_slice %arg16[%c1_i32] : memref<3x!tpu.dma_semaphore, #tpu.memory_space<semaphore_mem>> -> memref<1x!tpu.dma_semaphore, #tpu.memory_space<semaphore_mem>>
    %3 = tpu.memref_squeeze %2 : memref<1x!tpu.dma_semaphore, #tpu.memory_space<semaphore_mem>> -> memref<!tpu.dma_semaphore, #tpu.memory_space<semaphore_mem>>
    tpu.enqueue_dma source(%arg8 : memref<1024x512xbf16, #tpu.memory_space<any>>) target(%arg14 : memref<1024x512xbf16, #tpu.memory_space<vmem>>) target_semaphore(%3 : memref<!tpu.dma_semaphore, #tpu.memory_space<semaphore_mem>>)
    %c2_i32 = arith.constant 2 : i32
    %4 = tpu.memref_slice %arg16[%c2_i32] : memref<3x!tpu.dma_semaphore, #tpu.memory_space<semaphore_mem>> -> memref<1x!tpu.dma_semaphore, #tpu.memory_space<semaphore_mem>>
    %5 = tpu.memref_squeeze %4 : memref<1x!tpu.dma_semaphore, #tpu.memory_space<semaphore_mem>> -> memref<!tpu.dma_semaphore, #tpu.memory_space<semaphore_mem>>
    tpu.enqueue_dma source(%arg10 : memref<512x128xbf16, #tpu.memory_space<any>>) target(%arg15 : memref<512x128xbf16, #tpu.memory_space<vmem>>) target_semaphore(%5 : memref<!tpu.dma_semaphore, #tpu.memory_space<semaphore_mem>>)
    %c0 = arith.constant 0 : index
    %c0_0 = arith.constant 0 : index
    %6 = vector.load %arg0[%c0, %c0_0] : memref<32x32xf32, #tpu.memory_space<vmem>>, vector<32x32xf32>
    %c0_1 = arith.constant 0 : index
    %c0_2 = arith.constant 0 : index
    %7 = vector.load %arg2[%c0_1, %c0_2] : memref<32x384xf32, #tpu.memory_space<vmem>>, vector<32x384xf32>
    %cst = arith.constant dense<0.000000e+00> : vector<32x384xf32>
    %8 = tpu.matmul %6, %7, %cst {dimension_numbers = #tpu.dot_dimension_numbers<[1], [0], [0], [1], [0, 0, 1, 1], [], []>} : vector<32x32xf32>, vector<32x384xf32>, vector<32x384xf32> -> vector<32x384xf32>
    %c0_3 = arith.constant 0 : index
    %c0_4 = arith.constant 0 : index
    %9 = vector.load %arg3[%c0_3, %c0_4] : memref<1x384xf32, #tpu.memory_space<vmem>>, vector<1x384xf32>
    %10 = vector.broadcast %9 : vector<1x384xf32> to vector<32x384xf32>
    %11 = arith.addf %8, %10 : vector<32x384xf32>
    %c0_5 = arith.constant 0 : index
    %c0_6 = arith.constant 0 : index
    %12 = vector.load %arg4[%c0_5, %c0_6] : memref<128x384xbf16, #tpu.memory_space<vmem>>, vector<128x384xbf16>
    %c0_7 = arith.constant 0 : index
    %c0_8 = arith.constant 0 : index
    %13 = vector.load %arg5[%c0_7, %c0_8] : memref<1x128xf32, #tpu.memory_space<vmem>>, vector<1x128xf32>
    %14 = vector.shape_cast %13 : vector<1x128xf32> to vector<1x128xf32>
    %15 = vector.broadcast %14 : vector<1x128xf32> to vector<4x128xf32>
    %c0_9 = arith.constant 0 : index
    %c0_10 = arith.constant 0 : index
    %16 = vector.load %arg1[%c0_9, %c0_10] : memref<4x1xi32, #tpu.memory_space<vmem>>, vector<4x1xi32>
    %17 = tpu.iota {dimensions = array<i32: 1>} : vector<4x128xi32>
    %c32_i32 = arith.constant 32 : i32
    %18 = vector.broadcast %c32_i32 : i32 to vector<4x128xi32>
    %19 = arith.cmpi slt, %17, %18 : vector<4x128xi32>
    %c7_i32 = arith.constant 7 : i32
    %20 = vector.broadcast %c7_i32 : i32 to vector<4x1xi32>
    %21 = arith.cmpi sgt, %16, %20 : vector<4x1xi32>
    %22 = arith.extui %21 : vector<4x1xi1> to vector<4x1xi32>
    %23 = arith.sitofp %22 : vector<4x1xi32> to vector<4x1xf32>
    %cst_11 = arith.constant 1.000000e+00 : f32
    %24 = vector.broadcast %cst_11 : f32 to vector<4x128xf32>
    %25 = vector.shape_cast %23 : vector<4x1xf32> to vector<4x1xf32>
    %26 = vector.broadcast %25 : vector<4x1xf32> to vector<4x128xf32>
    %27 = arith.select %19, %24, %26 : vector<4x128xi1>, vector<4x128xf32>
    %c6_i32 = arith.constant 6 : i32
    %28 = vector.broadcast %c6_i32 : i32 to vector<4x1xi32>
    %29 = arith.cmpi sgt, %16, %28 : vector<4x1xi32>
    %30 = arith.extui %29 : vector<4x1xi1> to vector<4x1xi32>
    %31 = arith.sitofp %30 : vector<4x1xi32> to vector<4x1xf32>
    %cst_12 = arith.constant 1.000000e+00 : f32
    %32 = vector.broadcast %cst_12 : f32 to vector<4x128xf32>
    %33 = vector.shape_cast %31 : vector<4x1xf32> to vector<4x1xf32>
    %34 = vector.broadcast %33 : vector<4x1xf32> to vector<4x128xf32>
    %35 = arith.select %19, %32, %34 : vector<4x128xi1>, vector<4x128xf32>
    %c5_i32 = arith.constant 5 : i32
    %36 = vector.broadcast %c5_i32 : i32 to vector<4x1xi32>
    %37 = arith.cmpi sgt, %16, %36 : vector<4x1xi32>
    %38 = arith.extui %37 : vector<4x1xi1> to vector<4x1xi32>
    %39 = arith.sitofp %38 : vector<4x1xi32> to vector<4x1xf32>
    %cst_13 = arith.constant 1.000000e+00 : f32
    %40 = vector.broadcast %cst_13 : f32 to vector<4x128xf32>
    %41 = vector.shape_cast %39 : vector<4x1xf32> to vector<4x1xf32>
    %42 = vector.broadcast %41 : vector<4x1xf32> to vector<4x128xf32>
    %43 = arith.select %19, %40, %42 : vector<4x128xi1>, vector<4x128xf32>
    %c4_i32 = arith.constant 4 : i32
    %44 = vector.broadcast %c4_i32 : i32 to vector<4x1xi32>
    %45 = arith.cmpi sgt, %16, %44 : vector<4x1xi32>
    %46 = arith.extui %45 : vector<4x1xi1> to vector<4x1xi32>
    %47 = arith.sitofp %46 : vector<4x1xi32> to vector<4x1xf32>
    %cst_14 = arith.constant 1.000000e+00 : f32
    %48 = vector.broadcast %cst_14 : f32 to vector<4x128xf32>
    %49 = vector.shape_cast %47 : vector<4x1xf32> to vector<4x1xf32>
    %50 = vector.broadcast %49 : vector<4x1xf32> to vector<4x128xf32>
    %51 = arith.select %19, %48, %50 : vector<4x128xi1>, vector<4x128xf32>
    %c3_i32 = arith.constant 3 : i32
    %52 = vector.broadcast %c3_i32 : i32 to vector<4x1xi32>
    %53 = arith.cmpi sgt, %16, %52 : vector<4x1xi32>
    %54 = arith.extui %53 : vector<4x1xi1> to vector<4x1xi32>
    %55 = arith.sitofp %54 : vector<4x1xi32> to vector<4x1xf32>
    %cst_15 = arith.constant 1.000000e+00 : f32
    %56 = vector.broadcast %cst_15 : f32 to vector<4x128xf32>
    %57 = vector.shape_cast %55 : vector<4x1xf32> to vector<4x1xf32>
    %58 = vector.broadcast %57 : vector<4x1xf32> to vector<4x128xf32>
    %59 = arith.select %19, %56, %58 : vector<4x128xi1>, vector<4x128xf32>
    %c2_i32_16 = arith.constant 2 : i32
    %60 = vector.broadcast %c2_i32_16 : i32 to vector<4x1xi32>
    %61 = arith.cmpi sgt, %16, %60 : vector<4x1xi32>
    %62 = arith.extui %61 : vector<4x1xi1> to vector<4x1xi32>
    %63 = arith.sitofp %62 : vector<4x1xi32> to vector<4x1xf32>
    %cst_17 = arith.constant 1.000000e+00 : f32
    %64 = vector.broadcast %cst_17 : f32 to vector<4x128xf32>
    %65 = vector.shape_cast %63 : vector<4x1xf32> to vector<4x1xf32>
    %66 = vector.broadcast %65 : vector<4x1xf32> to vector<4x128xf32>
    %67 = arith.select %19, %64, %66 : vector<4x128xi1>, vector<4x128xf32>
    %c1_i32_18 = arith.constant 1 : i32
    %68 = vector.broadcast %c1_i32_18 : i32 to vector<4x1xi32>
    %69 = arith.cmpi sgt, %16, %68 : vector<4x1xi32>
    %70 = arith.extui %69 : vector<4x1xi1> to vector<4x1xi32>
    %71 = arith.sitofp %70 : vector<4x1xi32> to vector<4x1xf32>
    %cst_19 = arith.constant 1.000000e+00 : f32
    %72 = vector.broadcast %cst_19 : f32 to vector<4x128xf32>
    %73 = vector.shape_cast %71 : vector<4x1xf32> to vector<4x1xf32>
    %74 = vector.broadcast %73 : vector<4x1xf32> to vector<4x128xf32>
    %75 = arith.select %19, %72, %74 : vector<4x128xi1>, vector<4x128xf32>
    %c0_i32_20 = arith.constant 0 : i32
    %76 = vector.broadcast %c0_i32_20 : i32 to vector<4x1xi32>
    %77 = arith.cmpi sgt, %16, %76 : vector<4x1xi32>
    %78 = arith.extui %77 : vector<4x1xi1> to vector<4x1xi32>
    %79 = arith.sitofp %78 : vector<4x1xi32> to vector<4x1xf32>
    %cst_21 = arith.constant 1.000000e+00 : f32
    %80 = vector.broadcast %cst_21 : f32 to vector<4x128xf32>
    %81 = vector.shape_cast %79 : vector<4x1xf32> to vector<4x1xf32>
    %82 = vector.broadcast %81 : vector<4x1xf32> to vector<4x128xf32>
    %83 = arith.select %19, %80, %82 : vector<4x128xi1>, vector<4x128xf32>
    %84 = vector.extract_strided_slice %11 {offsets = [0, 0], sizes = [4, 384], strides = [1, 1]} : vector<32x384xf32> to vector<4x384xf32>
    %85 = vector.extract_strided_slice %84 {offsets = [0, 0], sizes = [4, 128], strides = [1, 1]} : vector<4x384xf32> to vector<4x128xf32>
    %cst_22 = arith.constant 0.000000e+00 : f32
    %86 = vector.broadcast %cst_22 : f32 to vector<4x128xf32>
    %87 = arith.subf %86, %85 : vector<4x128xf32>
    %88 = math.exp %87 : vector<4x128xf32>
    %cst_23 = arith.constant 1.000000e+00 : f32
    %89 = vector.broadcast %cst_23 : f32 to vector<4x128xf32>
    %90 = arith.addf %89, %88 : vector<4x128xf32>
    %cst_24 = arith.constant 1.000000e+00 : f32
    %91 = vector.broadcast %cst_24 : f32 to vector<4x128xf32>
    %92 = arith.divf %91, %90 : vector<4x128xf32>
    %93 = vector.extract_strided_slice %84 {offsets = [0, 128], sizes = [4, 128], strides = [1, 1]} : vector<4x384xf32> to vector<4x128xf32>
    %cst_25 = arith.constant 0.000000e+00 : f32
    %94 = vector.broadcast %cst_25 : f32 to vector<4x128xf32>
    %95 = arith.subf %94, %93 : vector<4x128xf32>
    %96 = math.exp %95 : vector<4x128xf32>
    %cst_26 = arith.constant 1.000000e+00 : f32
    %97 = vector.broadcast %cst_26 : f32 to vector<4x128xf32>
    %98 = arith.addf %97, %96 : vector<4x128xf32>
    %cst_27 = arith.constant 1.000000e+00 : f32
    %99 = vector.broadcast %cst_27 : f32 to vector<4x128xf32>
    %100 = arith.divf %99, %98 : vector<4x128xf32>
    %101 = vector.extract_strided_slice %84 {offsets = [0, 256], sizes = [4, 128], strides = [1, 1]} : vector<4x384xf32> to vector<4x128xf32>
    %102 = arith.mulf %92, %15 : vector<4x128xf32>
    %103 = arith.addf %101, %102 : vector<4x128xf32>
    %104 = math.tanh %103 : vector<4x128xf32>
    %cst_28 = arith.constant 1.000000e+00 : f32
    %105 = vector.broadcast %cst_28 : f32 to vector<4x128xf32>
    %106 = arith.subf %105, %100 : vector<4x128xf32>
    %107 = arith.mulf %106, %104 : vector<4x128xf32>
    %108 = arith.mulf %27, %107 : vector<4x128xf32>
    %109 = vector.extract_strided_slice %11 {offsets = [4, 0], sizes = [4, 384], strides = [1, 1]} : vector<32x384xf32> to vector<4x384xf32>
    %110 = arith.truncf %108 : vector<4x128xf32> to vector<4x128xbf16>
    %cst_29 = arith.constant dense<0.000000e+00> : vector<4x384xf32>
    %111 = tpu.matmul %110, %12, %cst_29 {dimension_numbers = #tpu.dot_dimension_numbers<[1], [0], [0], [1], [0, 0, 1, 1], [], []>} : vector<4x128xbf16>, vector<128x384xbf16>, vector<4x384xf32> -> vector<4x384xf32>
    %112 = vector.extract_strided_slice %109 {offsets = [0, 0], sizes = [4, 128], strides = [1, 1]} : vector<4x384xf32> to vector<4x128xf32>
    %113 = vector.extract_strided_slice %111 {offsets = [0, 0], sizes = [4, 128], strides = [1, 1]} : vector<4x384xf32> to vector<4x128xf32>
    %114 = arith.addf %112, %113 : vector<4x128xf32>
    %cst_30 = arith.constant 0.000000e+00 : f32
    %115 = vector.broadcast %cst_30 : f32 to vector<4x128xf32>
    %116 = arith.subf %115, %114 : vector<4x128xf32>
    %117 = math.exp %116 : vector<4x128xf32>
    %cst_31 = arith.constant 1.000000e+00 : f32
    %118 = vector.broadcast %cst_31 : f32 to vector<4x128xf32>
    %119 = arith.addf %118, %117 : vector<4x128xf32>
    %cst_32 = arith.constant 1.000000e+00 : f32
    %120 = vector.broadcast %cst_32 : f32 to vector<4x128xf32>
    %121 = arith.divf %120, %119 : vector<4x128xf32>
    %122 = vector.extract_strided_slice %109 {offsets = [0, 128], sizes = [4, 128], strides = [1, 1]} : vector<4x384xf32> to vector<4x128xf32>
    %123 = vector.extract_strided_slice %111 {offsets = [0, 128], sizes = [4, 128], strides = [1, 1]} : vector<4x384xf32> to vector<4x128xf32>
    %124 = arith.addf %122, %123 : vector<4x128xf32>
    %cst_33 = arith.constant 0.000000e+00 : f32
    %125 = vector.broadcast %cst_33 : f32 to vector<4x128xf32>
    %126 = arith.subf %125, %124 : vector<4x128xf32>
    %127 = math.exp %126 : vector<4x128xf32>
    %cst_34 = arith.constant 1.000000e+00 : f32
    %128 = vector.broadcast %cst_34 : f32 to vector<4x128xf32>
    %129 = arith.addf %128, %127 : vector<4x128xf32>
    %cst_35 = arith.constant 1.000000e+00 : f32
    %130 = vector.broadcast %cst_35 : f32 to vector<4x128xf32>
    %131 = arith.divf %130, %129 : vector<4x128xf32>
    %132 = vector.extract_strided_slice %109 {offsets = [0, 256], sizes = [4, 128], strides = [1, 1]} : vector<4x384xf32> to vector<4x128xf32>
    %133 = vector.extract_strided_slice %111 {offsets = [0, 256], sizes = [4, 128], strides = [1, 1]} : vector<4x384xf32> to vector<4x128xf32>
    %134 = arith.addf %133, %15 : vector<4x128xf32>
    %135 = arith.mulf %121, %134 : vector<4x128xf32>
    %136 = arith.addf %132, %135 : vector<4x128xf32>
    %137 = math.tanh %136 : vector<4x128xf32>
    %cst_36 = arith.constant 1.000000e+00 : f32
    %138 = vector.broadcast %cst_36 : f32 to vector<4x128xf32>
    %139 = arith.subf %138, %131 : vector<4x128xf32>
    %140 = arith.mulf %139, %137 : vector<4x128xf32>
    %141 = arith.mulf %131, %108 : vector<4x128xf32>
    %142 = arith.addf %140, %141 : vector<4x128xf32>
    %143 = arith.subf %142, %108 : vector<4x128xf32>
    %144 = arith.mulf %35, %143 : vector<4x128xf32>
    %145 = arith.addf %108, %144 : vector<4x128xf32>
    %146 = vector.extract_strided_slice %11 {offsets = [8, 0], sizes = [4, 384], strides = [1, 1]} : vector<32x384xf32> to vector<4x384xf32>
    %147 = arith.truncf %145 : vector<4x128xf32> to vector<4x128xbf16>
    %cst_37 = arith.constant dense<0.000000e+00> : vector<4x384xf32>
    %148 = tpu.matmul %147, %12, %cst_37 {dimension_numbers = #tpu.dot_dimension_numbers<[1], [0], [0], [1], [0, 0, 1, 1], [], []>} : vector<4x128xbf16>, vector<128x384xbf16>, vector<4x384xf32> -> vector<4x384xf32>
    %149 = vector.extract_strided_slice %146 {offsets = [0, 0], sizes = [4, 128], strides = [1, 1]} : vector<4x384xf32> to vector<4x128xf32>
    %150 = vector.extract_strided_slice %148 {offsets = [0, 0], sizes = [4, 128], strides = [1, 1]} : vector<4x384xf32> to vector<4x128xf32>
    %151 = arith.addf %149, %150 : vector<4x128xf32>
    %cst_38 = arith.constant 0.000000e+00 : f32
    %152 = vector.broadcast %cst_38 : f32 to vector<4x128xf32>
    %153 = arith.subf %152, %151 : vector<4x128xf32>
    %154 = math.exp %153 : vector<4x128xf32>
    %cst_39 = arith.constant 1.000000e+00 : f32
    %155 = vector.broadcast %cst_39 : f32 to vector<4x128xf32>
    %156 = arith.addf %155, %154 : vector<4x128xf32>
    %cst_40 = arith.constant 1.000000e+00 : f32
    %157 = vector.broadcast %cst_40 : f32 to vector<4x128xf32>
    %158 = arith.divf %157, %156 : vector<4x128xf32>
    %159 = vector.extract_strided_slice %146 {offsets = [0, 128], sizes = [4, 128], strides = [1, 1]} : vector<4x384xf32> to vector<4x128xf32>
    %160 = vector.extract_strided_slice %148 {offsets = [0, 128], sizes = [4, 128], strides = [1, 1]} : vector<4x384xf32> to vector<4x128xf32>
    %161 = arith.addf %159, %160 : vector<4x128xf32>
    %cst_41 = arith.constant 0.000000e+00 : f32
    %162 = vector.broadcast %cst_41 : f32 to vector<4x128xf32>
    %163 = arith.subf %162, %161 : vector<4x128xf32>
    %164 = math.exp %163 : vector<4x128xf32>
    %cst_42 = arith.constant 1.000000e+00 : f32
    %165 = vector.broadcast %cst_42 : f32 to vector<4x128xf32>
    %166 = arith.addf %165, %164 : vector<4x128xf32>
    %cst_43 = arith.constant 1.000000e+00 : f32
    %167 = vector.broadcast %cst_43 : f32 to vector<4x128xf32>
    %168 = arith.divf %167, %166 : vector<4x128xf32>
    %169 = vector.extract_strided_slice %146 {offsets = [0, 256], sizes = [4, 128], strides = [1, 1]} : vector<4x384xf32> to vector<4x128xf32>
    %170 = vector.extract_strided_slice %148 {offsets = [0, 256], sizes = [4, 128], strides = [1, 1]} : vector<4x384xf32> to vector<4x128xf32>
    %171 = arith.addf %170, %15 : vector<4x128xf32>
    %172 = arith.mulf %158, %171 : vector<4x128xf32>
    %173 = arith.addf %169, %172 : vector<4x128xf32>
    %174 = math.tanh %173 : vector<4x128xf32>
    %cst_44 = arith.constant 1.000000e+00 : f32
    %175 = vector.broadcast %cst_44 : f32 to vector<4x128xf32>
    %176 = arith.subf %175, %168 : vector<4x128xf32>
    %177 = arith.mulf %176, %174 : vector<4x128xf32>
    %178 = arith.mulf %168, %145 : vector<4x128xf32>
    %179 = arith.addf %177, %178 : vector<4x128xf32>
    %180 = arith.subf %179, %145 : vector<4x128xf32>
    %181 = arith.mulf %43, %180 : vector<4x128xf32>
    %182 = arith.addf %145, %181 : vector<4x128xf32>
    %183 = vector.extract_strided_slice %11 {offsets = [12, 0], sizes = [4, 384], strides = [1, 1]} : vector<32x384xf32> to vector<4x384xf32>
    %184 = arith.truncf %182 : vector<4x128xf32> to vector<4x128xbf16>
    %cst_45 = arith.constant dense<0.000000e+00> : vector<4x384xf32>
    %185 = tpu.matmul %184, %12, %cst_45 {dimension_numbers = #tpu.dot_dimension_numbers<[1], [0], [0], [1], [0, 0, 1, 1], [], []>} : vector<4x128xbf16>, vector<128x384xbf16>, vector<4x384xf32> -> vector<4x384xf32>
    %186 = vector.extract_strided_slice %183 {offsets = [0, 0], sizes = [4, 128], strides = [1, 1]} : vector<4x384xf32> to vector<4x128xf32>
    %187 = vector.extract_strided_slice %185 {offsets = [0, 0], sizes = [4, 128], strides = [1, 1]} : vector<4x384xf32> to vector<4x128xf32>
    %188 = arith.addf %186, %187 : vector<4x128xf32>
    %cst_46 = arith.constant 0.000000e+00 : f32
    %189 = vector.broadcast %cst_46 : f32 to vector<4x128xf32>
    %190 = arith.subf %189, %188 : vector<4x128xf32>
    %191 = math.exp %190 : vector<4x128xf32>
    %cst_47 = arith.constant 1.000000e+00 : f32
    %192 = vector.broadcast %cst_47 : f32 to vector<4x128xf32>
    %193 = arith.addf %192, %191 : vector<4x128xf32>
    %cst_48 = arith.constant 1.000000e+00 : f32
    %194 = vector.broadcast %cst_48 : f32 to vector<4x128xf32>
    %195 = arith.divf %194, %193 : vector<4x128xf32>
    %196 = vector.extract_strided_slice %183 {offsets = [0, 128], sizes = [4, 128], strides = [1, 1]} : vector<4x384xf32> to vector<4x128xf32>
    %197 = vector.extract_strided_slice %185 {offsets = [0, 128], sizes = [4, 128], strides = [1, 1]} : vector<4x384xf32> to vector<4x128xf32>
    %198 = arith.addf %196, %197 : vector<4x128xf32>
    %cst_49 = arith.constant 0.000000e+00 : f32
    %199 = vector.broadcast %cst_49 : f32 to vector<4x128xf32>
    %200 = arith.subf %199, %198 : vector<4x128xf32>
    %201 = math.exp %200 : vector<4x128xf32>
    %cst_50 = arith.constant 1.000000e+00 : f32
    %202 = vector.broadcast %cst_50 : f32 to vector<4x128xf32>
    %203 = arith.addf %202, %201 : vector<4x128xf32>
    %cst_51 = arith.constant 1.000000e+00 : f32
    %204 = vector.broadcast %cst_51 : f32 to vector<4x128xf32>
    %205 = arith.divf %204, %203 : vector<4x128xf32>
    %206 = vector.extract_strided_slice %183 {offsets = [0, 256], sizes = [4, 128], strides = [1, 1]} : vector<4x384xf32> to vector<4x128xf32>
    %207 = vector.extract_strided_slice %185 {offsets = [0, 256], sizes = [4, 128], strides = [1, 1]} : vector<4x384xf32> to vector<4x128xf32>
    %208 = arith.addf %207, %15 : vector<4x128xf32>
    %209 = arith.mulf %195, %208 : vector<4x128xf32>
    %210 = arith.addf %206, %209 : vector<4x128xf32>
    %211 = math.tanh %210 : vector<4x128xf32>
    %cst_52 = arith.constant 1.000000e+00 : f32
    %212 = vector.broadcast %cst_52 : f32 to vector<4x128xf32>
    %213 = arith.subf %212, %205 : vector<4x128xf32>
    %214 = arith.mulf %213, %211 : vector<4x128xf32>
    %215 = arith.mulf %205, %182 : vector<4x128xf32>
    %216 = arith.addf %214, %215 : vector<4x128xf32>
    %217 = arith.subf %216, %182 : vector<4x128xf32>
    %218 = arith.mulf %51, %217 : vector<4x128xf32>
    %219 = arith.addf %182, %218 : vector<4x128xf32>
    %220 = vector.extract_strided_slice %11 {offsets = [16, 0], sizes = [4, 384], strides = [1, 1]} : vector<32x384xf32> to vector<4x384xf32>
    %221 = arith.truncf %219 : vector<4x128xf32> to vector<4x128xbf16>
    %cst_53 = arith.constant dense<0.000000e+00> : vector<4x384xf32>
    %222 = tpu.matmul %221, %12, %cst_53 {dimension_numbers = #tpu.dot_dimension_numbers<[1], [0], [0], [1], [0, 0, 1, 1], [], []>} : vector<4x128xbf16>, vector<128x384xbf16>, vector<4x384xf32> -> vector<4x384xf32>
    %223 = vector.extract_strided_slice %220 {offsets = [0, 0], sizes = [4, 128], strides = [1, 1]} : vector<4x384xf32> to vector<4x128xf32>
    %224 = vector.extract_strided_slice %222 {offsets = [0, 0], sizes = [4, 128], strides = [1, 1]} : vector<4x384xf32> to vector<4x128xf32>
    %225 = arith.addf %223, %224 : vector<4x128xf32>
    %cst_54 = arith.constant 0.000000e+00 : f32
    %226 = vector.broadcast %cst_54 : f32 to vector<4x128xf32>
    %227 = arith.subf %226, %225 : vector<4x128xf32>
    %228 = math.exp %227 : vector<4x128xf32>
    %cst_55 = arith.constant 1.000000e+00 : f32
    %229 = vector.broadcast %cst_55 : f32 to vector<4x128xf32>
    %230 = arith.addf %229, %228 : vector<4x128xf32>
    %cst_56 = arith.constant 1.000000e+00 : f32
    %231 = vector.broadcast %cst_56 : f32 to vector<4x128xf32>
    %232 = arith.divf %231, %230 : vector<4x128xf32>
    %233 = vector.extract_strided_slice %220 {offsets = [0, 128], sizes = [4, 128], strides = [1, 1]} : vector<4x384xf32> to vector<4x128xf32>
    %234 = vector.extract_strided_slice %222 {offsets = [0, 128], sizes = [4, 128], strides = [1, 1]} : vector<4x384xf32> to vector<4x128xf32>
    %235 = arith.addf %233, %234 : vector<4x128xf32>
    %cst_57 = arith.constant 0.000000e+00 : f32
    %236 = vector.broadcast %cst_57 : f32 to vector<4x128xf32>
    %237 = arith.subf %236, %235 : vector<4x128xf32>
    %238 = math.exp %237 : vector<4x128xf32>
    %cst_58 = arith.constant 1.000000e+00 : f32
    %239 = vector.broadcast %cst_58 : f32 to vector<4x128xf32>
    %240 = arith.addf %239, %238 : vector<4x128xf32>
    %cst_59 = arith.constant 1.000000e+00 : f32
    %241 = vector.broadcast %cst_59 : f32 to vector<4x128xf32>
    %242 = arith.divf %241, %240 : vector<4x128xf32>
    %243 = vector.extract_strided_slice %220 {offsets = [0, 256], sizes = [4, 128], strides = [1, 1]} : vector<4x384xf32> to vector<4x128xf32>
    %244 = vector.extract_strided_slice %222 {offsets = [0, 256], sizes = [4, 128], strides = [1, 1]} : vector<4x384xf32> to vector<4x128xf32>
    %245 = arith.addf %244, %15 : vector<4x128xf32>
    %246 = arith.mulf %232, %245 : vector<4x128xf32>
    %247 = arith.addf %243, %246 : vector<4x128xf32>
    %248 = math.tanh %247 : vector<4x128xf32>
    %cst_60 = arith.constant 1.000000e+00 : f32
    %249 = vector.broadcast %cst_60 : f32 to vector<4x128xf32>
    %250 = arith.subf %249, %242 : vector<4x128xf32>
    %251 = arith.mulf %250, %248 : vector<4x128xf32>
    %252 = arith.mulf %242, %219 : vector<4x128xf32>
    %253 = arith.addf %251, %252 : vector<4x128xf32>
    %254 = arith.subf %253, %219 : vector<4x128xf32>
    %255 = arith.mulf %59, %254 : vector<4x128xf32>
    %256 = arith.addf %219, %255 : vector<4x128xf32>
    %257 = vector.extract_strided_slice %11 {offsets = [20, 0], sizes = [4, 384], strides = [1, 1]} : vector<32x384xf32> to vector<4x384xf32>
    %258 = arith.truncf %256 : vector<4x128xf32> to vector<4x128xbf16>
    %cst_61 = arith.constant dense<0.000000e+00> : vector<4x384xf32>
    %259 = tpu.matmul %258, %12, %cst_61 {dimension_numbers = #tpu.dot_dimension_numbers<[1], [0], [0], [1], [0, 0, 1, 1], [], []>} : vector<4x128xbf16>, vector<128x384xbf16>, vector<4x384xf32> -> vector<4x384xf32>
    %260 = vector.extract_strided_slice %257 {offsets = [0, 0], sizes = [4, 128], strides = [1, 1]} : vector<4x384xf32> to vector<4x128xf32>
    %261 = vector.extract_strided_slice %259 {offsets = [0, 0], sizes = [4, 128], strides = [1, 1]} : vector<4x384xf32> to vector<4x128xf32>
    %262 = arith.addf %260, %261 : vector<4x128xf32>
    %cst_62 = arith.constant 0.000000e+00 : f32
    %263 = vector.broadcast %cst_62 : f32 to vector<4x128xf32>
    %264 = arith.subf %263, %262 : vector<4x128xf32>
    %265 = math.exp %264 : vector<4x128xf32>
    %cst_63 = arith.constant 1.000000e+00 : f32
    %266 = vector.broadcast %cst_63 : f32 to vector<4x128xf32>
    %267 = arith.addf %266, %265 : vector<4x128xf32>
    %cst_64 = arith.constant 1.000000e+00 : f32
    %268 = vector.broadcast %cst_64 : f32 to vector<4x128xf32>
    %269 = arith.divf %268, %267 : vector<4x128xf32>
    %270 = vector.extract_strided_slice %257 {offsets = [0, 128], sizes = [4, 128], strides = [1, 1]} : vector<4x384xf32> to vector<4x128xf32>
    %271 = vector.extract_strided_slice %259 {offsets = [0, 128], sizes = [4, 128], strides = [1, 1]} : vector<4x384xf32> to vector<4x128xf32>
    %272 = arith.addf %270, %271 : vector<4x128xf32>
    %cst_65 = arith.constant 0.000000e+00 : f32
    %273 = vector.broadcast %cst_65 : f32 to vector<4x128xf32>
    %274 = arith.subf %273, %272 : vector<4x128xf32>
    %275 = math.exp %274 : vector<4x128xf32>
    %cst_66 = arith.constant 1.000000e+00 : f32
    %276 = vector.broadcast %cst_66 : f32 to vector<4x128xf32>
    %277 = arith.addf %276, %275 : vector<4x128xf32>
    %cst_67 = arith.constant 1.000000e+00 : f32
    %278 = vector.broadcast %cst_67 : f32 to vector<4x128xf32>
    %279 = arith.divf %278, %277 : vector<4x128xf32>
    %280 = vector.extract_strided_slice %257 {offsets = [0, 256], sizes = [4, 128], strides = [1, 1]} : vector<4x384xf32> to vector<4x128xf32>
    %281 = vector.extract_strided_slice %259 {offsets = [0, 256], sizes = [4, 128], strides = [1, 1]} : vector<4x384xf32> to vector<4x128xf32>
    %282 = arith.addf %281, %15 : vector<4x128xf32>
    %283 = arith.mulf %269, %282 : vector<4x128xf32>
    %284 = arith.addf %280, %283 : vector<4x128xf32>
    %285 = math.tanh %284 : vector<4x128xf32>
    %cst_68 = arith.constant 1.000000e+00 : f32
    %286 = vector.broadcast %cst_68 : f32 to vector<4x128xf32>
    %287 = arith.subf %286, %279 : vector<4x128xf32>
    %288 = arith.mulf %287, %285 : vector<4x128xf32>
    %289 = arith.mulf %279, %256 : vector<4x128xf32>
    %290 = arith.addf %288, %289 : vector<4x128xf32>
    %291 = arith.subf %290, %256 : vector<4x128xf32>
    %292 = arith.mulf %67, %291 : vector<4x128xf32>
    %293 = arith.addf %256, %292 : vector<4x128xf32>
    %294 = vector.extract_strided_slice %11 {offsets = [24, 0], sizes = [4, 384], strides = [1, 1]} : vector<32x384xf32> to vector<4x384xf32>
    %295 = arith.truncf %293 : vector<4x128xf32> to vector<4x128xbf16>
    %cst_69 = arith.constant dense<0.000000e+00> : vector<4x384xf32>
    %296 = tpu.matmul %295, %12, %cst_69 {dimension_numbers = #tpu.dot_dimension_numbers<[1], [0], [0], [1], [0, 0, 1, 1], [], []>} : vector<4x128xbf16>, vector<128x384xbf16>, vector<4x384xf32> -> vector<4x384xf32>
    %297 = vector.extract_strided_slice %294 {offsets = [0, 0], sizes = [4, 128], strides = [1, 1]} : vector<4x384xf32> to vector<4x128xf32>
    %298 = vector.extract_strided_slice %296 {offsets = [0, 0], sizes = [4, 128], strides = [1, 1]} : vector<4x384xf32> to vector<4x128xf32>
    %299 = arith.addf %297, %298 : vector<4x128xf32>
    %cst_70 = arith.constant 0.000000e+00 : f32
    %300 = vector.broadcast %cst_70 : f32 to vector<4x128xf32>
    %301 = arith.subf %300, %299 : vector<4x128xf32>
    %302 = math.exp %301 : vector<4x128xf32>
    %cst_71 = arith.constant 1.000000e+00 : f32
    %303 = vector.broadcast %cst_71 : f32 to vector<4x128xf32>
    %304 = arith.addf %303, %302 : vector<4x128xf32>
    %cst_72 = arith.constant 1.000000e+00 : f32
    %305 = vector.broadcast %cst_72 : f32 to vector<4x128xf32>
    %306 = arith.divf %305, %304 : vector<4x128xf32>
    %307 = vector.extract_strided_slice %294 {offsets = [0, 128], sizes = [4, 128], strides = [1, 1]} : vector<4x384xf32> to vector<4x128xf32>
    %308 = vector.extract_strided_slice %296 {offsets = [0, 128], sizes = [4, 128], strides = [1, 1]} : vector<4x384xf32> to vector<4x128xf32>
    %309 = arith.addf %307, %308 : vector<4x128xf32>
    %cst_73 = arith.constant 0.000000e+00 : f32
    %310 = vector.broadcast %cst_73 : f32 to vector<4x128xf32>
    %311 = arith.subf %310, %309 : vector<4x128xf32>
    %312 = math.exp %311 : vector<4x128xf32>
    %cst_74 = arith.constant 1.000000e+00 : f32
    %313 = vector.broadcast %cst_74 : f32 to vector<4x128xf32>
    %314 = arith.addf %313, %312 : vector<4x128xf32>
    %cst_75 = arith.constant 1.000000e+00 : f32
    %315 = vector.broadcast %cst_75 : f32 to vector<4x128xf32>
    %316 = arith.divf %315, %314 : vector<4x128xf32>
    %317 = vector.extract_strided_slice %294 {offsets = [0, 256], sizes = [4, 128], strides = [1, 1]} : vector<4x384xf32> to vector<4x128xf32>
    %318 = vector.extract_strided_slice %296 {offsets = [0, 256], sizes = [4, 128], strides = [1, 1]} : vector<4x384xf32> to vector<4x128xf32>
    %319 = arith.addf %318, %15 : vector<4x128xf32>
    %320 = arith.mulf %306, %319 : vector<4x128xf32>
    %321 = arith.addf %317, %320 : vector<4x128xf32>
    %322 = math.tanh %321 : vector<4x128xf32>
    %cst_76 = arith.constant 1.000000e+00 : f32
    %323 = vector.broadcast %cst_76 : f32 to vector<4x128xf32>
    %324 = arith.subf %323, %316 : vector<4x128xf32>
    %325 = arith.mulf %324, %322 : vector<4x128xf32>
    %326 = arith.mulf %316, %293 : vector<4x128xf32>
    %327 = arith.addf %325, %326 : vector<4x128xf32>
    %328 = arith.subf %327, %293 : vector<4x128xf32>
    %329 = arith.mulf %75, %328 : vector<4x128xf32>
    %330 = arith.addf %293, %329 : vector<4x128xf32>
    %331 = vector.extract_strided_slice %11 {offsets = [28, 0], sizes = [4, 384], strides = [1, 1]} : vector<32x384xf32> to vector<4x384xf32>
    %332 = arith.truncf %330 : vector<4x128xf32> to vector<4x128xbf16>
    %cst_77 = arith.constant dense<0.000000e+00> : vector<4x384xf32>
    %333 = tpu.matmul %332, %12, %cst_77 {dimension_numbers = #tpu.dot_dimension_numbers<[1], [0], [0], [1], [0, 0, 1, 1], [], []>} : vector<4x128xbf16>, vector<128x384xbf16>, vector<4x384xf32> -> vector<4x384xf32>
    %334 = vector.extract_strided_slice %331 {offsets = [0, 0], sizes = [4, 128], strides = [1, 1]} : vector<4x384xf32> to vector<4x128xf32>
    %335 = vector.extract_strided_slice %333 {offsets = [0, 0], sizes = [4, 128], strides = [1, 1]} : vector<4x384xf32> to vector<4x128xf32>
    %336 = arith.addf %334, %335 : vector<4x128xf32>
    %cst_78 = arith.constant 0.000000e+00 : f32
    %337 = vector.broadcast %cst_78 : f32 to vector<4x128xf32>
    %338 = arith.subf %337, %336 : vector<4x128xf32>
    %339 = math.exp %338 : vector<4x128xf32>
    %cst_79 = arith.constant 1.000000e+00 : f32
    %340 = vector.broadcast %cst_79 : f32 to vector<4x128xf32>
    %341 = arith.addf %340, %339 : vector<4x128xf32>
    %cst_80 = arith.constant 1.000000e+00 : f32
    %342 = vector.broadcast %cst_80 : f32 to vector<4x128xf32>
    %343 = arith.divf %342, %341 : vector<4x128xf32>
    %344 = vector.extract_strided_slice %331 {offsets = [0, 128], sizes = [4, 128], strides = [1, 1]} : vector<4x384xf32> to vector<4x128xf32>
    %345 = vector.extract_strided_slice %333 {offsets = [0, 128], sizes = [4, 128], strides = [1, 1]} : vector<4x384xf32> to vector<4x128xf32>
    %346 = arith.addf %344, %345 : vector<4x128xf32>
    %cst_81 = arith.constant 0.000000e+00 : f32
    %347 = vector.broadcast %cst_81 : f32 to vector<4x128xf32>
    %348 = arith.subf %347, %346 : vector<4x128xf32>
    %349 = math.exp %348 : vector<4x128xf32>
    %cst_82 = arith.constant 1.000000e+00 : f32
    %350 = vector.broadcast %cst_82 : f32 to vector<4x128xf32>
    %351 = arith.addf %350, %349 : vector<4x128xf32>
    %cst_83 = arith.constant 1.000000e+00 : f32
    %352 = vector.broadcast %cst_83 : f32 to vector<4x128xf32>
    %353 = arith.divf %352, %351 : vector<4x128xf32>
    %354 = vector.extract_strided_slice %331 {offsets = [0, 256], sizes = [4, 128], strides = [1, 1]} : vector<4x384xf32> to vector<4x128xf32>
    %355 = vector.extract_strided_slice %333 {offsets = [0, 256], sizes = [4, 128], strides = [1, 1]} : vector<4x384xf32> to vector<4x128xf32>
    %356 = arith.addf %355, %15 : vector<4x128xf32>
    %357 = arith.mulf %343, %356 : vector<4x128xf32>
    %358 = arith.addf %354, %357 : vector<4x128xf32>
    %359 = math.tanh %358 : vector<4x128xf32>
    %cst_84 = arith.constant 1.000000e+00 : f32
    %360 = vector.broadcast %cst_84 : f32 to vector<4x128xf32>
    %361 = arith.subf %360, %353 : vector<4x128xf32>
    %362 = arith.mulf %361, %359 : vector<4x128xf32>
    %363 = arith.mulf %353, %330 : vector<4x128xf32>
    %364 = arith.addf %362, %363 : vector<4x128xf32>
    %365 = arith.subf %364, %330 : vector<4x128xf32>
    %366 = arith.mulf %83, %365 : vector<4x128xf32>
    %367 = arith.addf %330, %366 : vector<4x128xf32>
    %c8_i32 = arith.constant 8 : i32
    %368 = vector.broadcast %c8_i32 : i32 to vector<4x1xi32>
    %369 = arith.cmpi sge, %16, %368 : vector<4x1xi32>
    %370 = arith.extui %369 : vector<4x1xi1> to vector<4x1xi32>
    %371 = arith.sitofp %370 : vector<4x1xi32> to vector<4x1xf32>
    %cst_85 = arith.constant 1.000000e+00 : f32
    %372 = vector.shape_cast %371 : vector<4x1xf32> to vector<4x1xf32>
    %373 = vector.broadcast %372 : vector<4x1xf32> to vector<4x128xf32>
    %374 = vector.broadcast %cst_85 : f32 to vector<4x128xf32>
    %375 = arith.select %19, %373, %374 : vector<4x128xi1>, vector<4x128xf32>
    %376 = arith.mulf %367, %375 : vector<4x128xf32>
    %c0_i32_86 = arith.constant 0 : i32
    %377 = tpu.memref_slice %arg16[%c0_i32_86] : memref<3x!tpu.dma_semaphore, #tpu.memory_space<semaphore_mem>> -> memref<1x!tpu.dma_semaphore, #tpu.memory_space<semaphore_mem>>
    %378 = tpu.memref_squeeze %377 : memref<1x!tpu.dma_semaphore, #tpu.memory_space<semaphore_mem>> -> memref<!tpu.dma_semaphore, #tpu.memory_space<semaphore_mem>>
    tpu.wait_dma2 semaphore(%378 : memref<!tpu.dma_semaphore, #tpu.memory_space<semaphore_mem>>) src(%arg6 : memref<128x1024xbf16, #tpu.memory_space<any>>) dst(%arg13 : memref<128x1024xbf16, #tpu.memory_space<vmem>>)
    %379 = arith.truncf %376 : vector<4x128xf32> to vector<4x128xbf16>
    %c0_87 = arith.constant 0 : index
    %c0_88 = arith.constant 0 : index
    %380 = vector.load %arg13[%c0_87, %c0_88] : memref<128x1024xbf16, #tpu.memory_space<vmem>>, vector<128x1024xbf16>
    %cst_89 = arith.constant dense<0.000000e+00> : vector<4x1024xf32>
    %381 = tpu.matmul %379, %380, %cst_89 {dimension_numbers = #tpu.dot_dimension_numbers<[1], [0], [0], [1], [0, 0, 1, 1], [], []>} : vector<4x128xbf16>, vector<128x1024xbf16>, vector<4x1024xf32> -> vector<4x1024xf32>
    %c0_90 = arith.constant 0 : index
    %c0_91 = arith.constant 0 : index
    %382 = vector.load %arg7[%c0_90, %c0_91] : memref<1x1024xf32, #tpu.memory_space<vmem>>, vector<1x1024xf32>
    %383 = vector.broadcast %382 : vector<1x1024xf32> to vector<4x1024xf32>
    %384 = arith.addf %381, %383 : vector<4x1024xf32>
    %cst_92 = arith.constant 2.000000e+01 : f32
    %385 = vector.broadcast %cst_92 : f32 to vector<4x1024xf32>
    %386 = arith.cmpf ogt, %384, %385 : vector<4x1024xf32>
    %cst_93 = arith.constant 2.000000e+01 : f32
    %387 = vector.broadcast %cst_93 : f32 to vector<4x1024xf32>
    %388 = arith.minimumf %384, %387 : vector<4x1024xf32>
    %389 = math.exp %388 : vector<4x1024xf32>
    %390 = math.log1p %389 : vector<4x1024xf32>
    %391 = arith.select %386, %384, %390 : vector<4x1024xi1>, vector<4x1024xf32>
    %392 = math.tanh %391 : vector<4x1024xf32>
    %393 = arith.mulf %384, %392 : vector<4x1024xf32>
    %c1_i32_94 = arith.constant 1 : i32
    %394 = tpu.memref_slice %arg16[%c1_i32_94] : memref<3x!tpu.dma_semaphore, #tpu.memory_space<semaphore_mem>> -> memref<1x!tpu.dma_semaphore, #tpu.memory_space<semaphore_mem>>
    %395 = tpu.memref_squeeze %394 : memref<1x!tpu.dma_semaphore, #tpu.memory_space<semaphore_mem>> -> memref<!tpu.dma_semaphore, #tpu.memory_space<semaphore_mem>>
    tpu.wait_dma2 semaphore(%395 : memref<!tpu.dma_semaphore, #tpu.memory_space<semaphore_mem>>) src(%arg8 : memref<1024x512xbf16, #tpu.memory_space<any>>) dst(%arg14 : memref<1024x512xbf16, #tpu.memory_space<vmem>>)
    %396 = arith.truncf %393 : vector<4x1024xf32> to vector<4x1024xbf16>
    %c0_95 = arith.constant 0 : index
    %c0_96 = arith.constant 0 : index
    %397 = vector.load %arg14[%c0_95, %c0_96] : memref<1024x512xbf16, #tpu.memory_space<vmem>>, vector<1024x512xbf16>
    %cst_97 = arith.constant dense<0.000000e+00> : vector<4x512xf32>
    %398 = tpu.matmul %396, %397, %cst_97 {dimension_numbers = #tpu.dot_dimension_numbers<[1], [0], [0], [1], [0, 0, 1, 1], [], []>} : vector<4x1024xbf16>, vector<1024x512xbf16>, vector<4x512xf32> -> vector<4x512xf32>
    %c0_98 = arith.constant 0 : index
    %c0_99 = arith.constant 0 : index
    %399 = vector.load %arg9[%c0_98, %c0_99] : memref<1x512xf32, #tpu.memory_space<vmem>>, vector<1x512xf32>
    %400 = vector.broadcast %399 : vector<1x512xf32> to vector<4x512xf32>
    %401 = arith.addf %398, %400 : vector<4x512xf32>
    %cst_100 = arith.constant 2.000000e+01 : f32
    %402 = vector.broadcast %cst_100 : f32 to vector<4x512xf32>
    %403 = arith.cmpf ogt, %401, %402 : vector<4x512xf32>
    %cst_101 = arith.constant 2.000000e+01 : f32
    %404 = vector.broadcast %cst_101 : f32 to vector<4x512xf32>
    %405 = arith.minimumf %401, %404 : vector<4x512xf32>
    %406 = math.exp %405 : vector<4x512xf32>
    %407 = math.log1p %406 : vector<4x512xf32>
    %408 = arith.select %403, %401, %407 : vector<4x512xi1>, vector<4x512xf32>
    %409 = math.tanh %408 : vector<4x512xf32>
    %410 = arith.mulf %401, %409 : vector<4x512xf32>
    %c2_i32_102 = arith.constant 2 : i32
    %411 = tpu.memref_slice %arg16[%c2_i32_102] : memref<3x!tpu.dma_semaphore, #tpu.memory_space<semaphore_mem>> -> memref<1x!tpu.dma_semaphore, #tpu.memory_space<semaphore_mem>>
    %412 = tpu.memref_squeeze %411 : memref<1x!tpu.dma_semaphore, #tpu.memory_space<semaphore_mem>> -> memref<!tpu.dma_semaphore, #tpu.memory_space<semaphore_mem>>
    tpu.wait_dma2 semaphore(%412 : memref<!tpu.dma_semaphore, #tpu.memory_space<semaphore_mem>>) src(%arg10 : memref<512x128xbf16, #tpu.memory_space<any>>) dst(%arg15 : memref<512x128xbf16, #tpu.memory_space<vmem>>)
    %413 = arith.truncf %410 : vector<4x512xf32> to vector<4x512xbf16>
    %c0_103 = arith.constant 0 : index
    %c0_104 = arith.constant 0 : index
    %414 = vector.load %arg15[%c0_103, %c0_104] : memref<512x128xbf16, #tpu.memory_space<vmem>>, vector<512x128xbf16>
    %cst_105 = arith.constant dense<0.000000e+00> : vector<4x128xf32>
    %415 = tpu.matmul %413, %414, %cst_105 {dimension_numbers = #tpu.dot_dimension_numbers<[1], [0], [0], [1], [0, 0, 1, 1], [], []>} : vector<4x512xbf16>, vector<512x128xbf16>, vector<4x128xf32> -> vector<4x128xf32>
    %c0_106 = arith.constant 0 : index
    %c0_107 = arith.constant 0 : index
    %416 = vector.load %arg11[%c0_106, %c0_107] : memref<1x128xf32, #tpu.memory_space<vmem>>, vector<1x128xf32>
    %417 = vector.broadcast %416 : vector<1x128xf32> to vector<4x128xf32>
    %418 = arith.addf %415, %417 : vector<4x128xf32>
    %c0_108 = arith.constant 0 : index
    %c0_109 = arith.constant 0 : index
    %419 = vector.load %arg12[%c0_108, %c0_109] : memref<4x128xf32, #tpu.memory_space<vmem>>, vector<4x128xf32>
    tpu.vector_store %arg12[%c0_108, %c0_109], %418 {strides = array<i32>} : memref<4x128xf32, #tpu.memory_space<vmem>>, vector<4x128xf32>,
    return
  }
}

</mosaic_0001>

<llo_original>
// kernel: tpu_custom_call.1
$region0: #{tpu_custom_call.1}
  #allocation0 [shape = 'u32[]', space=smem, size = 0x4, offset = 0x4, fixed_abs, tag = 'smem constant byte address 0x4 - core index']
  #allocation1 [shape = 'u32[72,128]{1,0:T(1,128)}', space=vmem, size = 0x9000, scoped, tag = 'internal scratch']
  #allocation2 [shape = 'bf16[128,1024]{1,0:T(8,128)(2,1)}', space=vmem, size = 0x40000, scoped, tag = 'scratch operand']
  #allocation3 [shape = 'bf16[1024,512]{1,0:T(8,128)(2,1)}', space=vmem, size = 0x100000, scoped, tag = 'scratch operand']
  #allocation4 [shape = 'bf16[512,128]{1,0:T(8,128)(2,1)}', space=vmem, size = 0x20000, scoped, tag = 'scratch operand']
  #allocation5 [shape = 's32[3]{0}', space=sflag, size = 0xc, scoped, tag = 'scratch operand']
  #allocation16 [shape = 's32[]', space=sflag, size = 0x4, offset = 0, fixed_abs, tag = 'sflag constant byte address 0x0 - dummy sync flag']
  #allocation17 [shape = 's32[]', space=sflag, size = 0x4, offset = 0, fixed_abs, tag = 'sflag constant byte address 0x0 - dummy sync flag']
  #allocation18 [shape = 'u32[]', space=smem, size = 0x4, offset = 0x44, fixed_abs, tag = 'smem constant byte address 0x44 - assertion arg 0']
  #allocation19 [shape = 'u32[]', space=smem, size = 0x4, offset = 0x48, fixed_abs, tag = 'smem constant byte address 0x48 - assertion arg 1']
  #allocation20 [shape = 's32[]', space=sflag, size = 0x4, offset = 0, fixed_abs, tag = 'sflag constant byte address 0x0 - dummy sync flag']
  #allocation21 [shape = 's32[]', space=sflag, size = 0x4, offset = 0, fixed_abs, tag = 'sflag constant byte address 0x0 - dummy sync flag']
  #allocation22 [shape = 's32[]', space=sflag, size = 0x4, offset = 0, fixed_abs, tag = 'sflag constant byte address 0x0 - dummy sync flag']
  #allocation23 [shape = 's32[]', space=sflag, size = 0x4, offset = 0, fixed_abs, tag = 'sflag constant byte address 0x0 - dummy sync flag']
  %s0 = inlined_call_operand.hbm [shape: f32[32,32], index: 0, kind: input, shape index: {}]
  %s1 = inlined_call_operand.vmem [shape: s32[4,1], index: 1, kind: input, shape index: {}]
  %s2 = inlined_call_operand.hbm [shape: f32[32,384], index: 2, kind: input, shape index: {}]
  %s3 = inlined_call_operand.hbm [shape: f32[1,384], index: 3, kind: input, shape index: {}]
  %s4 = inlined_call_operand.hbm [shape: bf16[128,384], index: 4, kind: input, shape index: {}]
  %s5 = inlined_call_operand.hbm [shape: f32[1,128], index: 5, kind: input, shape index: {}]
  %s6 = inlined_call_operand.hbm [shape: bf16[128,1024], index: 6, kind: input, shape index: {}]
  %s7 = inlined_call_operand.vmem [shape: f32[1,1024], index: 7, kind: input, shape index: {}]
  %s8 = inlined_call_operand.hbm [shape: bf16[1024,512], index: 8, kind: input, shape index: {}]
  %s9 = inlined_call_operand.vmem [shape: f32[1,512], index: 9, kind: input, shape index: {}]
  %s10 = inlined_call_operand.hbm [shape: bf16[512,128], index: 10, kind: input, shape index: {}]
  %s11 = inlined_call_operand.vmem [shape: f32[1,128], index: 11, kind: input, shape index: {}]
  %s12 = inlined_call_operand.hbm [shape: f32[4,128], index: 12, kind: output, shape index: {}]
  %s13 = sld [smem:[#allocation0]]
  $region78: #{tpu_custom_call.1} parent=0
    _
  %s15 = ssub.s32 1, %s13
  %s16 = scalar_select 0, %s15, %s13
  $region1: #{tpu_custom_call.1} parent=0
    #allocation6 [shape = 'u8[16384]{0}', space=vmem, size = 0x4000, scoped, tag = 'input window, operand 0, single buffered']
    #allocation7 [shape = 's32[1]{0}', space=sflag, size = 0x4, scoped, tag = 'scoped memory for tpu_custom_call.1']
    #allocation8 [shape = 's32[1]{0}', space=sflag, size = 0x4, scoped, tag = 'scoped memory for tpu_custom_call.1']
    #allocation9 [shape = 'u8[49152]{0}', space=vmem, size = 0xc000, scoped, tag = 'input window, operand 2, single buffered']
    #allocation10 [shape = 's32[1]{0}', space=sflag, size = 0x4, scoped, tag = 'scoped memory for tpu_custom_call.1']
    #allocation11 [shape = 'u8[1536]{0}', space=vmem, size = 0x800, scoped, tag = 'input window, operand 3, single buffered']
    #allocation12 [shape = 'u8[98304]{0}', space=vmem, size = 0x18000, scoped, tag = 'input window, operand 4, single buffered']
    #allocation13 [shape = 's32[1]{0}', space=sflag, size = 0x4, scoped, tag = 'scoped memory for tpu_custom_call.1']
    #allocation14 [shape = 'u8[512]{0}', space=vmem, size = 0x400, scoped, tag = 'input window, operand 5, single buffered']
    #allocation15 [shape = 'u8[2048]{0}', space=vmem, size = 0x800, scoped, tag = 'output window, operand 0, single buffered']
    %17 = vsyncpa [#allocation7], 0
    %18 = vsyncpa [#allocation10], 0
    %19 = vsyncpa [#allocation13], 0
    %20 = vsyncpa [#allocation8], 0
    // Predicated region
    $region2: #{tpu_custom_call.1} parent=1 // pred_check
      _
    $region3: #{tpu_custom_call.1} parent=1 // pred_check_branch
      %22 = sbr.rel (0) target = $region5
    $region4: #{tpu_custom_call.1} parent=1 // pred_region
      %24 = vsyncadd [#allocation7], 0
      %s25 = sshll.u32 %s0, 4
      %s26 = int_to_ptr.hbm [resolvable:$true] %s25
      %s27 = sshll.u32 [#allocation6], 4
      %s28 = int_to_ptr.vmem [resolvable:$true] %s27
      %33 = dma.hbm_to_vmem [thread:$0]  %s26, 512, %s28, [#allocation7], 128, 128, 8
    $region5: #{tpu_custom_call.1} parent=1 // pred_fallthru
      _
    // Predicated region
    $region6: #{tpu_custom_call.1} parent=1 // pred_check
      _
    $region7: #{tpu_custom_call.1} parent=1 // pred_check_branch
      %35 = sbr.rel (0) target = $region9
    $region8: #{tpu_custom_call.1} parent=1 // pred_region
      _
    $region9: #{tpu_custom_call.1} parent=1 // pred_fallthru
      _
    // Predicated region
    $region10: #{tpu_custom_call.1} parent=1 // pred_check
      _
    $region11: #{tpu_custom_call.1} parent=1 // pred_check_branch
      %37 = sbr.rel (0) target = $region13
    $region12: #{tpu_custom_call.1} parent=1 // pred_region
      %39 = vsyncadd [#allocation10], 0
      %s40 = sshll.u32 %s2, 4
      %s41 = int_to_ptr.hbm [resolvable:$true] %s40
      %s42 = sshll.u32 [#allocation9], 4
      %s43 = int_to_ptr.vmem [resolvable:$true] %s42
      %48 = dma.hbm_to_vmem [thread:$0]  %s41, 1536, %s43, [#allocation10], 384, 384, 24
    $region13: #{tpu_custom_call.1} parent=1 // pred_fallthru
      _
    // Predicated region
    $region14: #{tpu_custom_call.1} parent=1 // pred_check
      _
    $region15: #{tpu_custom_call.1} parent=1 // pred_check_branch
      %50 = sbr.rel (0) target = $region17
    $region16: #{tpu_custom_call.1} parent=1 // pred_region
      %52 = vsyncadd [#allocation10], 0
      %s54 = sshll.u32 %s3, 4
      %s55 = int_to_ptr.hbm [resolvable:$true] %s54
      %s56 = sshll.u32 [#allocation11], 4
      %s57 = int_to_ptr.vmem [resolvable:$true] %s56
      %59 = dma.hbm_to_vmem [thread:$0]  %s55, 48, %s57, [#allocation10]
    $region17: #{tpu_custom_call.1} parent=1 // pred_fallthru
      _
    // Predicated region
    $region18: #{tpu_custom_call.1} parent=1 // pred_check
      _
    $region19: #{tpu_custom_call.1} parent=1 // pred_check_branch
      %61 = sbr.rel (0) target = $region21
    $region20: #{tpu_custom_call.1} parent=1 // pred_region
      %63 = vsyncadd [#allocation13], 0
      %s64 = sshll.u32 %s4, 4
      %s65 = int_to_ptr.hbm [resolvable:$true] %s64
      %s66 = sshll.u32 [#allocation12], 4
      %s67 = int_to_ptr.vmem [resolvable:$true] %s66
      %72 = dma.hbm_to_vmem [thread:$0]  %s65, 3072, %s67, [#allocation13], 192, 192, 12
    $region21: #{tpu_custom_call.1} parent=1 // pred_fallthru
      _
    // Predicated region
    $region22: #{tpu_custom_call.1} parent=1 // pred_check
      _
    $region23: #{tpu_custom_call.1} parent=1 // pred_check_branch
      %74 = sbr.rel (0) target = $region25
    $region24: #{tpu_custom_call.1} parent=1 // pred_region
      %76 = vsyncadd [#allocation13], 0
      %s78 = sshll.u32 %s5, 4
      %s79 = int_to_ptr.hbm [resolvable:$true] %s78
      %s80 = sshll.u32 [#allocation14], 4
      %s81 = int_to_ptr.vmem [resolvable:$true] %s80
      %83 = dma.hbm_to_vmem [thread:$0]  %s79, 16, %s81, [#allocation13]
    $region25: #{tpu_custom_call.1} parent=1 // pred_fallthru
      _
    // Predicated region
    $region26: #{tpu_custom_call.1} parent=1 // pred_check
      _
    $region27: #{tpu_custom_call.1} parent=1 // pred_check_branch
      %85 = sbr.rel (0) target = $region29
    $region28: #{tpu_custom_call.1} parent=1 // pred_region
      _
    $region29: #{tpu_custom_call.1} parent=1 // pred_fallthru
      _
    // Predicated region
    $region30: #{tpu_custom_call.1} parent=1 // pred_check
      _
    $region31: #{tpu_custom_call.1} parent=1 // pred_check_branch
      %87 = sbr.rel (0) target = $region33
    $region32: #{tpu_custom_call.1} parent=1 // pred_region
      _
    $region33: #{tpu_custom_call.1} parent=1 // pred_fallthru
      _
    // Predicated region
    $region34: #{tpu_custom_call.1} parent=1 // pred_check
      _
    $region35: #{tpu_custom_call.1} parent=1 // pred_check_branch
      %89 = sbr.rel (0) target = $region37
    $region36: #{tpu_custom_call.1} parent=1 // pred_region
      _
    $region37: #{tpu_custom_call.1} parent=1 // pred_fallthru
      _
    // Predicated region
    $region38: #{tpu_custom_call.1} parent=1 // pred_check
      _
    $region39: #{tpu_custom_call.1} parent=1 // pred_check_branch
      %91 = sbr.rel (0) target = $region41
    $region40: #{tpu_custom_call.1} parent=1 // pred_region
      %93 = dma.done [#allocation7], 512
    $region41: #{tpu_custom_call.1} parent=1 // pred_fallthru
      _
    // Predicated region
    $region42: #{tpu_custom_call.1} parent=1 // pred_check
      _
    $region43: #{tpu_custom_call.1} parent=1 // pred_check_branch
      %95 = sbr.rel (0) target = $region45
    $region44: #{tpu_custom_call.1} parent=1 // pred_region
      %97 = dma.done [#allocation10], 1536
    $region45: #{tpu_custom_call.1} parent=1 // pred_fallthru
      _
    // Predicated region
    $region46: #{tpu_custom_call.1} parent=1 // pred_check
      _
    $region47: #{tpu_custom_call.1} parent=1 // pred_check_branch
      %99 = sbr.rel (0) target = $region49
    $region48: #{tpu_custom_call.1} parent=1 // pred_region
      %101 = dma.done [#allocation10], 48
    $region49: #{tpu_custom_call.1} parent=1 // pred_fallthru
      _
    // Predicated region
    $region50: #{tpu_custom_call.1} parent=1 // pred_check
      _
    $region51: #{tpu_custom_call.1} parent=1 // pred_check_branch
      %103 = sbr.rel (0) target = $region53
    $region52: #{tpu_custom_call.1} parent=1 // pred_region
      %105 = dma.done [#allocation13], 3072
    $region53: #{tpu_custom_call.1} parent=1 // pred_fallthru
      _
    // Predicated region
    $region54: #{tpu_custom_call.1} parent=1 // pred_check
      _
    $region55: #{tpu_custom_call.1} parent=1 // pred_check_branch
      %107 = sbr.rel (0) target = $region57
    $region56: #{tpu_custom_call.1} parent=1 // pred_region
      %109 = dma.done [#allocation13], 16
    $region57: #{tpu_custom_call.1} parent=1 // pred_fallthru
      _
    // Predicated region
    $region58: #{tpu_custom_call.1} parent=1 // pred_check
      _
    $region59: #{tpu_custom_call.1} parent=1 // pred_check_branch
      %111 = sbr.rel target = $region61
    $region60: #{tpu_custom_call.1} parent=1 // pred_region
      %112 = sst [smem:[#allocation18]] [#allocation17]
      %113 = sst [smem:[#allocation19]] [#allocation16]
    $region61: #{tpu_custom_call.1} parent=1 // pred_fallthru
      _
    %115 = shalt.err (0)
    %s117 = sshll.u32 %s6, 4
    %s118 = int_to_ptr.hbm [resolvable:$true] %s117
    %s119 = sshll.u32 [#allocation2], 4
    %s120 = int_to_ptr.vmem [resolvable:$true] %s119
    %122 = dma.hbm_to_vmem [thread:$0]  %s118, 8192, %s120, [#allocation5]
    %s123 = scalar_lea.sflag [#allocation5], 1
    // Predicated region
    $region62: #{tpu_custom_call.1} parent=1 // pred_check
      _
    $region63: #{tpu_custom_call.1} parent=1 // pred_check_branch
      %125 = sbr.rel target = $region65
    $region64: #{tpu_custom_call.1} parent=1 // pred_region
      %126 = sst [smem:[#allocation18]] [#allocation21]
      %127 = sst [smem:[#allocation19]] [#allocation20]
    $region65: #{tpu_custom_call.1} parent=1 // pred_fallthru
      _
    %129 = shalt.err (0)
    %s131 = sshll.u32 %s8, 4
    %s132 = int_to_ptr.hbm [resolvable:$true] %s131
    %s133 = sshll.u32 [#allocation3], 4
    %s134 = int_to_ptr.vmem [resolvable:$true] %s133
    %136 = dma.hbm_to_vmem [thread:$0]  %s132, 32768, %s134, %s123
    %s137 = scalar_lea.sflag [#allocation5], 2
    // Predicated region
    $region66: #{tpu_custom_call.1} parent=1 // pred_check
      _
    $region67: #{tpu_custom_call.1} parent=1 // pred_check_branch
      %139 = sbr.rel target = $region69
    $region68: #{tpu_custom_call.1} parent=1 // pred_region
      %140 = sst [smem:[#allocation18]] [#allocation23]
      %141 = sst [smem:[#allocation19]] [#allocation22]
    $region69: #{tpu_custom_call.1} parent=1 // pred_fallthru
      _
    %143 = shalt.err (0)
    %s145 = sshll.u32 %s10, 4
    %s146 = int_to_ptr.hbm [resolvable:$true] %s145
    %s147 = sshll.u32 [#allocation4], 4
    %s148 = int_to_ptr.vmem [resolvable:$true] %s147
    %150 = dma.hbm_to_vmem [thread:$0]  %s146, 4096, %s148, %s137
    %v151 = vld [vmem:[#allocation6] sm:$0xff]
    %v152 = vld [vmem:[#allocation6 + $0x8] sm:$0xff]
    %v153 = vld [vmem:[#allocation6 + $0x10] sm:$0xff]
    %v154 = vld [vmem:[#allocation6 + $0x18] sm:$0xff]
    %v155 = vld [vmem:[#allocation9] sm:$0xff]
    %v156 = vld [vmem:[#allocation9 + $0x8] sm:$0xff]
    %v157 = vld [vmem:[#allocation9 + $0x10] sm:$0xff]
    %v158 = vld [vmem:[#allocation9 + $0x18] sm:$0xff]
    %v159 = vld [vmem:[#allocation9 + $0x20] sm:$0xff]
    %v160 = vld [vmem:[#allocation9 + $0x28] sm:$0xff]
    %v161 = vld [vmem:[#allocation9 + $0x30] sm:$0xff]
    %v162 = vld [vmem:[#allocation9 + $0x38] sm:$0xff]
    %v163 = vld [vmem:[#allocation9 + $0x40] sm:$0xff]
    %v164 = vld [vmem:[#allocation9 + $0x48] sm:$0xff]
    %v165 = vld [vmem:[#allocation9 + $0x50] sm:$0xff]
    %v166 = vld [vmem:[#allocation9 + $0x58] sm:$0xff]
    %v167 = vld [vmem:[#allocation11] sm:$0x7]
    %v169 = vperm.slane %v167, 0
    %v170 = vperm.slane %v167, 1
    %v171 = vperm.slane %v167, 2
    %vm175 = vcmask 261120
    %v177 = vsel %vm175, %v151, 0
    %v180 = vsel %vm175, %v152, 0
    %v183 = vsel %vm175, %v153, 0
    %v186 = vsel %vm175, %v154, 0
    %188 = vmatpush.msra.mxu0 0.0
    %189 = vmatpush.msra.mxu0 0.0
    %190 = vmatpush.msra.mxu0 0.0
    %191 = vmatpush.msra.mxu0 0.0
    %192 = vmatpush.msra.mxu0 0.0
    %193 = vmatpush.msra.mxu0 0.0
    %194 = vmatpush.msra.mxu0 0.0
    %195 = vmatpush.msra.mxu0 0.0
    %196 = vmatpush.msra.mxu0 0.0
    %197 = vmatpush.msra.mxu0 0.0
    %198 = vmatpush.msra.mxu0 0.0
    %199 = vmatpush.msra.mxu0 0.0
    %200 = vmatpush.msra.mxu0 %v164
    %201 = vmatpush.msra.mxu0 %v161
    %202 = vmatpush.msra.mxu0 %v158
    %203 = vmatpush.msra.mxu0 %v155
    %204 = vmatmul.f32.gmra.mxu0 %v177
    %v205 = vpop.f32.mrf.mxu0
    %v206 = vadd.f32 %v169, %v205
    %207 = vmatmul.f32.gmra.mxu0 %v180
    %v208 = vpop.f32.mrf.mxu0
    %v209 = vadd.f32 %v169, %v208
    %210 = vmatmul.f32.gmra.mxu0 %v183
    %v211 = vpop.f32.mrf.mxu0
    %v212 = vadd.f32 %v169, %v211
    %213 = vmatmul.f32.gmra.mxu0 %v186
    %v214 = vpop.f32.mrf.mxu0
    %v215 = vadd.f32 %v169, %v214
    %216 = vdwg.mxu0
    %217 = vmatpush.msra.mxu0 0.0
    %218 = vmatpush.msra.mxu0 0.0
    %219 = vmatpush.msra.mxu0 0.0
    %220 = vmatpush.msra.mxu0 0.0
    %221 = vmatpush.msra.mxu0 0.0
    %222 = vmatpush.msra.mxu0 0.0
    %223 = vmatpush.msra.mxu0 0.0
    %224 = vmatpush.msra.mxu0 0.0
    %225 = vmatpush.msra.mxu0 0.0
    %226 = vmatpush.msra.mxu0 0.0
    %227 = vmatpush.msra.mxu0 0.0
    %228 = vmatpush.msra.mxu0 0.0
    %229 = vmatpush.msra.mxu0 %v165
    %230 = vmatpush.msra.mxu0 %v162
    %231 = vmatpush.msra.mxu0 %v159
    %232 = vmatpush.msra.mxu0 %v156
    %233 = vmatmul.f32.gmra.mxu0 %v177
    %v234 = vpop.f32.mrf.mxu0
    %v235 = vadd.f32 %v170, %v234
    %236 = vmatmul.f32.gmra.mxu0 %v180
    %v237 = vpop.f32.mrf.mxu0
    %v238 = vadd.f32 %v170, %v237
    %239 = vmatmul.f32.gmra.mxu0 %v183
    %v240 = vpop.f32.mrf.mxu0
    %v241 = vadd.f32 %v170, %v240
    %242 = vmatmul.f32.gmra.mxu0 %v186
    %v243 = vpop.f32.mrf.mxu0
    %v244 = vadd.f32 %v170, %v243
    %245 = vdwg.mxu0
    %246 = vmatpush.msra.mxu0 0.0
    %247 = vmatpush.msra.mxu0 0.0
    %248 = vmatpush.msra.mxu0 0.0
    %249 = vmatpush.msra.mxu0 0.0
    %250 = vmatpush.msra.mxu0 0.0
    %251 = vmatpush.msra.mxu0 0.0
    %252 = vmatpush.msra.mxu0 0.0
    %253 = vmatpush.msra.mxu0 0.0
    %254 = vmatpush.msra.mxu0 0.0
    %255 = vmatpush.msra.mxu0 0.0
    %256 = vmatpush.msra.mxu0 0.0
    %257 = vmatpush.msra.mxu0 0.0
    %258 = vmatpush.msra.mxu0 %v166
    %259 = vmatpush.msra.mxu0 %v163
    %260 = vmatpush.msra.mxu0 %v160
    %261 = vmatpush.msra.mxu0 %v157
    %262 = vmatmul.f32.gmra.mxu0 %v177
    %v263 = vpop.f32.mrf.mxu0
    %v264 = vadd.f32 %v171, %v263
    %265 = vmatmul.f32.gmra.mxu0 %v180
    %v266 = vpop.f32.mrf.mxu0
    %v267 = vadd.f32 %v171, %v266
    %268 = vmatmul.f32.gmra.mxu0 %v183
    %v269 = vpop.f32.mrf.mxu0
    %v270 = vadd.f32 %v171, %v269
    %271 = vmatmul.f32.gmra.mxu0 %v186
    %v272 = vpop.f32.mrf.mxu0
    %v273 = vadd.f32 %v171, %v272
    %274 = vdwg.mxu0
    %v275 = vld [vmem:[#allocation12] sm:$0xff]
    %v276 = vld [vmem:[#allocation12 + $0x8] sm:$0xf]
    %v277 = vld [vmem:[#allocation12 + $0xc] sm:$0xff]
    %v278 = vld [vmem:[#allocation12 + $0x14] sm:$0xf]
    %v279 = vld [vmem:[#allocation12 + $0x18] sm:$0xff]
    %v280 = vld [vmem:[#allocation12 + $0x20] sm:$0xf]
    %v281 = vld [vmem:[#allocation12 + $0x24] sm:$0xff]
    %v282 = vld [vmem:[#allocation12 + $0x2c] sm:$0xf]
    %v283 = vld [vmem:[#allocation12 + $0x30] sm:$0xff]
    %v284 = vld [vmem:[#allocation12 + $0x38] sm:$0xf]
    %v285 = vld [vmem:[#allocation12 + $0x3c] sm:$0xff]
    %v286 = vld [vmem:[#allocation12 + $0x44] sm:$0xf]
    %v287 = vld [vmem:[#allocation12 + $0x48] sm:$0xff]
    %v288 = vld [vmem:[#allocation12 + $0x50] sm:$0xf]
    %v289 = vld [vmem:[#allocation12 + $0x54] sm:$0xff]
    %v290 = vld [vmem:[#allocation12 + $0x5c] sm:$0xf]
    %v291 = vld [vmem:[#allocation12 + $0x60] sm:$0xff]
    %v292 = vld [vmem:[#allocation12 + $0x68] sm:$0xf]
    %v293 = vld [vmem:[#allocation12 + $0x6c] sm:$0xff]
    %v294 = vld [vmem:[#allocation12 + $0x74] sm:$0xf]
    %v295 = vld [vmem:[#allocation12 + $0x78] sm:$0xff]
    %v296 = vld [vmem:[#allocation12 + $0x80] sm:$0xf]
    %v297 = vld [vmem:[#allocation12 + $0x84] sm:$0xff]
    %v298 = vld [vmem:[#allocation12 + $0x8c] sm:$0xf]
    %v299 = vld [vmem:[#allocation12 + $0x90] sm:$0xff]
    %v300 = vld [vmem:[#allocation12 + $0x98] sm:$0xf]
    %v301 = vld [vmem:[#allocation12 + $0x9c] sm:$0xff]
    %v302 = vld [vmem:[#allocation12 + $0xa4] sm:$0xf]
    %v303 = vld [vmem:[#allocation12 + $0xa8] sm:$0xff]
    %v304 = vld [vmem:[#allocation12 + $0xb0] sm:$0xf]
    %v305 = vld [vmem:[#allocation12 + $0xb4] sm:$0xff]
    %v306 = vld [vmem:[#allocation12 + $0xbc] sm:$0xf]
    %v307 = vld [vmem:[#allocation14] sm:$0x1]
    %v309 = vperm.slane %v307, 0
    %v311 = vld [vmem:[%s1] sm:$0xf]
    %v312 = vlaneseq
    %v313 = vand.u32 %v312, 127
    %vm314 = vcmp.lt.s32.totalorder %v313, 32
    %vm315 = vcmp.gt.s32.totalorder %v311, 7
    %v316 = vsel %vm315, 1, 0
    %v317 = vcvt.s32.f32 %v316
    %319 = vset.pattern.permute.xlu0 0
    %320 = vperm.xlu0 %319, %v317
    %v321 = vpop.permute.xlu0 %320
    %v323 = vsel %vm314, 1.0, %v321
    %vm324 = vcmp.gt.s32.totalorder %v311, 6
    %v325 = vsel %vm324, 1, 0
    %v326 = vcvt.s32.f32 %v325
    %328 = vset.pattern.permute.xlu0 0
    %329 = vperm.xlu0 %328, %v326
    %v330 = vpop.permute.xlu0 %329
    %v332 = vsel %vm314, 1.0, %v330
    %vm333 = vcmp.gt.s32.totalorder %v311, 5
    %v334 = vsel %vm333, 1, 0
    %v335 = vcvt.s32.f32 %v334
    %337 = vset.pattern.permute.xlu0 0
    %338 = vperm.xlu0 %337, %v335
    %v339 = vpop.permute.xlu0 %338
    %v341 = vsel %vm314, 1.0, %v339
    %vm342 = vcmp.gt.s32.totalorder %v311, 4
    %v343 = vsel %vm342, 1, 0
    %v344 = vcvt.s32.f32 %v343
    %346 = vset.pattern.permute.xlu0 0
    %347 = vperm.xlu0 %346, %v344
    %v348 = vpop.permute.xlu0 %347
    %v350 = vsel %vm314, 1.0, %v348
    %vm351 = vcmp.gt.s32.totalorder %v311, 3
    %v352 = vsel %vm351, 1, 0
    %v353 = vcvt.s32.f32 %v352
    %355 = vset.pattern.permute.xlu0 0
    %356 = vperm.xlu0 %355, %v353
    %v357 = vpop.permute.xlu0 %356
    %v359 = vsel %vm314, 1.0, %v357
    %vm360 = vcmp.gt.s32.totalorder %v311, 2
    %v361 = vsel %vm360, 1, 0
    %v362 = vcvt.s32.f32 %v361
    %364 = vset.pattern.permute.xlu0 0
    %365 = vperm.xlu0 %364, %v362
    %v366 = vpop.permute.xlu0 %365
    %v368 = vsel %vm314, 1.0, %v366
    %vm369 = vcmp.gt.s32.totalorder %v311, 1
    %v370 = vsel %vm369, 1, 0
    %v371 = vcvt.s32.f32 %v370
    %373 = vset.pattern.permute.xlu0 0
    %374 = vperm.xlu0 %373, %v371
    %v375 = vpop.permute.xlu0 %374
    %v377 = vsel %vm314, 1.0, %v375
    %vm378 = vcmp.gt.s32.totalorder %v311, 0
    %v379 = vsel %vm378, 1, 0
    %v380 = vcvt.s32.f32 %v379
    %382 = vset.pattern.permute.xlu0 0
    %383 = vperm.xlu0 %382, %v380
    %v384 = vpop.permute.xlu0 %383
    %v386 = vsel %vm314, 1.0, %v384
    %v387 = vsub.f32 0.0, %v206
    %v388 = vmul.f32 %v387, 1.442695
    %v389 = vpow.pop %v388
    %v390 = vadd.f32 %v389, 1.0
    %v391 = vrcp.pop %v390
    %v392 = vmul.f32 %v390, %v391
    %v393 = vsub.f32 1.0, %v392
    %v394 = vmul.f32 %v391, %v393
    %v395 = vadd.f32 %v391, %v394
    %vm396 = vweird.f32 %v390
    %vm397 = vweird.f32 %v391
    %vm398 = vmor %vm396, %vm397
    %v399 = vsel %vm398, %v391, %v395
    %v400 = vand.u32 2147483647, %v390
    %vm401 = vcmp.eq.f32.partialorder %v400, 8.507059e+37
    %v402 = vand.u32 %v390, 2147483648
    %v403 = vor.u32 1.1754944e-38, %v402
    %v404 = vsel %vm401, %v403, %v399
    %v405 = vmul.f32 1.0, %v404
    %v406 = vsub.f32 0.0, %v235
    %v407 = vmul.f32 %v406, 1.442695
    %v408 = vpow.pop %v407
    %v409 = vadd.f32 %v408, 1.0
    %v410 = vrcp.pop %v409
    %v411 = vmul.f32 %v409, %v410
    %v412 = vsub.f32 1.0, %v411
    %v413 = vmul.f32 %v410, %v412
    %v414 = vadd.f32 %v410, %v413
    %vm415 = vweird.f32 %v409
    %vm416 = vweird.f32 %v410
    %vm417 = vmor %vm415, %vm416
    %v418 = vsel %vm417, %v410, %v414
    %v419 = vand.u32 2147483647, %v409
    %vm420 = vcmp.eq.f32.partialorder %v419, 8.507059e+37
    %v421 = vand.u32 %v409, 2147483648
    %v422 = vor.u32 1.1754944e-38, %v421
    %v423 = vsel %vm420, %v422, %v418
    %v424 = vmul.f32 1.0, %v423
    %v425 = vmul.f32 %v405, %v309
    %v426 = vadd.f32 %v264, %v425
    %v427 = vtanh.pop %v426
    %v428 = vsub.f32 1.0, %v424
    %v429 = vmul.f32 %v428, %v427
    %v430 = vmul.f32 %v323, %v429
    %v431 = vpack.c.bf16 %v430, %v430
    %v464 = vunpack.c.l.b16 %v275
    %v465 = vunpack.c.h.b16 %v275
    %v466 = vunpack.c.l.b16 %v276
    %v467 = vunpack.c.l.b16 %v277
    %v468 = vunpack.c.h.b16 %v277
    %v469 = vunpack.c.l.b16 %v278
    %v470 = vunpack.c.l.b16 %v279
    %v471 = vunpack.c.h.b16 %v279
    %v472 = vunpack.c.l.b16 %v280
    %v473 = vunpack.c.l.b16 %v281
    %v474 = vunpack.c.h.b16 %v281
    %v475 = vunpack.c.l.b16 %v282
    %v476 = vunpack.c.l.b16 %v283
    %v477 = vunpack.c.h.b16 %v283
    %v478 = vunpack.c.l.b16 %v284
    %v479 = vunpack.c.l.b16 %v285
    %v480 = vunpack.c.h.b16 %v285
    %v481 = vunpack.c.l.b16 %v286
    %v482 = vunpack.c.l.b16 %v287
    %v483 = vunpack.c.h.b16 %v287
    %v484 = vunpack.c.l.b16 %v288
    %v485 = vunpack.c.l.b16 %v289
    %v486 = vunpack.c.h.b16 %v289
    %v487 = vunpack.c.l.b16 %v290
    %v488 = vunpack.c.l.b16 %v291
    %v489 = vunpack.c.h.b16 %v291
    %v490 = vunpack.c.l.b16 %v292
    %v491 = vunpack.c.l.b16 %v293
    %v492 = vunpack.c.h.b16 %v293
    %v493 = vunpack.c.l.b16 %v294
    %v494 = vunpack.c.l.b16 %v295
    %v495 = vunpack.c.h.b16 %v295
    %v496 = vunpack.c.l.b16 %v296
    %v497 = vunpack.c.l.b16 %v297
    %v498 = vunpack.c.h.b16 %v297
    %v499 = vunpack.c.l.b16 %v298
    %v500 = vunpack.c.l.b16 %v299
    %v501 = vunpack.c.h.b16 %v299
    %v502 = vunpack.c.l.b16 %v300
    %v503 = vunpack.c.l.b16 %v301
    %v504 = vunpack.c.h.b16 %v301
    %v505 = vunpack.c.l.b16 %v302
    %v506 = vunpack.c.l.b16 %v303
    %v507 = vunpack.c.h.b16 %v303
    %v508 = vunpack.c.l.b16 %v304
    %v509 = vunpack.c.l.b16 %v305
    %v510 = vunpack.c.h.b16 %v305
    %v511 = vunpack.c.l.b16 %v306
    %v512 = vpack.c.b16 %v467, %v464
    %v513 = vpack.c.b16 %v468, %v465
    %v514 = vpack.c.b16 %v469, %v466
    %v515 = vpack.c.b16 %v473, %v470
    %v516 = vpack.c.b16 %v474, %v471
    %v517 = vpack.c.b16 %v475, %v472
    %v518 = vpack.c.b16 %v479, %v476
    %v519 = vpack.c.b16 %v480, %v477
    %v520 = vpack.c.b16 %v481, %v478
    %v521 = vpack.c.b16 %v485, %v482
    %v522 = vpack.c.b16 %v486, %v483
    %v523 = vpack.c.b16 %v487, %v484
    %v524 = vpack.c.b16 %v491, %v488
    %v525 = vpack.c.b16 %v492, %v489
    %v526 = vpack.c.b16 %v493, %v490
    %v527 = vpack.c.b16 %v497, %v494
    %v528 = vpack.c.b16 %v498, %v495
    %v529 = vpack.c.b16 %v499, %v496
    %v530 = vpack.c.b16 %v503, %v500
    %v531 = vpack.c.b16 %v504, %v501
    %v532 = vpack.c.b16 %v505, %v502
    %v533 = vpack.c.b16 %v509, %v506
    %v534 = vpack.c.b16 %v510, %v507
    %v535 = vpack.c.b16 %v511, %v508
    %560 = vmatpush.bf16.msra.mxu0 %v533
    %561 = vmatpush.bf16.msra.mxu0 %v530
    %562 = vmatpush.bf16.msra.mxu0 %v527
    %563 = vmatpush.bf16.msra.mxu0 %v524
    %564 = vmatpush.bf16.msra.mxu0 %v521
    %565 = vmatpush.bf16.msra.mxu0 %v518
    %566 = vmatpush.bf16.msra.mxu0 %v515
    %567 = vmatpush.bf16.msra.mxu0 %v512
    %568 = vmatmul.bf16.gmra.mxu0 %v431
    %v569 = vpop.f32.mrf.mxu0
    %v570 = vadd.f32 0.0, %v569
    %v571 = vpop.f32.mrf.mxu0
    %572 = vdwg.mxu0
    %573 = vmatpush.bf16.msra.mxu0 %v534
    %574 = vmatpush.bf16.msra.mxu0 %v531
    %575 = vmatpush.bf16.msra.mxu0 %v528
    %576 = vmatpush.bf16.msra.mxu0 %v525
    %577 = vmatpush.bf16.msra.mxu0 %v522
    %578 = vmatpush.bf16.msra.mxu0 %v519
    %579 = vmatpush.bf16.msra.mxu0 %v516
    %580 = vmatpush.bf16.msra.mxu0 %v513
    %581 = vmatmul.bf16.gmra.mxu0 %v431
    %v582 = vpop.f32.mrf.mxu0
    %v583 = vadd.f32 0.0, %v582
    %v584 = vpop.f32.mrf.mxu0
    %585 = vdwg.mxu0
    %586 = vmatpush.bf16.msra.mxu0 %v535
    %587 = vmatpush.bf16.msra.mxu0 %v532
    %588 = vmatpush.bf16.msra.mxu0 %v529
    %589 = vmatpush.bf16.msra.mxu0 %v526
    %590 = vmatpush.bf16.msra.mxu0 %v523
    %591 = vmatpush.bf16.msra.mxu0 %v520
    %592 = vmatpush.bf16.msra.mxu0 %v517
    %593 = vmatpush.bf16.msra.mxu0 %v514
    %594 = vmatmul.bf16.gmra.mxu0 %v431
    %v595 = vpop.f32.mrf.mxu0
    %v596 = vadd.f32 0.0, %v595
    %v597 = vpop.f32.mrf.mxu0
    %598 = vdwg.mxu0
    %v600 = vrot.slane %v570, 4
    %v602 = vadd.f32 %v206, %v600
    %v603 = vsub.f32 0.0, %v602
    %v604 = vmul.f32 %v603, 1.442695
    %v605 = vpow.pop %v604
    %v606 = vadd.f32 %v605, 1.0
    %v607 = vrcp.pop %v606
    %v608 = vmul.f32 %v606, %v607
    %v609 = vsub.f32 1.0, %v608
    %v610 = vmul.f32 %v607, %v609
    %v611 = vadd.f32 %v607, %v610
    %vm612 = vweird.f32 %v606
    %vm613 = vweird.f32 %v607
    %vm614 = vmor %vm612, %vm613
    %v615 = vsel %vm614, %v607, %v611
    %v616 = vand.u32 2147483647, %v606
    %vm617 = vcmp.eq.f32.partialorder %v616, 8.507059e+37
    %v618 = vand.u32 %v606, 2147483648
    %v619 = vor.u32 1.1754944e-38, %v618
    %v620 = vsel %vm617, %v619, %v615
    %v621 = vmul.f32 1.0, %v620
    %v623 = vrot.slane %v583, 4
    %v625 = vadd.f32 %v235, %v623
    %v626 = vsub.f32 0.0, %v625
    %v627 = vmul.f32 %v626, 1.442695
    %v628 = vpow.pop %v627
    %v629 = vadd.f32 %v628, 1.0
    %v630 = vrcp.pop %v629
    %v631 = vmul.f32 %v629, %v630
    %v632 = vsub.f32 1.0, %v631
    %v633 = vmul.f32 %v630, %v632
    %v634 = vadd.f32 %v630, %v633
    %vm635 = vweird.f32 %v629
    %vm636 = vweird.f32 %v630
    %vm637 = vmor %vm635, %vm636
    %v638 = vsel %vm637, %v630, %v634
    %v639 = vand.u32 2147483647, %v629
    %vm640 = vcmp.eq.f32.partialorder %v639, 8.507059e+37
    %v641 = vand.u32 %v629, 2147483648
    %v642 = vor.u32 1.1754944e-38, %v641
    %v643 = vsel %vm640, %v642, %v638
    %v644 = vmul.f32 1.0, %v643
    %v645 = vadd.f32 %v596, %v309
    %v647 = vrot.slane %v645, 4
    %v649 = vmul.f32 %v621, %v647
    %v650 = vadd.f32 %v264, %v649
    %v651 = vtanh.pop %v650
    %v652 = vsub.f32 1.0, %v644
    %v653 = vmul.f32 %v652, %v651
    %v655 = vrot.slane %v430, 4
    %v657 = vmul.f32 %v644, %v655
    %v658 = vadd.f32 %v653, %v657
    %v659 = vsub.f32 %v658, %v655
    %v661 = vrot.slane %v659, 4
    %v663 = vmul.f32 %v332, %v661
    %v664 = vadd.f32 %v430, %v663
    %v665 = vpack.c.bf16 %v664, %v664
    %666 = vmatpush.bf16.msra.mxu0 %v533
    %667 = vmatpush.bf16.msra.mxu0 %v530
    %668 = vmatpush.bf16.msra.mxu0 %v527
    %669 = vmatpush.bf16.msra.mxu0 %v524
    %670 = vmatpush.bf16.msra.mxu0 %v521
    %671 = vmatpush.bf16.msra.mxu0 %v518
    %672 = vmatpush.bf16.msra.mxu0 %v515
    %673 = vmatpush.bf16.msra.mxu0 %v512
    %674 = vmatmul.bf16.gmra.mxu0 %v665
    %v675 = vpop.f32.mrf.mxu0
    %v676 = vadd.f32 0.0, %v675
    %v677 = vpop.f32.mrf.mxu0
    %678 = vdwg.mxu0
    %679 = vmatpush.bf16.msra.mxu0 %v534
    %680 = vmatpush.bf16.msra.mxu0 %v531
    %681 = vmatpush.bf16.msra.mxu0 %v528
    %682 = vmatpush.bf16.msra.mxu0 %v525
    %683 = vmatpush.bf16.msra.mxu0 %v522
    %684 = vmatpush.bf16.msra.mxu0 %v519
    %685 = vmatpush.bf16.msra.mxu0 %v516
    %686 = vmatpush.bf16.msra.mxu0 %v513
    %687 = vmatmul.bf16.gmra.mxu0 %v665
    %v688 = vpop.f32.mrf.mxu0
    %v689 = vadd.f32 0.0, %v688
    %v690 = vpop.f32.mrf.mxu0
    %691 = vdwg.mxu0
    %692 = vmatpush.bf16.msra.mxu0 %v535
    %693 = vmatpush.bf16.msra.mxu0 %v532
    %694 = vmatpush.bf16.msra.mxu0 %v529
    %695 = vmatpush.bf16.msra.mxu0 %v526
    %696 = vmatpush.bf16.msra.mxu0 %v523
    %697 = vmatpush.bf16.msra.mxu0 %v520
    %698 = vmatpush.bf16.msra.mxu0 %v517
    %699 = vmatpush.bf16.msra.mxu0 %v514
    %700 = vmatmul.bf16.gmra.mxu0 %v665
    %v701 = vpop.f32.mrf.mxu0
    %v702 = vadd.f32 0.0, %v701
    %v703 = vpop.f32.mrf.mxu0
    %704 = vdwg.mxu0
    %v705 = vadd.f32 %v209, %v676
    %v706 = vsub.f32 0.0, %v705
    %v707 = vmul.f32 %v706, 1.442695
    %v708 = vpow.pop %v707
    %v709 = vadd.f32 %v708, 1.0
    %v710 = vrcp.pop %v709
    %v711 = vmul.f32 %v709, %v710
    %v712 = vsub.f32 1.0, %v711
    %v713 = vmul.f32 %v710, %v712
    %v714 = vadd.f32 %v710, %v713
    %vm715 = vweird.f32 %v709
    %vm716 = vweird.f32 %v710
    %vm717 = vmor %vm715, %vm716
    %v718 = vsel %vm717, %v710, %v714
    %v719 = vand.u32 2147483647, %v709
    %vm720 = vcmp.eq.f32.partialorder %v719, 8.507059e+37
    %v721 = vand.u32 %v709, 2147483648
    %v722 = vor.u32 1.1754944e-38, %v721
    %v723 = vsel %vm720, %v722, %v718
    %v724 = vmul.f32 1.0, %v723
    %v725 = vadd.f32 %v238, %v689
    %v726 = vsub.f32 0.0, %v725
    %v727 = vmul.f32 %v726, 1.442695
    %v728 = vpow.pop %v727
    %v729 = vadd.f32 %v728, 1.0
    %v730 = vrcp.pop %v729
    %v731 = vmul.f32 %v729, %v730
    %v732 = vsub.f32 1.0, %v731
    %v733 = vmul.f32 %v730, %v732
    %v734 = vadd.f32 %v730, %v733
    %vm735 = vweird.f32 %v729
    %vm736 = vweird.f32 %v730
    %vm737 = vmor %vm735, %vm736
    %v738 = vsel %vm737, %v730, %v734
    %v739 = vand.u32 2147483647, %v729
    %vm740 = vcmp.eq.f32.partialorder %v739, 8.507059e+37
    %v741 = vand.u32 %v729, 2147483648
    %v742 = vor.u32 1.1754944e-38, %v741
    %v743 = vsel %vm740, %v742, %v738
    %v744 = vmul.f32 1.0, %v743
    %v745 = vadd.f32 %v702, %v309
    %v746 = vmul.f32 %v724, %v745
    %v747 = vadd.f32 %v267, %v746
    %v748 = vtanh.pop %v747
    %v749 = vsub.f32 1.0, %v744
    %v750 = vmul.f32 %v749, %v748
    %v751 = vmul.f32 %v744, %v664
    %v752 = vadd.f32 %v750, %v751
    %v753 = vsub.f32 %v752, %v664
    %v754 = vmul.f32 %v341, %v753
    %v755 = vadd.f32 %v664, %v754
    %v756 = vpack.c.bf16 %v755, %v755
    %757 = vmatpush.bf16.msra.mxu0 %v533
    %758 = vmatpush.bf16.msra.mxu0 %v530
    %759 = vmatpush.bf16.msra.mxu0 %v527
    %760 = vmatpush.bf16.msra.mxu0 %v524
    %761 = vmatpush.bf16.msra.mxu0 %v521
    %762 = vmatpush.bf16.msra.mxu0 %v518
    %763 = vmatpush.bf16.msra.mxu0 %v515
    %764 = vmatpush.bf16.msra.mxu0 %v512
    %765 = vmatmul.bf16.gmra.mxu0 %v756
    %v766 = vpop.f32.mrf.mxu0
    %v767 = vadd.f32 0.0, %v766
    %v768 = vpop.f32.mrf.mxu0
    %769 = vdwg.mxu0
    %770 = vmatpush.bf16.msra.mxu0 %v534
    %771 = vmatpush.bf16.msra.mxu0 %v531
    %772 = vmatpush.bf16.msra.mxu0 %v528
    %773 = vmatpush.bf16.msra.mxu0 %v525
    %774 = vmatpush.bf16.msra.mxu0 %v522
    %775 = vmatpush.bf16.msra.mxu0 %v519
    %776 = vmatpush.bf16.msra.mxu0 %v516
    %777 = vmatpush.bf16.msra.mxu0 %v513
    %778 = vmatmul.bf16.gmra.mxu0 %v756
    %v779 = vpop.f32.mrf.mxu0
    %v780 = vadd.f32 0.0, %v779
    %v781 = vpop.f32.mrf.mxu0
    %782 = vdwg.mxu0
    %783 = vmatpush.bf16.msra.mxu0 %v535
    %784 = vmatpush.bf16.msra.mxu0 %v532
    %785 = vmatpush.bf16.msra.mxu0 %v529
    %786 = vmatpush.bf16.msra.mxu0 %v526
    %787 = vmatpush.bf16.msra.mxu0 %v523
    %788 = vmatpush.bf16.msra.mxu0 %v520
    %789 = vmatpush.bf16.msra.mxu0 %v517
    %790 = vmatpush.bf16.msra.mxu0 %v514
    %791 = vmatmul.bf16.gmra.mxu0 %v756
    %v792 = vpop.f32.mrf.mxu0
    %v793 = vadd.f32 0.0, %v792
    %v794 = vpop.f32.mrf.mxu0
    %795 = vdwg.mxu0
    %v797 = vrot.slane %v767, 4
    %v799 = vadd.f32 %v209, %v797
    %v800 = vsub.f32 0.0, %v799
    %v801 = vmul.f32 %v800, 1.442695
    %v802 = vpow.pop %v801
    %v803 = vadd.f32 %v802, 1.0
    %v804 = vrcp.pop %v803
    %v805 = vmul.f32 %v803, %v804
    %v806 = vsub.f32 1.0, %v805
    %v807 = vmul.f32 %v804, %v806
    %v808 = vadd.f32 %v804, %v807
    %vm809 = vweird.f32 %v803
    %vm810 = vweird.f32 %v804
    %vm811 = vmor %vm809, %vm810
    %v812 = vsel %vm811, %v804, %v808
    %v813 = vand.u32 2147483647, %v803
    %vm814 = vcmp.eq.f32.partialorder %v813, 8.507059e+37
    %v815 = vand.u32 %v803, 2147483648
    %v816 = vor.u32 1.1754944e-38, %v815
    %v817 = vsel %vm814, %v816, %v812
    %v818 = vmul.f32 1.0, %v817
    %v820 = vrot.slane %v780, 4
    %v822 = vadd.f32 %v238, %v820
    %v823 = vsub.f32 0.0, %v822
    %v824 = vmul.f32 %v823, 1.442695
    %v825 = vpow.pop %v824
    %v826 = vadd.f32 %v825, 1.0
    %v827 = vrcp.pop %v826
    %v828 = vmul.f32 %v826, %v827
    %v829 = vsub.f32 1.0, %v828
    %v830 = vmul.f32 %v827, %v829
    %v831 = vadd.f32 %v827, %v830
    %vm832 = vweird.f32 %v826
    %vm833 = vweird.f32 %v827
    %vm834 = vmor %vm832, %vm833
    %v835 = vsel %vm834, %v827, %v831
    %v836 = vand.u32 2147483647, %v826
    %vm837 = vcmp.eq.f32.partialorder %v836, 8.507059e+37
    %v838 = vand.u32 %v826, 2147483648
    %v839 = vor.u32 1.1754944e-38, %v838
    %v840 = vsel %vm837, %v839, %v835
    %v841 = vmul.f32 1.0, %v840
    %v842 = vadd.f32 %v793, %v309
    %v844 = vrot.slane %v842, 4
    %v846 = vmul.f32 %v818, %v844
    %v847 = vadd.f32 %v267, %v846
    %v848 = vtanh.pop %v847
    %v849 = vsub.f32 1.0, %v841
    %v850 = vmul.f32 %v849, %v848
    %v852 = vrot.slane %v755, 4
    %v854 = vmul.f32 %v841, %v852
    %v855 = vadd.f32 %v850, %v854
    %v856 = vsub.f32 %v855, %v852
    %v858 = vrot.slane %v856, 4
    %v860 = vmul.f32 %v350, %v858
    %v861 = vadd.f32 %v755, %v860
    %v862 = vpack.c.bf16 %v861, %v861
    %863 = vmatpush.bf16.msra.mxu0 %v533
    %864 = vmatpush.bf16.msra.mxu0 %v530
    %865 = vmatpush.bf16.msra.mxu0 %v527
    %866 = vmatpush.bf16.msra.mxu0 %v524
    %867 = vmatpush.bf16.msra.mxu0 %v521
    %868 = vmatpush.bf16.msra.mxu0 %v518
    %869 = vmatpush.bf16.msra.mxu0 %v515
    %870 = vmatpush.bf16.msra.mxu0 %v512
    %871 = vmatmul.bf16.gmra.mxu0 %v862
    %v872 = vpop.f32.mrf.mxu0
    %v873 = vadd.f32 0.0, %v872
    %v874 = vpop.f32.mrf.mxu0
    %875 = vdwg.mxu0
    %876 = vmatpush.bf16.msra.mxu0 %v534
    %877 = vmatpush.bf16.msra.mxu0 %v531
    %878 = vmatpush.bf16.msra.mxu0 %v528
    %879 = vmatpush.bf16.msra.mxu0 %v525
    %880 = vmatpush.bf16.msra.mxu0 %v522
    %881 = vmatpush.bf16.msra.mxu0 %v519
    %882 = vmatpush.bf16.msra.mxu0 %v516
    %883 = vmatpush.bf16.msra.mxu0 %v513
    %884 = vmatmul.bf16.gmra.mxu0 %v862
    %v885 = vpop.f32.mrf.mxu0
    %v886 = vadd.f32 0.0, %v885
    %v887 = vpop.f32.mrf.mxu0
    %888 = vdwg.mxu0
    %889 = vmatpush.bf16.msra.mxu0 %v535
    %890 = vmatpush.bf16.msra.mxu0 %v532
    %891 = vmatpush.bf16.msra.mxu0 %v529
    %892 = vmatpush.bf16.msra.mxu0 %v526
    %893 = vmatpush.bf16.msra.mxu0 %v523
    %894 = vmatpush.bf16.msra.mxu0 %v520
    %895 = vmatpush.bf16.msra.mxu0 %v517
    %896 = vmatpush.bf16.msra.mxu0 %v514
    %897 = vmatmul.bf16.gmra.mxu0 %v862
    %v898 = vpop.f32.mrf.mxu0
    %v899 = vadd.f32 0.0, %v898
    %v900 = vpop.f32.mrf.mxu0
    %901 = vdwg.mxu0
    %v902 = vadd.f32 %v212, %v873
    %v903 = vsub.f32 0.0, %v902
    %v904 = vmul.f32 %v903, 1.442695
    %v905 = vpow.pop %v904
    %v906 = vadd.f32 %v905, 1.0
    %v907 = vrcp.pop %v906
    %v908 = vmul.f32 %v906, %v907
    %v909 = vsub.f32 1.0, %v908
    %v910 = vmul.f32 %v907, %v909
    %v911 = vadd.f32 %v907, %v910
    %vm912 = vweird.f32 %v906
    %vm913 = vweird.f32 %v907
    %vm914 = vmor %vm912, %vm913
    %v915 = vsel %vm914, %v907, %v911
    %v916 = vand.u32 2147483647, %v906
    %vm917 = vcmp.eq.f32.partialorder %v916, 8.507059e+37
    %v918 = vand.u32 %v906, 2147483648
    %v919 = vor.u32 1.1754944e-38, %v918
    %v920 = vsel %vm917, %v919, %v915
    %v921 = vmul.f32 1.0, %v920
    %v922 = vadd.f32 %v241, %v886
    %v923 = vsub.f32 0.0, %v922
    %v924 = vmul.f32 %v923, 1.442695
    %v925 = vpow.pop %v924
    %v926 = vadd.f32 %v925, 1.0
    %v927 = vrcp.pop %v926
    %v928 = vmul.f32 %v926, %v927
    %v929 = vsub.f32 1.0, %v928
    %v930 = vmul.f32 %v927, %v929
    %v931 = vadd.f32 %v927, %v930
    %vm932 = vweird.f32 %v926
    %vm933 = vweird.f32 %v927
    %vm934 = vmor %vm932, %vm933
    %v935 = vsel %vm934, %v927, %v931
    %v936 = vand.u32 2147483647, %v926
    %vm937 = vcmp.eq.f32.partialorder %v936, 8.507059e+37
    %v938 = vand.u32 %v926, 2147483648
    %v939 = vor.u32 1.1754944e-38, %v938
    %v940 = vsel %vm937, %v939, %v935
    %v941 = vmul.f32 1.0, %v940
    %v942 = vadd.f32 %v899, %v309
    %v943 = vmul.f32 %v921, %v942
    %v944 = vadd.f32 %v270, %v943
    %v945 = vtanh.pop %v944
    %v946 = vsub.f32 1.0, %v941
    %v947 = vmul.f32 %v946, %v945
    %v948 = vmul.f32 %v941, %v861
    %v949 = vadd.f32 %v947, %v948
    %v950 = vsub.f32 %v949, %v861
    %v951 = vmul.f32 %v359, %v950
    %v952 = vadd.f32 %v861, %v951
    %v953 = vpack.c.bf16 %v952, %v952
    %954 = vmatpush.bf16.msra.mxu0 %v533
    %955 = vmatpush.bf16.msra.mxu0 %v530
    %956 = vmatpush.bf16.msra.mxu0 %v527
    %957 = vmatpush.bf16.msra.mxu0 %v524
    %958 = vmatpush.bf16.msra.mxu0 %v521
    %959 = vmatpush.bf16.msra.mxu0 %v518
    %960 = vmatpush.bf16.msra.mxu0 %v515
    %961 = vmatpush.bf16.msra.mxu0 %v512
    %962 = vmatmul.bf16.gmra.mxu0 %v953
    %v963 = vpop.f32.mrf.mxu0
    %v964 = vadd.f32 0.0, %v963
    %v965 = vpop.f32.mrf.mxu0
    %966 = vdwg.mxu0
    %967 = vmatpush.bf16.msra.mxu0 %v534
    %968 = vmatpush.bf16.msra.mxu0 %v531
    %969 = vmatpush.bf16.msra.mxu0 %v528
    %970 = vmatpush.bf16.msra.mxu0 %v525
    %971 = vmatpush.bf16.msra.mxu0 %v522
    %972 = vmatpush.bf16.msra.mxu0 %v519
    %973 = vmatpush.bf16.msra.mxu0 %v516
    %974 = vmatpush.bf16.msra.mxu0 %v513
    %975 = vmatmul.bf16.gmra.mxu0 %v953
    %v976 = vpop.f32.mrf.mxu0
    %v977 = vadd.f32 0.0, %v976
    %v978 = vpop.f32.mrf.mxu0
    %979 = vdwg.mxu0
    %980 = vmatpush.bf16.msra.mxu0 %v535
    %981 = vmatpush.bf16.msra.mxu0 %v532
    %982 = vmatpush.bf16.msra.mxu0 %v529
    %983 = vmatpush.bf16.msra.mxu0 %v526
    %984 = vmatpush.bf16.msra.mxu0 %v523
    %985 = vmatpush.bf16.msra.mxu0 %v520
    %986 = vmatpush.bf16.msra.mxu0 %v517
    %987 = vmatpush.bf16.msra.mxu0 %v514
    %988 = vmatmul.bf16.gmra.mxu0 %v953
    %v989 = vpop.f32.mrf.mxu0
    %v990 = vadd.f32 0.0, %v989
    %v991 = vpop.f32.mrf.mxu0
    %992 = vdwg.mxu0
    %v994 = vrot.slane %v964, 4
    %v996 = vadd.f32 %v212, %v994
    %v997 = vsub.f32 0.0, %v996
    %v998 = vmul.f32 %v997, 1.442695
    %v999 = vpow.pop %v998
    %v1000 = vadd.f32 %v999, 1.0
    %v1001 = vrcp.pop %v1000
    %v1002 = vmul.f32 %v1000, %v1001
    %v1003 = vsub.f32 1.0, %v1002
    %v1004 = vmul.f32 %v1001, %v1003
    %v1005 = vadd.f32 %v1001, %v1004
    %vm1006 = vweird.f32 %v1000
    %vm1007 = vweird.f32 %v1001
    %vm1008 = vmor %vm1006, %vm1007
    %v1009 = vsel %vm1008, %v1001, %v1005
    %v1010 = vand.u32 2147483647, %v1000
    %vm1011 = vcmp.eq.f32.partialorder %v1010, 8.507059e+37
    %v1012 = vand.u32 %v1000, 2147483648
    %v1013 = vor.u32 1.1754944e-38, %v1012
    %v1014 = vsel %vm1011, %v1013, %v1009
    %v1015 = vmul.f32 1.0, %v1014
    %v1017 = vrot.slane %v977, 4
    %v1019 = vadd.f32 %v241, %v1017
    %v1020 = vsub.f32 0.0, %v1019
    %v1021 = vmul.f32 %v1020, 1.442695
    %v1022 = vpow.pop %v1021
    %v1023 = vadd.f32 %v1022, 1.0
    %v1024 = vrcp.pop %v1023
    %v1025 = vmul.f32 %v1023, %v1024
    %v1026 = vsub.f32 1.0, %v1025
    %v1027 = vmul.f32 %v1024, %v1026
    %v1028 = vadd.f32 %v1024, %v1027
    %vm1029 = vweird.f32 %v1023
    %vm1030 = vweird.f32 %v1024
    %vm1031 = vmor %vm1029, %vm1030
    %v1032 = vsel %vm1031, %v1024, %v1028
    %v1033 = vand.u32 2147483647, %v1023
    %vm1034 = vcmp.eq.f32.partialorder %v1033, 8.507059e+37
    %v1035 = vand.u32 %v1023, 2147483648
    %v1036 = vor.u32 1.1754944e-38, %v1035
    %v1037 = vsel %vm1034, %v1036, %v1032
    %v1038 = vmul.f32 1.0, %v1037
    %v1039 = vadd.f32 %v990, %v309
    %v1041 = vrot.slane %v1039, 4
    %v1043 = vmul.f32 %v1015, %v1041
    %v1044 = vadd.f32 %v270, %v1043
    %v1045 = vtanh.pop %v1044
    %v1046 = vsub.f32 1.0, %v1038
    %v1047 = vmul.f32 %v1046, %v1045
    %v1049 = vrot.slane %v952, 4
    %v1051 = vmul.f32 %v1038, %v1049
    %v1052 = vadd.f32 %v1047, %v1051
    %v1053 = vsub.f32 %v1052, %v1049
    %v1055 = vrot.slane %v1053, 4
    %v1057 = vmul.f32 %v368, %v1055
    %v1058 = vadd.f32 %v952, %v1057
    %v1059 = vpack.c.bf16 %v1058, %v1058
    %1060 = vmatpush.bf16.msra.mxu0 %v533
    %1061 = vmatpush.bf16.msra.mxu0 %v530
    %1062 = vmatpush.bf16.msra.mxu0 %v527
    %1063 = vmatpush.bf16.msra.mxu0 %v524
    %1064 = vmatpush.bf16.msra.mxu0 %v521
    %1065 = vmatpush.bf16.msra.mxu0 %v518
    %1066 = vmatpush.bf16.msra.mxu0 %v515
    %1067 = vmatpush.bf16.msra.mxu0 %v512
    %1068 = vmatmul.bf16.gmra.mxu0 %v1059
    %v1069 = vpop.f32.mrf.mxu0
    %v1070 = vadd.f32 0.0, %v1069
    %v1071 = vpop.f32.mrf.mxu0
    %1072 = vdwg.mxu0
    %1073 = vmatpush.bf16.msra.mxu0 %v534
    %1074 = vmatpush.bf16.msra.mxu0 %v531
    %1075 = vmatpush.bf16.msra.mxu0 %v528
    %1076 = vmatpush.bf16.msra.mxu0 %v525
    %1077 = vmatpush.bf16.msra.mxu0 %v522
    %1078 = vmatpush.bf16.msra.mxu0 %v519
    %1079 = vmatpush.bf16.msra.mxu0 %v516
    %1080 = vmatpush.bf16.msra.mxu0 %v513
    %1081 = vmatmul.bf16.gmra.mxu0 %v1059
    %v1082 = vpop.f32.mrf.mxu0
    %v1083 = vadd.f32 0.0, %v1082
    %v1084 = vpop.f32.mrf.mxu0
    %1085 = vdwg.mxu0
    %1086 = vmatpush.bf16.msra.mxu0 %v535
    %1087 = vmatpush.bf16.msra.mxu0 %v532
    %1088 = vmatpush.bf16.msra.mxu0 %v529
    %1089 = vmatpush.bf16.msra.mxu0 %v526
    %1090 = vmatpush.bf16.msra.mxu0 %v523
    %1091 = vmatpush.bf16.msra.mxu0 %v520
    %1092 = vmatpush.bf16.msra.mxu0 %v517
    %1093 = vmatpush.bf16.msra.mxu0 %v514
    %1094 = vmatmul.bf16.gmra.mxu0 %v1059
    %v1095 = vpop.f32.mrf.mxu0
    %v1096 = vadd.f32 0.0, %v1095
    %v1097 = vpop.f32.mrf.mxu0
    %1098 = vdwg.mxu0
    %v1099 = vadd.f32 %v215, %v1070
    %v1100 = vsub.f32 0.0, %v1099
    %v1101 = vmul.f32 %v1100, 1.442695
    %v1102 = vpow.pop %v1101
    %v1103 = vadd.f32 %v1102, 1.0
    %v1104 = vrcp.pop %v1103
    %v1105 = vmul.f32 %v1103, %v1104
    %v1106 = vsub.f32 1.0, %v1105
    %v1107 = vmul.f32 %v1104, %v1106
    %v1108 = vadd.f32 %v1104, %v1107
    %vm1109 = vweird.f32 %v1103
    %vm1110 = vweird.f32 %v1104
    %vm1111 = vmor %vm1109, %vm1110
    %v1112 = vsel %vm1111, %v1104, %v1108
    %v1113 = vand.u32 2147483647, %v1103
    %vm1114 = vcmp.eq.f32.partialorder %v1113, 8.507059e+37
    %v1115 = vand.u32 %v1103, 2147483648
    %v1116 = vor.u32 1.1754944e-38, %v1115
    %v1117 = vsel %vm1114, %v1116, %v1112
    %v1118 = vmul.f32 1.0, %v1117
    %v1119 = vadd.f32 %v244, %v1083
    %v1120 = vsub.f32 0.0, %v1119
    %v1121 = vmul.f32 %v1120, 1.442695
    %v1122 = vpow.pop %v1121
    %v1123 = vadd.f32 %v1122, 1.0
    %v1124 = vrcp.pop %v1123
    %v1125 = vmul.f32 %v1123, %v1124
    %v1126 = vsub.f32 1.0, %v1125
    %v1127 = vmul.f32 %v1124, %v1126
    %v1128 = vadd.f32 %v1124, %v1127
    %vm1129 = vweird.f32 %v1123
    %vm1130 = vweird.f32 %v1124
    %vm1131 = vmor %vm1129, %vm1130
    %v1132 = vsel %vm1131, %v1124, %v1128
    %v1133 = vand.u32 2147483647, %v1123
    %vm1134 = vcmp.eq.f32.partialorder %v1133, 8.507059e+37
    %v1135 = vand.u32 %v1123, 2147483648
    %v1136 = vor.u32 1.1754944e-38, %v1135
    %v1137 = vsel %vm1134, %v1136, %v1132
    %v1138 = vmul.f32 1.0, %v1137
    %v1139 = vadd.f32 %v1096, %v309
    %v1140 = vmul.f32 %v1118, %v1139
    %v1141 = vadd.f32 %v273, %v1140
    %v1142 = vtanh.pop %v1141
    %v1143 = vsub.f32 1.0, %v1138
    %v1144 = vmul.f32 %v1143, %v1142
    %v1145 = vmul.f32 %v1138, %v1058
    %v1146 = vadd.f32 %v1144, %v1145
    %v1147 = vsub.f32 %v1146, %v1058
    %v1148 = vmul.f32 %v377, %v1147
    %v1149 = vadd.f32 %v1058, %v1148
    %v1150 = vpack.c.bf16 %v1149, %v1149
    %1151 = vmatpush.bf16.msra.mxu0 %v533
    %1152 = vmatpush.bf16.msra.mxu0 %v530
    %1153 = vmatpush.bf16.msra.mxu0 %v527
    %1154 = vmatpush.bf16.msra.mxu0 %v524
    %1155 = vmatpush.bf16.msra.mxu0 %v521
    %1156 = vmatpush.bf16.msra.mxu0 %v518
    %1157 = vmatpush.bf16.msra.mxu0 %v515
    %1158 = vmatpush.bf16.msra.mxu0 %v512
    %1159 = vmatmul.bf16.gmra.mxu0 %v1150
    %v1160 = vpop.f32.mrf.mxu0
    %v1161 = vadd.f32 0.0, %v1160
    %v1162 = vpop.f32.mrf.mxu0
    %1163 = vdwg.mxu0
    %1164 = vmatpush.bf16.msra.mxu0 %v534
    %1165 = vmatpush.bf16.msra.mxu0 %v531
    %1166 = vmatpush.bf16.msra.mxu0 %v528
    %1167 = vmatpush.bf16.msra.mxu0 %v525
    %1168 = vmatpush.bf16.msra.mxu0 %v522
    %1169 = vmatpush.bf16.msra.mxu0 %v519
    %1170 = vmatpush.bf16.msra.mxu0 %v516
    %1171 = vmatpush.bf16.msra.mxu0 %v513
    %1172 = vmatmul.bf16.gmra.mxu0 %v1150
    %v1173 = vpop.f32.mrf.mxu0
    %v1174 = vadd.f32 0.0, %v1173
    %v1175 = vpop.f32.mrf.mxu0
    %1176 = vdwg.mxu0
    %1177 = vmatpush.bf16.msra.mxu0 %v535
    %1178 = vmatpush.bf16.msra.mxu0 %v532
    %1179 = vmatpush.bf16.msra.mxu0 %v529
    %1180 = vmatpush.bf16.msra.mxu0 %v526
    %1181 = vmatpush.bf16.msra.mxu0 %v523
    %1182 = vmatpush.bf16.msra.mxu0 %v520
    %1183 = vmatpush.bf16.msra.mxu0 %v517
    %1184 = vmatpush.bf16.msra.mxu0 %v514
    %1185 = vmatmul.bf16.gmra.mxu0 %v1150
    %v1186 = vpop.f32.mrf.mxu0
    %v1187 = vadd.f32 0.0, %v1186
    %v1188 = vpop.f32.mrf.mxu0
    %1189 = vdwg.mxu0
    %v1191 = vrot.slane %v1161, 4
    %v1193 = vadd.f32 %v215, %v1191
    %v1194 = vsub.f32 0.0, %v1193
    %v1195 = vmul.f32 %v1194, 1.442695
    %v1196 = vpow.pop %v1195
    %v1197 = vadd.f32 %v1196, 1.0
    %v1198 = vrcp.pop %v1197
    %v1199 = vmul.f32 %v1197, %v1198
    %v1200 = vsub.f32 1.0, %v1199
    %v1201 = vmul.f32 %v1198, %v1200
    %v1202 = vadd.f32 %v1198, %v1201
    %vm1203 = vweird.f32 %v1197
    %vm1204 = vweird.f32 %v1198
    %vm1205 = vmor %vm1203, %vm1204
    %v1206 = vsel %vm1205, %v1198, %v1202
    %v1207 = vand.u32 2147483647, %v1197
    %vm1208 = vcmp.eq.f32.partialorder %v1207, 8.507059e+37
    %v1209 = vand.u32 %v1197, 2147483648
    %v1210 = vor.u32 1.1754944e-38, %v1209
    %v1211 = vsel %vm1208, %v1210, %v1206
    %v1212 = vmul.f32 1.0, %v1211
    %v1214 = vrot.slane %v1174, 4
    %v1216 = vadd.f32 %v244, %v1214
    %v1217 = vsub.f32 0.0, %v1216
    %v1218 = vmul.f32 %v1217, 1.442695
    %v1219 = vpow.pop %v1218
    %v1220 = vadd.f32 %v1219, 1.0
    %v1221 = vrcp.pop %v1220
    %v1222 = vmul.f32 %v1220, %v1221
    %v1223 = vsub.f32 1.0, %v1222
    %v1224 = vmul.f32 %v1221, %v1223
    %v1225 = vadd.f32 %v1221, %v1224
    %vm1226 = vweird.f32 %v1220
    %vm1227 = vweird.f32 %v1221
    %vm1228 = vmor %vm1226, %vm1227
    %v1229 = vsel %vm1228, %v1221, %v1225
    %v1230 = vand.u32 2147483647, %v1220
    %vm1231 = vcmp.eq.f32.partialorder %v1230, 8.507059e+37
    %v1232 = vand.u32 %v1220, 2147483648
    %v1233 = vor.u32 1.1754944e-38, %v1232
    %v1234 = vsel %vm1231, %v1233, %v1229
    %v1235 = vmul.f32 1.0, %v1234
    %v1236 = vadd.f32 %v1187, %v309
    %v1238 = vrot.slane %v1236, 4
    %v1240 = vmul.f32 %v1212, %v1238
    %v1241 = vadd.f32 %v273, %v1240
    %v1242 = vtanh.pop %v1241
    %v1243 = vsub.f32 1.0, %v1235
    %v1244 = vmul.f32 %v1243, %v1242
    %v1246 = vrot.slane %v1149, 4
    %v1248 = vmul.f32 %v1235, %v1246
    %v1249 = vadd.f32 %v1244, %v1248
    %v1250 = vsub.f32 %v1249, %v1246
    %v1252 = vrot.slane %v1250, 4
    %v1254 = vmul.f32 %v386, %v1252
    %v1255 = vadd.f32 %v1149, %v1254
    %vm1256 = vcmp.ge.s32.totalorder %v311, 8
    %v1257 = vsel %vm1256, 1, 0
    %v1258 = vcvt.s32.f32 %v1257
    %1260 = vset.pattern.permute.xlu0 0
    %1261 = vperm.xlu0 %1260, %v1258
    %v1262 = vpop.permute.xlu0 %1261
    %v1264 = vsel %vm314, %v1262, 1.0
    %v1265 = vmul.f32 %v1255, %v1264
    %s1266 = smul.u32 4, 16
    %s1267 = smul.u32 %s1266, 8
    %s1268 = sshll.u32 %s1267, 4
    %1269 = dma.done [#allocation5], %s1268
    %v1270 = vpack.c.bf16 %v1265, %v1265
    %v1271 = vld [vmem:[#allocation2] sm:$0xff]
    %v1272 = vld [vmem:[#allocation2 + $0x8] sm:$0xff]
    %v1273 = vld [vmem:[#allocation2 + $0x10] sm:$0xff]
    %v1274 = vld [vmem:[#allocation2 + $0x18] sm:$0xff]
    %v1275 = vld [vmem:[#allocation2 + $0x20] sm:$0xff]
    %v1276 = vld [vmem:[#allocation2 + $0x28] sm:$0xff]
    %v1277 = vld [vmem:[#allocation2 + $0x30] sm:$0xff]
    %v1278 = vld [vmem:[#allocation2 + $0x38] sm:$0xff]
    %v1279 = vld [vmem:[#allocation2 + $0x40] sm:$0xff]
    %v1280 = vld [vmem:[#allocation2 + $0x48] sm:$0xff]
    %v1281 = vld [vmem:[#allocation2 + $0x50] sm:$0xff]
    %v1282 = vld [vmem:[#allocation2 + $0x58] sm:$0xff]
    %v1283 = vld [vmem:[#allocation2 + $0x60] sm:$0xff]
    %v1284 = vld [vmem:[#allocation2 + $0x68] sm:$0xff]
    %v1285 = vld [vmem:[#allocation2 + $0x70] sm:$0xff]
    %v1286 = vld [vmem:[#allocation2 + $0x78] sm:$0xff]
    %v1287 = vld [vmem:[#allocation2 + $0x80] sm:$0xff]
    %v1288 = vld [vmem:[#allocation2 + $0x88] sm:$0xff]
    %v1289 = vld [vmem:[#allocation2 + $0x90] sm:$0xff]
    %v1290 = vld [vmem:[#allocation2 + $0x98] sm:$0xff]
    %v1291 = vld [vmem:[#allocation2 + $0xa0] sm:$0xff]
    %v1292 = vld [vmem:[#allocation2 + $0xa8] sm:$0xff]
    %v1293 = vld [vmem:[#allocation2 + $0xb0] sm:$0xff]
    %v1294 = vld [vmem:[#allocation2 + $0xb8] sm:$0xff]
    %v1295 = vld [vmem:[#allocation2 + $0xc0] sm:$0xff]
    %v1296 = vld [vmem:[#allocation2 + $0xc8] sm:$0xff]
    %v1297 = vld [vmem:[#allocation2 + $0xd0] sm:$0xff]
    %v1298 = vld [vmem:[#allocation2 + $0xd8] sm:$0xff]
    %v1299 = vld [vmem:[#allocation2 + $0xe0] sm:$0xff]
    %v1300 = vld [vmem:[#allocation2 + $0xe8] sm:$0xff]
    %v1301 = vld [vmem:[#allocation2 + $0xf0] sm:$0xff]
    %v1302 = vld [vmem:[#allocation2 + $0xf8] sm:$0xff]
    %v1303 = vld [vmem:[#allocation2 + $0x100] sm:$0xff]
    %v1304 = vld [vmem:[#allocation2 + $0x108] sm:$0xff]
    %v1305 = vld [vmem:[#allocation2 + $0x110] sm:$0xff]
    %v1306 = vld [vmem:[#allocation2 + $0x118] sm:$0xff]
    %v1307 = vld [vmem:[#allocation2 + $0x120] sm:$0xff]
    %v1308 = vld [vmem:[#allocation2 + $0x128] sm:$0xff]
    %v1309 = vld [vmem:[#allocation2 + $0x130] sm:$0xff]
    %v1310 = vld [vmem:[#allocation2 + $0x138] sm:$0xff]
    %v1311 = vld [vmem:[#allocation2 + $0x140] sm:$0xff]
    %v1312 = vld [vmem:[#allocation2 + $0x148] sm:$0xff]
    %v1313 = vld [vmem:[#allocation2 + $0x150] sm:$0xff]
    %v1314 = vld [vmem:[#allocation2 + $0x158] sm:$0xff]
    %v1315 = vld [vmem:[#allocation2 + $0x160] sm:$0xff]
    %v1316 = vld [vmem:[#allocation2 + $0x168] sm:$0xff]
    %v1317 = vld [vmem:[#allocation2 + $0x170] sm:$0xff]
    %v1318 = vld [vmem:[#allocation2 + $0x178] sm:$0xff]
    %v1319 = vld [vmem:[#allocation2 + $0x180] sm:$0xff]
    %v1320 = vld [vmem:[#allocation2 + $0x188] sm:$0xff]
    %v1321 = vld [vmem:[#allocation2 + $0x190] sm:$0xff]
    %v1322 = vld [vmem:[#allocation2 + $0x198] sm:$0xff]
    %v1323 = vld [vmem:[#allocation2 + $0x1a0] sm:$0xff]
    %v1324 = vld [vmem:[#allocation2 + $0x1a8] sm:$0xff]
    %v1325 = vld [vmem:[#allocation2 + $0x1b0] sm:$0xff]
    %v1326 = vld [vmem:[#allocation2 + $0x1b8] sm:$0xff]
    %v1327 = vld [vmem:[#allocation2 + $0x1c0] sm:$0xff]
    %v1328 = vld [vmem:[#allocation2 + $0x1c8] sm:$0xff]
    %v1329 = vld [vmem:[#allocation2 + $0x1d0] sm:$0xff]
    %v1330 = vld [vmem:[#allocation2 + $0x1d8] sm:$0xff]
    %v1331 = vld [vmem:[#allocation2 + $0x1e0] sm:$0xff]
    %v1332 = vld [vmem:[#allocation2 + $0x1e8] sm:$0xff]
    %v1333 = vld [vmem:[#allocation2 + $0x1f0] sm:$0xff]
    %v1334 = vld [vmem:[#allocation2 + $0x1f8] sm:$0xff]
    %v1335 = vld [vmem:[%s7] sm:$0xff]
    %v1337 = vperm.slane %v1335, 0
    %v1338 = vperm.slane %v1335, 1
    %v1339 = vperm.slane %v1335, 2
    %v1340 = vperm.slane %v1335, 3
    %v1341 = vperm.slane %v1335, 4
    %v1342 = vperm.slane %v1335, 5
    %v1343 = vperm.slane %v1335, 6
    %v1344 = vperm.slane %v1335, 7
    %v1417 = vunpack.c.l.b16 %v1271
    %v1418 = vunpack.c.h.b16 %v1271
    %v1419 = vunpack.c.l.b16 %v1272
    %v1420 = vunpack.c.h.b16 %v1272
    %v1421 = vunpack.c.l.b16 %v1273
    %v1422 = vunpack.c.h.b16 %v1273
    %v1423 = vunpack.c.l.b16 %v1274
    %v1424 = vunpack.c.h.b16 %v1274
    %v1425 = vunpack.c.l.b16 %v1275
    %v1426 = vunpack.c.h.b16 %v1275
    %v1427 = vunpack.c.l.b16 %v1276
    %v1428 = vunpack.c.h.b16 %v1276
    %v1429 = vunpack.c.l.b16 %v1277
    %v1430 = vunpack.c.h.b16 %v1277
    %v1431 = vunpack.c.l.b16 %v1278
    %v1432 = vunpack.c.h.b16 %v1278
    %v1433 = vunpack.c.l.b16 %v1279
    %v1434 = vunpack.c.h.b16 %v1279
    %v1435 = vunpack.c.l.b16 %v1280
    %v1436 = vunpack.c.h.b16 %v1280
    %v1437 = vunpack.c.l.b16 %v1281
    %v1438 = vunpack.c.h.b16 %v1281
    %v1439 = vunpack.c.l.b16 %v1282
    %v1440 = vunpack.c.h.b16 %v1282
    %v1441 = vunpack.c.l.b16 %v1283
    %v1442 = vunpack.c.h.b16 %v1283
    %v1443 = vunpack.c.l.b16 %v1284
    %v1444 = vunpack.c.h.b16 %v1284
    %v1445 = vunpack.c.l.b16 %v1285
    %v1446 = vunpack.c.h.b16 %v1285
    %v1447 = vunpack.c.l.b16 %v1286
    %v1448 = vunpack.c.h.b16 %v1286
    %v1449 = vunpack.c.l.b16 %v1287
    %v1450 = vunpack.c.h.b16 %v1287
    %v1451 = vunpack.c.l.b16 %v1288
    %v1452 = vunpack.c.h.b16 %v1288
    %v1453 = vunpack.c.l.b16 %v1289
    %v1454 = vunpack.c.h.b16 %v1289
    %v1455 = vunpack.c.l.b16 %v1290
    %v1456 = vunpack.c.h.b16 %v1290
    %v1457 = vunpack.c.l.b16 %v1291
    %v1458 = vunpack.c.h.b16 %v1291
    %v1459 = vunpack.c.l.b16 %v1292
    %v1460 = vunpack.c.h.b16 %v1292
    %v1461 = vunpack.c.l.b16 %v1293
    %v1462 = vunpack.c.h.b16 %v1293
    %v1463 = vunpack.c.l.b16 %v1294
    %v1464 = vunpack.c.h.b16 %v1294
    %v1465 = vunpack.c.l.b16 %v1295
    %v1466 = vunpack.c.h.b16 %v1295
    %v1467 = vunpack.c.l.b16 %v1296
    %v1468 = vunpack.c.h.b16 %v1296
    %v1469 = vunpack.c.l.b16 %v1297
    %v1470 = vunpack.c.h.b16 %v1297
    %v1471 = vunpack.c.l.b16 %v1298
    %v1472 = vunpack.c.h.b16 %v1298
    %v1473 = vunpack.c.l.b16 %v1299
    %v1474 = vunpack.c.h.b16 %v1299
    %v1475 = vunpack.c.l.b16 %v1300
    %v1476 = vunpack.c.h.b16 %v1300
    %v1477 = vunpack.c.l.b16 %v1301
    %v1478 = vunpack.c.h.b16 %v1301
    %v1479 = vunpack.c.l.b16 %v1302
    %v1480 = vunpack.c.h.b16 %v1302
    %v1481 = vunpack.c.l.b16 %v1303
    %v1482 = vunpack.c.h.b16 %v1303
    %v1483 = vunpack.c.l.b16 %v1304
    %v1484 = vunpack.c.h.b16 %v1304
    %v1485 = vunpack.c.l.b16 %v1305
    %v1486 = vunpack.c.h.b16 %v1305
    %v1487 = vunpack.c.l.b16 %v1306
    %v1488 = vunpack.c.h.b16 %v1306
    %v1489 = vunpack.c.l.b16 %v1307
    %v1490 = vunpack.c.h.b16 %v1307
    %v1491 = vunpack.c.l.b16 %v1308
    %v1492 = vunpack.c.h.b16 %v1308
    %v1493 = vunpack.c.l.b16 %v1309
    %v1494 = vunpack.c.h.b16 %v1309
    %v1495 = vunpack.c.l.b16 %v1310
    %v1496 = vunpack.c.h.b16 %v1310
    %v1497 = vunpack.c.l.b16 %v1311
    %v1498 = vunpack.c.h.b16 %v1311
    %v1499 = vunpack.c.l.b16 %v1312
    %v1500 = vunpack.c.h.b16 %v1312
    %v1501 = vunpack.c.l.b16 %v1313
    %v1502 = vunpack.c.h.b16 %v1313
    %v1503 = vunpack.c.l.b16 %v1314
    %v1504 = vunpack.c.h.b16 %v1314
    %v1505 = vunpack.c.l.b16 %v1315
    %v1506 = vunpack.c.h.b16 %v1315
    %v1507 = vunpack.c.l.b16 %v1316
    %v1508 = vunpack.c.h.b16 %v1316
    %v1509 = vunpack.c.l.b16 %v1317
    %v1510 = vunpack.c.h.b16 %v1317
    %v1511 = vunpack.c.l.b16 %v1318
    %v1512 = vunpack.c.h.b16 %v1318
    %v1513 = vunpack.c.l.b16 %v1319
    %v1514 = vunpack.c.h.b16 %v1319
    %v1515 = vunpack.c.l.b16 %v1320
    %v1516 = vunpack.c.h.b16 %v1320
    %v1517 = vunpack.c.l.b16 %v1321
    %v1518 = vunpack.c.h.b16 %v1321
    %v1519 = vunpack.c.l.b16 %v1322
    %v1520 = vunpack.c.h.b16 %v1322
    %v1521 = vunpack.c.l.b16 %v1323
    %v1522 = vunpack.c.h.b16 %v1323
    %v1523 = vunpack.c.l.b16 %v1324
    %v1524 = vunpack.c.h.b16 %v1324
    %v1525 = vunpack.c.l.b16 %v1325
    %v1526 = vunpack.c.h.b16 %v1325
    %v1527 = vunpack.c.l.b16 %v1326
    %v1528 = vunpack.c.h.b16 %v1326
    %v1529 = vunpack.c.l.b16 %v1327
    %v1530 = vunpack.c.h.b16 %v1327
    %v1531 = vunpack.c.l.b16 %v1328
    %v1532 = vunpack.c.h.b16 %v1328
    %v1533 = vunpack.c.l.b16 %v1329
    %v1534 = vunpack.c.h.b16 %v1329
    %v1535 = vunpack.c.l.b16 %v1330
    %v1536 = vunpack.c.h.b16 %v1330
    %v1537 = vunpack.c.l.b16 %v1331
    %v1538 = vunpack.c.h.b16 %v1331
    %v1539 = vunpack.c.l.b16 %v1332
    %v1540 = vunpack.c.h.b16 %v1332
    %v1541 = vunpack.c.l.b16 %v1333
    %v1542 = vunpack.c.h.b16 %v1333
    %v1543 = vunpack.c.l.b16 %v1334
    %v1544 = vunpack.c.h.b16 %v1334
    %v1545 = vpack.c.b16 %v1425, %v1417
    %v1546 = vpack.c.b16 %v1426, %v1418
    %v1547 = vpack.c.b16 %v1427, %v1419
    %v1548 = vpack.c.b16 %v1428, %v1420
    %v1549 = vpack.c.b16 %v1429, %v1421
    %v1550 = vpack.c.b16 %v1430, %v1422
    %v1551 = vpack.c.b16 %v1431, %v1423
    %v1552 = vpack.c.b16 %v1432, %v1424
    %v1553 = vpack.c.b16 %v1441, %v1433
    %v1554 = vpack.c.b16 %v1442, %v1434
    %v1555 = vpack.c.b16 %v1443, %v1435
    %v1556 = vpack.c.b16 %v1444, %v1436
    %v1557 = vpack.c.b16 %v1445, %v1437
    %v1558 = vpack.c.b16 %v1446, %v1438
    %v1559 = vpack.c.b16 %v1447, %v1439
    %v1560 = vpack.c.b16 %v1448, %v1440
    %v1561 = vpack.c.b16 %v1457, %v1449
    %v1562 = vpack.c.b16 %v1458, %v1450
    %v1563 = vpack.c.b16 %v1459, %v1451
    %v1564 = vpack.c.b16 %v1460, %v1452
    %v1565 = vpack.c.b16 %v1461, %v1453
    %v1566 = vpack.c.b16 %v1462, %v1454
    %v1567 = vpack.c.b16 %v1463, %v1455
    %v1568 = vpack.c.b16 %v1464, %v1456
    %v1569 = vpack.c.b16 %v1473, %v1465
    %v1570 = vpack.c.b16 %v1474, %v1466
    %v1571 = vpack.c.b16 %v1475, %v1467
    %v1572 = vpack.c.b16 %v1476, %v1468
    %v1573 = vpack.c.b16 %v1477, %v1469
    %v1574 = vpack.c.b16 %v1478, %v1470
    %v1575 = vpack.c.b16 %v1479, %v1471
    %v1576 = vpack.c.b16 %v1480, %v1472
    %v1577 = vpack.c.b16 %v1489, %v1481
    %v1578 = vpack.c.b16 %v1490, %v1482
    %v1579 = vpack.c.b16 %v1491, %v1483
    %v1580 = vpack.c.b16 %v1492, %v1484
    %v1581 = vpack.c.b16 %v1493, %v1485
    %v1582 = vpack.c.b16 %v1494, %v1486
    %v1583 = vpack.c.b16 %v1495, %v1487
    %v1584 = vpack.c.b16 %v1496, %v1488
    %v1585 = vpack.c.b16 %v1505, %v1497
    %v1586 = vpack.c.b16 %v1506, %v1498
    %v1587 = vpack.c.b16 %v1507, %v1499
    %v1588 = vpack.c.b16 %v1508, %v1500
    %v1589 = vpack.c.b16 %v1509, %v1501
    %v1590 = vpack.c.b16 %v1510, %v1502
    %v1591 = vpack.c.b16 %v1511, %v1503
    %v1592 = vpack.c.b16 %v1512, %v1504
    %v1593 = vpack.c.b16 %v1521, %v1513
    %v1594 = vpack.c.b16 %v1522, %v1514
    %v1595 = vpack.c.b16 %v1523, %v1515
    %v1596 = vpack.c.b16 %v1524, %v1516
    %v1597 = vpack.c.b16 %v1525, %v1517
    %v1598 = vpack.c.b16 %v1526, %v1518
    %v1599 = vpack.c.b16 %v1527, %v1519
    %v1600 = vpack.c.b16 %v1528, %v1520
    %v1601 = vpack.c.b16 %v1537, %v1529
    %v1602 = vpack.c.b16 %v1538, %v1530
    %v1603 = vpack.c.b16 %v1539, %v1531
    %v1604 = vpack.c.b16 %v1540, %v1532
    %v1605 = vpack.c.b16 %v1541, %v1533
    %v1606 = vpack.c.b16 %v1542, %v1534
    %v1607 = vpack.c.b16 %v1543, %v1535
    %v1608 = vpack.c.b16 %v1544, %v1536
    %1673 = vmatpush.bf16.msra.mxu0 %v1601
    %1674 = vmatpush.bf16.msra.mxu0 %v1593
    %1675 = vmatpush.bf16.msra.mxu0 %v1585
    %1676 = vmatpush.bf16.msra.mxu0 %v1577
    %1677 = vmatpush.bf16.msra.mxu0 %v1569
    %1678 = vmatpush.bf16.msra.mxu0 %v1561
    %1679 = vmatpush.bf16.msra.mxu0 %v1553
    %1680 = vmatpush.bf16.msra.mxu0 %v1545
    %1681 = vmatmul.bf16.gmra.mxu0 %v1270
    %v1682 = vpop.f32.mrf.mxu0
    %v1683 = vadd.f32 %v1337, %v1682
    %v1684 = vpop.f32.mrf.mxu0
    %1685 = vdwg.mxu0
    %1686 = vmatpush.bf16.msra.mxu0 %v1602
    %1687 = vmatpush.bf16.msra.mxu0 %v1594
    %1688 = vmatpush.bf16.msra.mxu0 %v1586
    %1689 = vmatpush.bf16.msra.mxu0 %v1578
    %1690 = vmatpush.bf16.msra.mxu0 %v1570
    %1691 = vmatpush.bf16.msra.mxu0 %v1562
    %1692 = vmatpush.bf16.msra.mxu0 %v1554
    %1693 = vmatpush.bf16.msra.mxu0 %v1546
    %1694 = vmatmul.bf16.gmra.mxu0 %v1270
    %v1695 = vpop.f32.mrf.mxu0
    %v1696 = vadd.f32 %v1338, %v1695
    %v1697 = vpop.f32.mrf.mxu0
    %1698 = vdwg.mxu0
    %1699 = vmatpush.bf16.msra.mxu0 %v1603
    %1700 = vmatpush.bf16.msra.mxu0 %v1595
    %1701 = vmatpush.bf16.msra.mxu0 %v1587
    %1702 = vmatpush.bf16.msra.mxu0 %v1579
    %1703 = vmatpush.bf16.msra.mxu0 %v1571
    %1704 = vmatpush.bf16.msra.mxu0 %v1563
    %1705 = vmatpush.bf16.msra.mxu0 %v1555
    %1706 = vmatpush.bf16.msra.mxu0 %v1547
    %1707 = vmatmul.bf16.gmra.mxu0 %v1270
    %v1708 = vpop.f32.mrf.mxu0
    %v1709 = vadd.f32 %v1339, %v1708
    %v1710 = vpop.f32.mrf.mxu0
    %1711 = vdwg.mxu0
    %1712 = vmatpush.bf16.msra.mxu0 %v1604
    %1713 = vmatpush.bf16.msra.mxu0 %v1596
    %1714 = vmatpush.bf16.msra.mxu0 %v1588
    %1715 = vmatpush.bf16.msra.mxu0 %v1580
    %1716 = vmatpush.bf16.msra.mxu0 %v1572
    %1717 = vmatpush.bf16.msra.mxu0 %v1564
    %1718 = vmatpush.bf16.msra.mxu0 %v1556
    %1719 = vmatpush.bf16.msra.mxu0 %v1548
    %1720 = vmatmul.bf16.gmra.mxu0 %v1270
    %v1721 = vpop.f32.mrf.mxu0
    %v1722 = vadd.f32 %v1340, %v1721
    %v1723 = vpop.f32.mrf.mxu0
    %1724 = vdwg.mxu0
    %1725 = vmatpush.bf16.msra.mxu0 %v1605
    %1726 = vmatpush.bf16.msra.mxu0 %v1597
    %1727 = vmatpush.bf16.msra.mxu0 %v1589
    %1728 = vmatpush.bf16.msra.mxu0 %v1581
    %1729 = vmatpush.bf16.msra.mxu0 %v1573
    %1730 = vmatpush.bf16.msra.mxu0 %v1565
    %1731 = vmatpush.bf16.msra.mxu0 %v1557
    %1732 = vmatpush.bf16.msra.mxu0 %v1549
    %1733 = vmatmul.bf16.gmra.mxu0 %v1270
    %v1734 = vpop.f32.mrf.mxu0
    %v1735 = vadd.f32 %v1341, %v1734
    %v1736 = vpop.f32.mrf.mxu0
    %1737 = vdwg.mxu0
    %1738 = vmatpush.bf16.msra.mxu0 %v1606
    %1739 = vmatpush.bf16.msra.mxu0 %v1598
    %1740 = vmatpush.bf16.msra.mxu0 %v1590
    %1741 = vmatpush.bf16.msra.mxu0 %v1582
    %1742 = vmatpush.bf16.msra.mxu0 %v1574
    %1743 = vmatpush.bf16.msra.mxu0 %v1566
    %1744 = vmatpush.bf16.msra.mxu0 %v1558
    %1745 = vmatpush.bf16.msra.mxu0 %v1550
    %1746 = vmatmul.bf16.gmra.mxu0 %v1270
    %v1747 = vpop.f32.mrf.mxu0
    %v1748 = vadd.f32 %v1342, %v1747
    %v1749 = vpop.f32.mrf.mxu0
    %1750 = vdwg.mxu0
    %1751 = vmatpush.bf16.msra.mxu0 %v1607
    %1752 = vmatpush.bf16.msra.mxu0 %v1599
    %1753 = vmatpush.bf16.msra.mxu0 %v1591
    %1754 = vmatpush.bf16.msra.mxu0 %v1583
    %1755 = vmatpush.bf16.msra.mxu0 %v1575
    %1756 = vmatpush.bf16.msra.mxu0 %v1567
    %1757 = vmatpush.bf16.msra.mxu0 %v1559
    %1758 = vmatpush.bf16.msra.mxu0 %v1551
    %1759 = vmatmul.bf16.gmra.mxu0 %v1270
    %v1760 = vpop.f32.mrf.mxu0
    %v1761 = vadd.f32 %v1343, %v1760
    %v1762 = vpop.f32.mrf.mxu0
    %1763 = vdwg.mxu0
    %1764 = vmatpush.bf16.msra.mxu0 %v1608
    %1765 = vmatpush.bf16.msra.mxu0 %v1600
    %1766 = vmatpush.bf16.msra.mxu0 %v1592
    %1767 = vmatpush.bf16.msra.mxu0 %v1584
    %1768 = vmatpush.bf16.msra.mxu0 %v1576
    %1769 = vmatpush.bf16.msra.mxu0 %v1568
    %1770 = vmatpush.bf16.msra.mxu0 %v1560
    %1771 = vmatpush.bf16.msra.mxu0 %v1552
    %1772 = vmatmul.bf16.gmra.mxu0 %v1270
    %v1773 = vpop.f32.mrf.mxu0
    %v1774 = vadd.f32 %v1344, %v1773
    %v1775 = vpop.f32.mrf.mxu0
    %1776 = vdwg.mxu0
    %vm1777 = vcmp.gt.f32.partialorder %v1683, 20.0
    %vm1778 = vcmp.gt.f32.partialorder %v1696, 20.0
    %vm1779 = vcmp.gt.f32.partialorder %v1709, 20.0
    %vm1780 = vcmp.gt.f32.partialorder %v1722, 20.0
    %vm1781 = vcmp.gt.f32.partialorder %v1735, 20.0
    %vm1782 = vcmp.gt.f32.partialorder %v1748, 20.0
    %vm1783 = vcmp.gt.f32.partialorder %v1761, 20.0
    %vm1784 = vcmp.gt.f32.partialorder %v1774, 20.0
    %v1785 = vmin.f32 %v1683, 20.0
    %v1786 = vmin.f32 %v1696, 20.0
    %v1787 = vmin.f32 %v1709, 20.0
    %v1788 = vmin.f32 %v1722, 20.0
    %v1789 = vmin.f32 %v1735, 20.0
    %v1790 = vmin.f32 %v1748, 20.0
    %v1791 = vmin.f32 %v1761, 20.0
    %v1792 = vmin.f32 %v1774, 20.0
    %v1793 = vmul.f32 %v1785, 1.442695
    %v1794 = vpow.pop %v1793
    %v1795 = vmul.f32 %v1786, 1.442695
    %v1796 = vpow.pop %v1795
    %v1797 = vmul.f32 %v1787, 1.442695
    %v1798 = vpow.pop %v1797
    %v1799 = vmul.f32 %v1788, 1.442695
    %v1800 = vpow.pop %v1799
    %v1801 = vmul.f32 %v1789, 1.442695
    %v1802 = vpow.pop %v1801
    %v1803 = vmul.f32 %v1790, 1.442695
    %v1804 = vpow.pop %v1803
    %v1805 = vmul.f32 %v1791, 1.442695
    %v1806 = vpow.pop %v1805
    %v1807 = vmul.f32 %v1792, 1.442695
    %v1808 = vpow.pop %v1807
    %v1809 = vadd.f32 %v1794, 1.0
    %v1810 = vlog2.pop %v1809
    %v1811 = vmul.f32 %v1810, 0.6931472
    %v1812 = vmul.f32 -0.5, %v1794
    %v1813 = vadd.f32 %v1812, 1.0
    %v1814 = vmul.f32 %v1813, %v1794
    %v1815 = vand.u32 2147483647, %v1794
    %vm1816 = vcmp.lt.f32.partialorder %v1815, 0.0004427343
    %v1817 = vsel %vm1816, %v1814, %v1811
    %v1818 = vadd.f32 %v1796, 1.0
    %v1819 = vlog2.pop %v1818
    %v1820 = vmul.f32 %v1819, 0.6931472
    %v1821 = vmul.f32 -0.5, %v1796
    %v1822 = vadd.f32 %v1821, 1.0
    %v1823 = vmul.f32 %v1822, %v1796
    %v1824 = vand.u32 2147483647, %v1796
    %vm1825 = vcmp.lt.f32.partialorder %v1824, 0.0004427343
    %v1826 = vsel %vm1825, %v1823, %v1820
    %v1827 = vadd.f32 %v1798, 1.0
    %v1828 = vlog2.pop %v1827
    %v1829 = vmul.f32 %v1828, 0.6931472
    %v1830 = vmul.f32 -0.5, %v1798
    %v1831 = vadd.f32 %v1830, 1.0
    %v1832 = vmul.f32 %v1831, %v1798
    %v1833 = vand.u32 2147483647, %v1798
    %vm1834 = vcmp.lt.f32.partialorder %v1833, 0.0004427343
    %v1835 = vsel %vm1834, %v1832, %v1829
    %v1836 = vadd.f32 %v1800, 1.0
    %v1837 = vlog2.pop %v1836
    %v1838 = vmul.f32 %v1837, 0.6931472
    %v1839 = vmul.f32 -0.5, %v1800
    %v1840 = vadd.f32 %v1839, 1.0
    %v1841 = vmul.f32 %v1840, %v1800
    %v1842 = vand.u32 2147483647, %v1800
    %vm1843 = vcmp.lt.f32.partialorder %v1842, 0.0004427343
    %v1844 = vsel %vm1843, %v1841, %v1838
    %v1845 = vadd.f32 %v1802, 1.0
    %v1846 = vlog2.pop %v1845
    %v1847 = vmul.f32 %v1846, 0.6931472
    %v1848 = vmul.f32 -0.5, %v1802
    %v1849 = vadd.f32 %v1848, 1.0
    %v1850 = vmul.f32 %v1849, %v1802
    %v1851 = vand.u32 2147483647, %v1802
    %vm1852 = vcmp.lt.f32.partialorder %v1851, 0.0004427343
    %v1853 = vsel %vm1852, %v1850, %v1847
    %v1854 = vadd.f32 %v1804, 1.0
    %v1855 = vlog2.pop %v1854
    %v1856 = vmul.f32 %v1855, 0.6931472
    %v1857 = vmul.f32 -0.5, %v1804
    %v1858 = vadd.f32 %v1857, 1.0
    %v1859 = vmul.f32 %v1858, %v1804
    %v1860 = vand.u32 2147483647, %v1804
    %vm1861 = vcmp.lt.f32.partialorder %v1860, 0.0004427343
    %v1862 = vsel %vm1861, %v1859, %v1856
    %v1863 = vadd.f32 %v1806, 1.0
    %v1864 = vlog2.pop %v1863
    %v1865 = vmul.f32 %v1864, 0.6931472
    %v1866 = vmul.f32 -0.5, %v1806
    %v1867 = vadd.f32 %v1866, 1.0
    %v1868 = vmul.f32 %v1867, %v1806
    %v1869 = vand.u32 2147483647, %v1806
    %vm1870 = vcmp.lt.f32.partialorder %v1869, 0.0004427343
    %v1871 = vsel %vm1870, %v1868, %v1865
    %v1872 = vadd.f32 %v1808, 1.0
    %v1873 = vlog2.pop %v1872
    %v1874 = vmul.f32 %v1873, 0.6931472
    %v1875 = vmul.f32 -0.5, %v1808
    %v1876 = vadd.f32 %v1875, 1.0
    %v1877 = vmul.f32 %v1876, %v1808
    %v1878 = vand.u32 2147483647, %v1808
    %vm1879 = vcmp.lt.f32.partialorder %v1878, 0.0004427343
    %v1880 = vsel %vm1879, %v1877, %v1874
    %v1881 = vsel %vm1777, %v1683, %v1817
    %v1882 = vsel %vm1778, %v1696, %v1826
    %v1883 = vsel %vm1779, %v1709, %v1835
    %v1884 = vsel %vm1780, %v1722, %v1844
    %v1885 = vsel %vm1781, %v1735, %v1853
    %v1886 = vsel %vm1782, %v1748, %v1862
    %v1887 = vsel %vm1783, %v1761, %v1871
    %v1888 = vsel %vm1784, %v1774, %v1880
    %v1889 = vtanh.pop %v1881
    %v1890 = vtanh.pop %v1882
    %v1891 = vtanh.pop %v1883
    %v1892 = vtanh.pop %v1884
    %v1893 = vtanh.pop %v1885
    %v1894 = vtanh.pop %v1886
    %v1895 = vtanh.pop %v1887
    %v1896 = vtanh.pop %v1888
    %v1897 = vmul.f32 %v1683, %v1889
    %v1898 = vmul.f32 %v1696, %v1890
    %v1899 = vmul.f32 %v1709, %v1891
    %v1900 = vmul.f32 %v1722, %v1892
    %v1901 = vmul.f32 %v1735, %v1893
    %v1902 = vmul.f32 %v1748, %v1894
    %v1903 = vmul.f32 %v1761, %v1895
    %v1904 = vmul.f32 %v1774, %v1896
    %s1905 = smul.u32 4, 128
    %s1906 = smul.u32 %s1905, 4
    %s1907 = sshll.u32 %s1906, 4
    %1908 = dma.done %s123, %s1907
    %v1909 = vpack.c.bf16 %v1897, %v1897
    %v1910 = vpack.c.bf16 %v1898, %v1898
    %v1911 = vpack.c.bf16 %v1899, %v1899
    %v1912 = vpack.c.bf16 %v1900, %v1900
    %v1913 = vpack.c.bf16 %v1901, %v1901
    %v1914 = vpack.c.bf16 %v1902, %v1902
    %v1915 = vpack.c.bf16 %v1903, %v1903
    %v1916 = vpack.c.bf16 %v1904, %v1904
    %v1917 = vld [vmem:[#allocation3] sm:$0xff]
    %v1918 = vld [vmem:[#allocation3 + $0x8] sm:$0xff]
    %v1919 = vld [vmem:[#allocation3 + $0x10] sm:$0xff]
    %v1920 = vld [vmem:[#allocation3 + $0x18] sm:$0xff]
    %v1921 = vld [vmem:[#allocation3 + $0x20] sm:$0xff]
    %v1922 = vld [vmem:[#allocation3 + $0x28] sm:$0xff]
    %v1923 = vld [vmem:[#allocation3 + $0x30] sm:$0xff]
    %v1924 = vld [vmem:[#allocation3 + $0x38] sm:$0xff]
    %v1925 = vld [vmem:[#allocation3 + $0x40] sm:$0xff]
    %v1926 = vld [vmem:[#allocation3 + $0x48] sm:$0xff]
    %v1927 = vld [vmem:[#allocation3 + $0x50] sm:$0xff]
    %v1928 = vld [vmem:[#allocation3 + $0x58] sm:$0xff]
    %v1929 = vld [vmem:[#allocation3 + $0x60] sm:$0xff]
    %v1930 = vld [vmem:[#allocation3 + $0x68] sm:$0xff]
    %v1931 = vld [vmem:[#allocation3 + $0x70] sm:$0xff]
    %v1932 = vld [vmem:[#allocation3 + $0x78] sm:$0xff]
    %v1933 = vld [vmem:[#allocation3 + $0x80] sm:$0xff]
    %v1934 = vld [vmem:[#allocation3 + $0x88] sm:$0xff]
    %v1935 = vld [vmem:[#allocation3 + $0x90] sm:$0xff]
    %v1936 = vld [vmem:[#allocation3 + $0x98] sm:$0xff]
    %v1937 = vld [vmem:[#allocation3 + $0xa0] sm:$0xff]
    %v1938 = vld [vmem:[#allocation3 + $0xa8] sm:$0xff]
    %v1939 = vld [vmem:[#allocation3 + $0xb0] sm:$0xff]
    %v1940 = vld [vmem:[#allocation3 + $0xb8] sm:$0xff]
    %v1941 = vld [vmem:[#allocation3 + $0xc0] sm:$0xff]
    %v1942 = vld [vmem:[#allocation3 + $0xc8] sm:$0xff]
    %v1943 = vld [vmem:[#allocation3 + $0xd0] sm:$0xff]
    %v1944 = vld [vmem:[#allocation3 + $0xd8] sm:$0xff]
    %v1945 = vld [vmem:[#allocation3 + $0xe0] sm:$0xff]
    %v1946 = vld [vmem:[#allocation3 + $0xe8] sm:$0xff]
    %v1947 = vld [vmem:[#allocation3 + $0xf0] sm:$0xff]
    %v1948 = vld [vmem:[#allocation3 + $0xf8] sm:$0xff]
    %v1949 = vld [vmem:[#allocation3 + $0x100] sm:$0xff]
    %v1950 = vld [vmem:[#allocation3 + $0x108] sm:$0xff]
    %v1951 = vld [vmem:[#allocation3 + $0x110] sm:$0xff]
    %v1952 = vld [vmem:[#allocation3 + $0x118] sm:$0xff]
    %v1953 = vld [vmem:[#allocation3 + $0x120] sm:$0xff]
    %v1954 = vld [vmem:[#allocation3 + $0x128] sm:$0xff]
    %v1955 = vld [vmem:[#allocation3 + $0x130] sm:$0xff]
    %v1956 = vld [vmem:[#allocation3 + $0x138] sm:$0xff]
    %v1957 = vld [vmem:[#allocation3 + $0x140] sm:$0xff]
    %v1958 = vld [vmem:[#allocation3 + $0x148] sm:$0xff]
    %v1959 = vld [vmem:[#allocation3 + $0x150] sm:$0xff]
    %v1960 = vld [vmem:[#allocation3 + $0x158] sm:$0xff]
    %v1961 = vld [vmem:[#allocation3 + $0x160] sm:$0xff]
    %v1962 = vld [vmem:[#allocation3 + $0x168] sm:$0xff]
    %v1963 = vld [vmem:[#allocation3 + $0x170] sm:$0xff]
    %v1964 = vld [vmem:[#allocation3 + $0x178] sm:$0xff]
    %v1965 = vld [vmem:[#allocation3 + $0x180] sm:$0xff]
    %v1966 = vld [vmem:[#allocation3 + $0x188] sm:$0xff]
    %v1967 = vld [vmem:[#allocation3 + $0x190] sm:$0xff]
    %v1968 = vld [vmem:[#allocation3 + $0x198] sm:$0xff]
    %v1969 = vld [vmem:[#allocation3 + $0x1a0] sm:$0xff]
    %v1970 = vld [vmem:[#allocation3 + $0x1a8] sm:$0xff]
    %v1971 = vld [vmem:[#allocation3 + $0x1b0] sm:$0xff]
    %v1972 = vld [vmem:[#allocation3 + $0x1b8] sm:$0xff]
    %v1973 = vld [vmem:[#allocation3 + $0x1c0] sm:$0xff]
    %v1974 = vld [vmem:[#allocation3 + $0x1c8] sm:$0xff]
    %v1975 = vld [vmem:[#allocation3 + $0x1d0] sm:$0xff]
    %v1976 = vld [vmem:[#allocation3 + $0x1d8] sm:$0xff]
    %v1977 = vld [vmem:[#allocation3 + $0x1e0] sm:$0xff]
    %v1978 = vld [vmem:[#allocation3 + $0x1e8] sm:$0xff]
    %v1979 = vld [vmem:[#allocation3 + $0x1f0] sm:$0xff]
    %v1980 = vld [vmem:[#allocation3 + $0x1f8] sm:$0xff]
    %v1981 = vld [vmem:[#allocation3 + $0x200] sm:$0xff]
    %v1982 = vld [vmem:[#allocation3 + $0x208] sm:$0xff]
    %v1983 = vld [vmem:[#allocation3 + $0x210] sm:$0xff]
    %v1984 = vld [vmem:[#allocation3 + $0x218] sm:$0xff]
    %v1985 = vld [vmem:[#allocation3 + $0x220] sm:$0xff]
    %v1986 = vld [vmem:[#allocation3 + $0x228] sm:$0xff]
    %v1987 = vld [vmem:[#allocation3 + $0x230] sm:$0xff]
    %v1988 = vld [vmem:[#allocation3 + $0x238] sm:$0xff]
    %v1989 = vld [vmem:[#allocation3 + $0x240] sm:$0xff]
    %v1990 = vld [vmem:[#allocation3 + $0x248] sm:$0xff]
    %v1991 = vld [vmem:[#allocation3 + $0x250] sm:$0xff]
    %v1992 = vld [vmem:[#allocation3 + $0x258] sm:$0xff]
    %v1993 = vld [vmem:[#allocation3 + $0x260] sm:$0xff]
    %v1994 = vld [vmem:[#allocation3 + $0x268] sm:$0xff]
    %v1995 = vld [vmem:[#allocation3 + $0x270] sm:$0xff]
    %v1996 = vld [vmem:[#allocation3 + $0x278] sm:$0xff]
    %v1997 = vld [vmem:[#allocation3 + $0x280] sm:$0xff]
    %v1998 = vld [vmem:[#allocation3 + $0x288] sm:$0xff]
    %v1999 = vld [vmem:[#allocation3 + $0x290] sm:$0xff]
    %v2000 = vld [vmem:[#allocation3 + $0x298] sm:$0xff]
    %v2001 = vld [vmem:[#allocation3 + $0x2a0] sm:$0xff]
    %v2002 = vld [vmem:[#allocation3 + $0x2a8] sm:$0xff]
    %v2003 = vld [vmem:[#allocation3 + $0x2b0] sm:$0xff]
    %v2004 = vld [vmem:[#allocation3 + $0x2b8] sm:$0xff]
    %v2005 = vld [vmem:[#allocation3 + $0x2c0] sm:$0xff]
    %v2006 = vld [vmem:[#allocation3 + $0x2c8] sm:$0xff]
    %v2007 = vld [vmem:[#allocation3 + $0x2d0] sm:$0xff]
    %v2008 = vld [vmem:[#allocation3 + $0x2d8] sm:$0xff]
    %v2009 = vld [vmem:[#allocation3 + $0x2e0] sm:$0xff]
    %v2010 = vld [vmem:[#allocation3 + $0x2e8] sm:$0xff]
    %v2011 = vld [vmem:[#allocation3 + $0x2f0] sm:$0xff]
    %v2012 = vld [vmem:[#allocation3 + $0x2f8] sm:$0xff]
    %v2013 = vld [vmem:[#allocation3 + $0x300] sm:$0xff]
    %v2014 = vld [vmem:[#allocation3 + $0x308] sm:$0xff]
    %v2015 = vld [vmem:[#allocation3 + $0x310] sm:$0xff]
    %v2016 = vld [vmem:[#allocation3 + $0x318] sm:$0xff]
    %v2017 = vld [vmem:[#allocation3 + $0x320] sm:$0xff]
    %v2018 = vld [vmem:[#allocation3 + $0x328] sm:$0xff]
    %v2019 = vld [vmem:[#allocation3 + $0x330] sm:$0xff]
    %v2020 = vld [vmem:[#allocation3 + $0x338] sm:$0xff]
    %v2021 = vld [vmem:[#allocation3 + $0x340] sm:$0xff]
    %v2022 = vld [vmem:[#allocation3 + $0x348] sm:$0xff]
    %v2023 = vld [vmem:[#allocation3 + $0x350] sm:$0xff]
    %v2024 = vld [vmem:[#allocation3 + $0x358] sm:$0xff]
    %v2025 = vld [vmem:[#allocation3 + $0x360] sm:$0xff]
    %v2026 = vld [vmem:[#allocation3 + $0x368] sm:$0xff]
    %v2027 = vld [vmem:[#allocation3 + $0x370] sm:$0xff]
    %v2028 = vld [vmem:[#allocation3 + $0x378] sm:$0xff]
    %v2029 = vld [vmem:[#allocation3 + $0x380] sm:$0xff]
    %v2030 = vld [vmem:[#allocation3 + $0x388] sm:$0xff]
    %v2031 = vld [vmem:[#allocation3 + $0x390] sm:$0xff]
    %v2032 = vld [vmem:[#allocation3 + $0x398] sm:$0xff]
    %v2033 = vld [vmem:[#allocation3 + $0x3a0] sm:$0xff]
    %v2034 = vld [vmem:[#allocation3 + $0x3a8] sm:$0xff]
    %v2035 = vld [vmem:[#allocation3 + $0x3b0] sm:$0xff]
    %v2036 = vld [vmem:[#allocation3 + $0x3b8] sm:$0xff]
    %v2037 = vld [vmem:[#allocation3 + $0x3c0] sm:$0xff]
    %v2038 = vld [vmem:[#allocation3 + $0x3c8] sm:$0xff]
    %v2039 = vld [vmem:[#allocation3 + $0x3d0] sm:$0xff]
    %v2040 = vld [vmem:[#allocation3 + $0x3d8] sm:$0xff]
    %v2041 = vld [vmem:[#allocation3 + $0x3e0] sm:$0xff]
    %v2042 = vld [vmem:[#allocation3 + $0x3e8] sm:$0xff]
    %v2043 = vld [vmem:[#allocation3 + $0x3f0] sm:$0xff]
    %v2044 = vld [vmem:[#allocation3 + $0x3f8] sm:$0xff]
    %v2045 = vld [vmem:[#allocation3 + $0x400] sm:$0xff]
    %v2046 = vld [vmem:[#allocation3 + $0x408] sm:$0xff]
    %v2047 = vld [vmem:[#allocation3 + $0x410] sm:$0xff]
    %v2048 = vld [vmem:[#allocation3 + $0x418] sm:$0xff]
    %v2049 = vld [vmem:[#allocation3 + $0x420] sm:$0xff]
    %v2050 = vld [vmem:[#allocation3 + $0x428] sm:$0xff]
    %v2051 = vld [vmem:[#allocation3 + $0x430] sm:$0xff]
    %v2052 = vld [vmem:[#allocation3 + $0x438] sm:$0xff]
    %v2053 = vld [vmem:[#allocation3 + $0x440] sm:$0xff]
    %v2054 = vld [vmem:[#allocation3 + $0x448] sm:$0xff]
    %v2055 = vld [vmem:[#allocation3 + $0x450] sm:$0xff]
    %v2056 = vld [vmem:[#allocation3 + $0x458] sm:$0xff]
    %v2057 = vld [vmem:[#allocation3 + $0x460] sm:$0xff]
    %v2058 = vld [vmem:[#allocation3 + $0x468] sm:$0xff]
    %v2059 = vld [vmem:[#allocation3 + $0x470] sm:$0xff]
    %v2060 = vld [vmem:[#allocation3 + $0x478] sm:$0xff]
    %v2061 = vld [vmem:[#allocation3 + $0x480] sm:$0xff]
    %v2062 = vld [vmem:[#allocation3 + $0x488] sm:$0xff]
    %v2063 = vld [vmem:[#allocation3 + $0x490] sm:$0xff]
    %v2064 = vld [vmem:[#allocation3 + $0x498] sm:$0xff]
    %v2065 = vld [vmem:[#allocation3 + $0x4a0] sm:$0xff]
    %v2066 = vld [vmem:[#allocation3 + $0x4a8] sm:$0xff]
    %v2067 = vld [vmem:[#allocation3 + $0x4b0] sm:$0xff]
    %v2068 = vld [vmem:[#allocation3 + $0x4b8] sm:$0xff]
    %v2069 = vld [vmem:[#allocation3 + $0x4c0] sm:$0xff]
    %v2070 = vld [vmem:[#allocation3 + $0x4c8] sm:$0xff]
    %v2071 = vld [vmem:[#allocation3 + $0x4d0] sm:$0xff]
    %v2072 = vld [vmem:[#allocation3 + $0x4d8] sm:$0xff]
    %v2073 = vld [vmem:[#allocation3 + $0x4e0] sm:$0xff]
    %v2074 = vld [vmem:[#allocation3 + $0x4e8] sm:$0xff]
    %v2075 = vld [vmem:[#allocation3 + $0x4f0] sm:$0xff]
    %v2076 = vld [vmem:[#allocation3 + $0x4f8] sm:$0xff]
    %v2077 = vld [vmem:[#allocation3 + $0x500] sm:$0xff]
    %v2078 = vld [vmem:[#allocation3 + $0x508] sm:$0xff]
    %v2079 = vld [vmem:[#allocation3 + $0x510] sm:$0xff]
    %v2080 = vld [vmem:[#allocation3 + $0x518] sm:$0xff]
    %v2081 = vld [vmem:[#allocation3 + $0x520] sm:$0xff]
    %v2082 = vld [vmem:[#allocation3 + $0x528] sm:$0xff]
    %v2083 = vld [vmem:[#allocation3 + $0x530] sm:$0xff]
    %v2084 = vld [vmem:[#allocation3 + $0x538] sm:$0xff]
    %v2085 = vld [vmem:[#allocation3 + $0x540] sm:$0xff]
    %v2086 = vld [vmem:[#allocation3 + $0x548] sm:$0xff]
    %v2087 = vld [vmem:[#allocation3 + $0x550] sm:$0xff]
    %v2088 = vld [vmem:[#allocation3 + $0x558] sm:$0xff]
    %v2089 = vld [vmem:[#allocation3 + $0x560] sm:$0xff]
    %v2090 = vld [vmem:[#allocation3 + $0x568] sm:$0xff]
    %v2091 = vld [vmem:[#allocation3 + $0x570] sm:$0xff]
    %v2092 = vld [vmem:[#allocation3 + $0x578] sm:$0xff]
    %v2093 = vld [vmem:[#allocation3 + $0x580] sm:$0xff]
    %v2094 = vld [vmem:[#allocation3 + $0x588] sm:$0xff]
    %v2095 = vld [vmem:[#allocation3 + $0x590] sm:$0xff]
    %v2096 = vld [vmem:[#allocation3 + $0x598] sm:$0xff]
    %v2097 = vld [vmem:[#allocation3 + $0x5a0] sm:$0xff]
    %v2098 = vld [vmem:[#allocation3 + $0x5a8] sm:$0xff]
    %v2099 = vld [vmem:[#allocation3 + $0x5b0] sm:$0xff]
    %v2100 = vld [vmem:[#allocation3 + $0x5b8] sm:$0xff]
    %v2101 = vld [vmem:[#allocation3 + $0x5c0] sm:$0xff]
    %v2102 = vld [vmem:[#allocation3 + $0x5c8] sm:$0xff]
    %v2103 = vld [vmem:[#allocation3 + $0x5d0] sm:$0xff]
    %v2104 = vld [vmem:[#allocation3 + $0x5d8] sm:$0xff]
    %v2105 = vld [vmem:[#allocation3 + $0x5e0] sm:$0xff]
    %v2106 = vld [vmem:[#allocation3 + $0x5e8] sm:$0xff]
    %v2107 = vld [vmem:[#allocation3 + $0x5f0] sm:$0xff]
    %v2108 = vld [vmem:[#allocation3 + $0x5f8] sm:$0xff]
    %v2109 = vld [vmem:[#allocation3 + $0x600] sm:$0xff]
    %v2110 = vld [vmem:[#allocation3 + $0x608] sm:$0xff]
    %v2111 = vld [vmem:[#allocation3 + $0x610] sm:$0xff]
    %v2112 = vld [vmem:[#allocation3 + $0x618] sm:$0xff]
    %v2113 = vld [vmem:[#allocation3 + $0x620] sm:$0xff]
    %v2114 = vld [vmem:[#allocation3 + $0x628] sm:$0xff]
    %v2115 = vld [vmem:[#allocation3 + $0x630] sm:$0xff]
    %v2116 = vld [vmem:[#allocation3 + $0x638] sm:$0xff]
    %v2117 = vld [vmem:[#allocation3 + $0x640] sm:$0xff]
    %v2118 = vld [vmem:[#allocation3 + $0x648] sm:$0xff]
    %v2119 = vld [vmem:[#allocation3 + $0x650] sm:$0xff]
    %v2120 = vld [vmem:[#allocation3 + $0x658] sm:$0xff]
    %v2121 = vld [vmem:[#allocation3 + $0x660] sm:$0xff]
    %v2122 = vld [vmem:[#allocation3 + $0x668] sm:$0xff]
    %v2123 = vld [vmem:[#allocation3 + $0x670] sm:$0xff]
    %v2124 = vld [vmem:[#allocation3 + $0x678] sm:$0xff]
    %v2125 = vld [vmem:[#allocation3 + $0x680] sm:$0xff]
    %v2126 = vld [vmem:[#allocation3 + $0x688] sm:$0xff]
    %v2127 = vld [vmem:[#allocation3 + $0x690] sm:$0xff]
    %v2128 = vld [vmem:[#allocation3 + $0x698] sm:$0xff]
    %v2129 = vld [vmem:[#allocation3 + $0x6a0] sm:$0xff]
    %v2130 = vld [vmem:[#allocation3 + $0x6a8] sm:$0xff]
    %v2131 = vld [vmem:[#allocation3 + $0x6b0] sm:$0xff]
    %v2132 = vld [vmem:[#allocation3 + $0x6b8] sm:$0xff]
    %v2133 = vld [vmem:[#allocation3 + $0x6c0] sm:$0xff]
    %v2134 = vld [vmem:[#allocation3 + $0x6c8] sm:$0xff]
    %v2135 = vld [vmem:[#allocation3 + $0x6d0] sm:$0xff]
    %v2136 = vld [vmem:[#allocation3 + $0x6d8] sm:$0xff]
    %v2137 = vld [vmem:[#allocation3 + $0x6e0] sm:$0xff]
    %v2138 = vld [vmem:[#allocation3 + $0x6e8] sm:$0xff]
    %v2139 = vld [vmem:[#allocation3 + $0x6f0] sm:$0xff]
    %v2140 = vld [vmem:[#allocation3 + $0x6f8] sm:$0xff]
    %v2141 = vld [vmem:[#allocation3 + $0x700] sm:$0xff]
    %v2142 = vld [vmem:[#allocation3 + $0x708] sm:$0xff]
    %v2143 = vld [vmem:[#allocation3 + $0x710] sm:$0xff]
    %v2144 = vld [vmem:[#allocation3 + $0x718] sm:$0xff]
    %v2145 = vld [vmem:[#allocation3 + $0x720] sm:$0xff]
    %v2146 = vld [vmem:[#allocation3 + $0x728] sm:$0xff]
    %v2147 = vld [vmem:[#allocation3 + $0x730] sm:$0xff]
    %v2148 = vld [vmem:[#allocation3 + $0x738] sm:$0xff]
    %v2149 = vld [vmem:[#allocation3 + $0x740] sm:$0xff]
    %v2150 = vld [vmem:[#allocation3 + $0x748] sm:$0xff]
    %v2151 = vld [vmem:[#allocation3 + $0x750] sm:$0xff]
    %v2152 = vld [vmem:[#allocation3 + $0x758] sm:$0xff]
    %v2153 = vld [vmem:[#allocation3 + $0x760] sm:$0xff]
    %v2154 = vld [vmem:[#allocation3 + $0x768] sm:$0xff]
    %v2155 = vld [vmem:[#allocation3 + $0x770] sm:$0xff]
    %v2156 = vld [vmem:[#allocation3 + $0x778] sm:$0xff]
    %v2157 = vld [vmem:[#allocation3 + $0x780] sm:$0xff]
    %v2158 = vld [vmem:[#allocation3 + $0x788] sm:$0xff]
    %v2159 = vld [vmem:[#allocation3 + $0x790] sm:$0xff]
    %v2160 = vld [vmem:[#allocation3 + $0x798] sm:$0xff]
    %v2161 = vld [vmem:[#allocation3 + $0x7a0] sm:$0xff]
    %v2162 = vld [vmem:[#allocation3 + $0x7a8] sm:$0xff]
    %v2163 = vld [vmem:[#allocation3 + $0x7b0] sm:$0xff]
    %v2164 = vld [vmem:[#allocation3 + $0x7b8] sm:$0xff]
    %v2165 = vld [vmem:[#allocation3 + $0x7c0] sm:$0xff]
    %v2166 = vld [vmem:[#allocation3 + $0x7c8] sm:$0xff]
    %v2167 = vld [vmem:[#allocation3 + $0x7d0] sm:$0xff]
    %v2168 = vld [vmem:[#allocation3 + $0x7d8] sm:$0xff]
    %v2169 = vld [vmem:[#allocation3 + $0x7e0] sm:$0xff]
    %v2170 = vld [vmem:[#allocation3 + $0x7e8] sm:$0xff]
    %v2171 = vld [vmem:[#allocation3 + $0x7f0] sm:$0xff]
    %v2172 = vld [vmem:[#allocation3 + $0x7f8] sm:$0xff]
    %v2173 = vld [vmem:[%s9] sm:$0xf]
    %v2175 = vperm.slane %v2173, 0
    %v2176 = vperm.slane %v2173, 1
    %v2177 = vperm.slane %v2173, 2
    %v2178 = vperm.slane %v2173, 3
    %v2439 = vunpack.c.l.b16 %v1917
    %v2440 = vunpack.c.h.b16 %v1917
    %v2441 = vunpack.c.l.b16 %v1918
    %v2442 = vunpack.c.h.b16 %v1918
    %v2443 = vunpack.c.l.b16 %v1919
    %v2444 = vunpack.c.h.b16 %v1919
    %v2445 = vunpack.c.l.b16 %v1920
    %v2446 = vunpack.c.h.b16 %v1920
    %v2447 = vunpack.c.l.b16 %v1921
    %v2448 = vunpack.c.h.b16 %v1921
    %v2449 = vunpack.c.l.b16 %v1922
    %v2450 = vunpack.c.h.b16 %v1922
    %v2451 = vunpack.c.l.b16 %v1923
    %v2452 = vunpack.c.h.b16 %v1923
    %v2453 = vunpack.c.l.b16 %v1924
    %v2454 = vunpack.c.h.b16 %v1924
    %v2455 = vunpack.c.l.b16 %v1925
    %v2456 = vunpack.c.h.b16 %v1925
    %v2457 = vunpack.c.l.b16 %v1926
    %v2458 = vunpack.c.h.b16 %v1926
    %v2459 = vunpack.c.l.b16 %v1927
    %v2460 = vunpack.c.h.b16 %v1927
    %v2461 = vunpack.c.l.b16 %v1928
    %v2462 = vunpack.c.h.b16 %v1928
    %v2463 = vunpack.c.l.b16 %v1929
    %v2464 = vunpack.c.h.b16 %v1929
    %v2465 = vunpack.c.l.b16 %v1930
    %v2466 = vunpack.c.h.b16 %v1930
    %v2467 = vunpack.c.l.b16 %v1931
    %v2468 = vunpack.c.h.b16 %v1931
    %v2469 = vunpack.c.l.b16 %v1932
    %v2470 = vunpack.c.h.b16 %v1932
    %v2471 = vunpack.c.l.b16 %v1933
    %v2472 = vunpack.c.h.b16 %v1933
    %v2473 = vunpack.c.l.b16 %v1934
    %v2474 = vunpack.c.h.b16 %v1934
    %v2475 = vunpack.c.l.b16 %v1935
    %v2476 = vunpack.c.h.b16 %v1935
    %v2477 = vunpack.c.l.b16 %v1936
    %v2478 = vunpack.c.h.b16 %v1936
    %v2479 = vunpack.c.l.b16 %v1937
    %v2480 = vunpack.c.h.b16 %v1937
    %v2481 = vunpack.c.l.b16 %v1938
    %v2482 = vunpack.c.h.b16 %v1938
    %v2483 = vunpack.c.l.b16 %v1939
    %v2484 = vunpack.c.h.b16 %v1939
    %v2485 = vunpack.c.l.b16 %v1940
    %v2486 = vunpack.c.h.b16 %v1940
    %v2487 = vunpack.c.l.b16 %v1941
    %v2488 = vunpack.c.h.b16 %v1941
    %v2489 = vunpack.c.l.b16 %v1942
    %v2490 = vunpack.c.h.b16 %v1942
    %v2491 = vunpack.c.l.b16 %v1943
    %v2492 = vunpack.c.h.b16 %v1943
    %v2493 = vunpack.c.l.b16 %v1944
    %v2494 = vunpack.c.h.b16 %v1944
    %v2495 = vunpack.c.l.b16 %v1945
    %v2496 = vunpack.c.h.b16 %v1945
    %v2497 = vunpack.c.l.b16 %v1946
    %v2498 = vunpack.c.h.b16 %v1946
    %v2499 = vunpack.c.l.b16 %v1947
    %v2500 = vunpack.c.h.b16 %v1947
    %v2501 = vunpack.c.l.b16 %v1948
    %v2502 = vunpack.c.h.b16 %v1948
    %v2503 = vunpack.c.l.b16 %v1949
    %v2504 = vunpack.c.h.b16 %v1949
    %v2505 = vunpack.c.l.b16 %v1950
    %v2506 = vunpack.c.h.b16 %v1950
    %v2507 = vunpack.c.l.b16 %v1951
    %v2508 = vunpack.c.h.b16 %v1951
    %v2509 = vunpack.c.l.b16 %v1952
    %v2510 = vunpack.c.h.b16 %v1952
    %v2511 = vunpack.c.l.b16 %v1953
    %v2512 = vunpack.c.h.b16 %v1953
    %v2513 = vunpack.c.l.b16 %v1954
    %v2514 = vunpack.c.h.b16 %v1954
    %v2515 = vunpack.c.l.b16 %v1955
    %v2516 = vunpack.c.h.b16 %v1955
    %v2517 = vunpack.c.l.b16 %v1956
    %v2518 = vunpack.c.h.b16 %v1956
    %v2519 = vunpack.c.l.b16 %v1957
    %v2520 = vunpack.c.h.b16 %v1957
    %v2521 = vunpack.c.l.b16 %v1958
    %v2522 = vunpack.c.h.b16 %v1958
    %v2523 = vunpack.c.l.b16 %v1959
    %v2524 = vunpack.c.h.b16 %v1959
    %v2525 = vunpack.c.l.b16 %v1960
    %v2526 = vunpack.c.h.b16 %v1960
    %v2527 = vunpack.c.l.b16 %v1961
    %v2528 = vunpack.c.h.b16 %v1961
    %v2529 = vunpack.c.l.b16 %v1962
    %v2530 = vunpack.c.h.b16 %v1962
    %v2531 = vunpack.c.l.b16 %v1963
    %v2532 = vunpack.c.h.b16 %v1963
    %v2533 = vunpack.c.l.b16 %v1964
    %v2534 = vunpack.c.h.b16 %v1964
    %v2535 = vunpack.c.l.b16 %v1965
    %v2536 = vunpack.c.h.b16 %v1965
    %v2537 = vunpack.c.l.b16 %v1966
    %v2538 = vunpack.c.h.b16 %v1966
    %v2539 = vunpack.c.l.b16 %v1967
    %v2540 = vunpack.c.h.b16 %v1967
    %v2541 = vunpack.c.l.b16 %v1968
    %v2542 = vunpack.c.h.b16 %v1968
    %v2543 = vunpack.c.l.b16 %v1969
    %v2544 = vunpack.c.h.b16 %v1969
    %v2545 = vunpack.c.l.b16 %v1970
    %v2546 = vunpack.c.h.b16 %v1970
    %v2547 = vunpack.c.l.b16 %v1971
    %v2548 = vunpack.c.h.b16 %v1971
    %v2549 = vunpack.c.l.b16 %v1972
    %v2550 = vunpack.c.h.b16 %v1972
    %v2551 = vunpack.c.l.b16 %v1973
    %v2552 = vunpack.c.h.b16 %v1973
    %v2553 = vunpack.c.l.b16 %v1974
    %v2554 = vunpack.c.h.b16 %v1974
    %v2555 = vunpack.c.l.b16 %v1975
    %v2556 = vunpack.c.h.b16 %v1975
    %v2557 = vunpack.c.l.b16 %v1976
    %v2558 = vunpack.c.h.b16 %v1976
    %v2559 = vunpack.c.l.b16 %v1977
    %v2560 = vunpack.c.h.b16 %v1977
    %v2561 = vunpack.c.l.b16 %v1978
    %v2562 = vunpack.c.h.b16 %v1978
    %v2563 = vunpack.c.l.b16 %v1979
    %v2564 = vunpack.c.h.b16 %v1979
    %v2565 = vunpack.c.l.b16 %v1980
    %v2566 = vunpack.c.h.b16 %v1980
    %v2567 = vunpack.c.l.b16 %v1981
    %v2568 = vunpack.c.h.b16 %v1981
    %v2569 = vunpack.c.l.b16 %v1982
    %v2570 = vunpack.c.h.b16 %v1982
    %v2571 = vunpack.c.l.b16 %v1983
    %v2572 = vunpack.c.h.b16 %v1983
    %v2573 = vunpack.c.l.b16 %v1984
    %v2574 = vunpack.c.h.b16 %v1984
    %v2575 = vunpack.c.l.b16 %v1985
    %v2576 = vunpack.c.h.b16 %v1985
    %v2577 = vunpack.c.l.b16 %v1986
    %v2578 = vunpack.c.h.b16 %v1986
    %v2579 = vunpack.c.l.b16 %v1987
    %v2580 = vunpack.c.h.b16 %v1987
    %v2581 = vunpack.c.l.b16 %v1988
    %v2582 = vunpack.c.h.b16 %v1988
    %v2583 = vunpack.c.l.b16 %v1989
    %v2584 = vunpack.c.h.b16 %v1989
    %v2585 = vunpack.c.l.b16 %v1990
    %v2586 = vunpack.c.h.b16 %v1990
    %v2587 = vunpack.c.l.b16 %v1991
    %v2588 = vunpack.c.h.b16 %v1991
    %v2589 = vunpack.c.l.b16 %v1992
    %v2590 = vunpack.c.h.b16 %v1992
    %v2591 = vunpack.c.l.b16 %v1993
    %v2592 = vunpack.c.h.b16 %v1993
    %v2593 = vunpack.c.l.b16 %v1994
    %v2594 = vunpack.c.h.b16 %v1994
    %v2595 = vunpack.c.l.b16 %v1995
    %v2596 = vunpack.c.h.b16 %v1995
    %v2597 = vunpack.c.l.b16 %v1996
    %v2598 = vunpack.c.h.b16 %v1996
    %v2599 = vunpack.c.l.b16 %v1997
    %v2600 = vunpack.c.h.b16 %v1997
    %v2601 = vunpack.c.l.b16 %v1998
    %v2602 = vunpack.c.h.b16 %v1998
    %v2603 = vunpack.c.l.b16 %v1999
    %v2604 = vunpack.c.h.b16 %v1999
    %v2605 = vunpack.c.l.b16 %v2000
    %v2606 = vunpack.c.h.b16 %v2000
    %v2607 = vunpack.c.l.b16 %v2001
    %v2608 = vunpack.c.h.b16 %v2001
    %v2609 = vunpack.c.l.b16 %v2002
    %v2610 = vunpack.c.h.b16 %v2002
    %v2611 = vunpack.c.l.b16 %v2003
    %v2612 = vunpack.c.h.b16 %v2003
    %v2613 = vunpack.c.l.b16 %v2004
    %v2614 = vunpack.c.h.b16 %v2004
    %v2615 = vunpack.c.l.b16 %v2005
    %v2616 = vunpack.c.h.b16 %v2005
    %v2617 = vunpack.c.l.b16 %v2006
    %v2618 = vunpack.c.h.b16 %v2006
    %v2619 = vunpack.c.l.b16 %v2007
    %v2620 = vunpack.c.h.b16 %v2007
    %v2621 = vunpack.c.l.b16 %v2008
    %v2622 = vunpack.c.h.b16 %v2008
    %v2623 = vunpack.c.l.b16 %v2009
    %v2624 = vunpack.c.h.b16 %v2009
    %v2625 = vunpack.c.l.b16 %v2010
    %v2626 = vunpack.c.h.b16 %v2010
    %v2627 = vunpack.c.l.b16 %v2011
    %v2628 = vunpack.c.h.b16 %v2011
    %v2629 = vunpack.c.l.b16 %v2012
    %v2630 = vunpack.c.h.b16 %v2012
    %v2631 = vunpack.c.l.b16 %v2013
    %v2632 = vunpack.c.h.b16 %v2013
    %v2633 = vunpack.c.l.b16 %v2014
    %v2634 = vunpack.c.h.b16 %v2014
    %v2635 = vunpack.c.l.b16 %v2015
    %v2636 = vunpack.c.h.b16 %v2015
    %v2637 = vunpack.c.l.b16 %v2016
    %v2638 = vunpack.c.h.b16 %v2016
    %v2639 = vunpack.c.l.b16 %v2017
    %v2640 = vunpack.c.h.b16 %v2017
    %v2641 = vunpack.c.l.b16 %v2018
    %v2642 = vunpack.c.h.b16 %v2018
    %v2643 = vunpack.c.l.b16 %v2019
    %v2644 = vunpack.c.h.b16 %v2019
    %v2645 = vunpack.c.l.b16 %v2020
    %v2646 = vunpack.c.h.b16 %v2020
    %v2647 = vunpack.c.l.b16 %v2021
    %v2648 = vunpack.c.h.b16 %v2021
    %v2649 = vunpack.c.l.b16 %v2022
    %v2650 = vunpack.c.h.b16 %v2022
    %v2651 = vunpack.c.l.b16 %v2023
    %v2652 = vunpack.c.h.b16 %v2023
    %v2653 = vunpack.c.l.b16 %v2024
    %v2654 = vunpack.c.h.b16 %v2024
    %v2655 = vunpack.c.l.b16 %v2025
    %v2656 = vunpack.c.h.b16 %v2025
    %v2657 = vunpack.c.l.b16 %v2026
    %v2658 = vunpack.c.h.b16 %v2026
    %v2659 = vunpack.c.l.b16 %v2027
    %v2660 = vunpack.c.h.b16 %v2027
    %v2661 = vunpack.c.l.b16 %v2028
    %v2662 = vunpack.c.h.b16 %v2028
    %v2663 = vunpack.c.l.b16 %v2029
    %v2664 = vunpack.c.h.b16 %v2029
    %v2665 = vunpack.c.l.b16 %v2030
    %v2666 = vunpack.c.h.b16 %v2030
    %v2667 = vunpack.c.l.b16 %v2031
    %v2668 = vunpack.c.h.b16 %v2031
    %v2669 = vunpack.c.l.b16 %v2032
    %v2670 = vunpack.c.h.b16 %v2032
    %v2671 = vunpack.c.l.b16 %v2033
    %v2672 = vunpack.c.h.b16 %v2033
    %v2673 = vunpack.c.l.b16 %v2034
    %v2674 = vunpack.c.h.b16 %v2034
    %v2675 = vunpack.c.l.b16 %v2035
    %v2676 = vunpack.c.h.b16 %v2035
    %v2677 = vunpack.c.l.b16 %v2036
    %v2678 = vunpack.c.h.b16 %v2036
    %v2679 = vunpack.c.l.b16 %v2037
    %v2680 = vunpack.c.h.b16 %v2037
    %v2681 = vunpack.c.l.b16 %v2038
    %v2682 = vunpack.c.h.b16 %v2038
    %v2683 = vunpack.c.l.b16 %v2039
    %v2684 = vunpack.c.h.b16 %v2039
    %v2685 = vunpack.c.l.b16 %v2040
    %v2686 = vunpack.c.h.b16 %v2040
    %v2687 = vunpack.c.l.b16 %v2041
    %v2688 = vunpack.c.h.b16 %v2041
    %v2689 = vunpack.c.l.b16 %v2042
    %v2690 = vunpack.c.h.b16 %v2042
    %v2691 = vunpack.c.l.b16 %v2043
    %v2692 = vunpack.c.h.b16 %v2043
    %v2693 = vunpack.c.l.b16 %v2044
    %v2694 = vunpack.c.h.b16 %v2044
    %v2695 = vunpack.c.l.b16 %v2045
    %v2696 = vunpack.c.h.b16 %v2045
    %v2697 = vunpack.c.l.b16 %v2046
    %v2698 = vunpack.c.h.b16 %v2046
    %v2699 = vunpack.c.l.b16 %v2047
    %v2700 = vunpack.c.h.b16 %v2047
    %v2701 = vunpack.c.l.b16 %v2048
    %v2702 = vunpack.c.h.b16 %v2048
    %v2703 = vunpack.c.l.b16 %v2049
    %v2704 = vunpack.c.h.b16 %v2049
    %v2705 = vunpack.c.l.b16 %v2050
    %v2706 = vunpack.c.h.b16 %v2050
    %v2707 = vunpack.c.l.b16 %v2051
    %v2708 = vunpack.c.h.b16 %v2051
    %v2709 = vunpack.c.l.b16 %v2052
    %v2710 = vunpack.c.h.b16 %v2052
    %v2711 = vunpack.c.l.b16 %v2053
    %v2712 = vunpack.c.h.b16 %v2053
    %v2713 = vunpack.c.l.b16 %v2054
    %v2714 = vunpack.c.h.b16 %v2054
    %v2715 = vunpack.c.l.b16 %v2055
    %v2716 = vunpack.c.h.b16 %v2055
    %v2717 = vunpack.c.l.b16 %v2056
    %v2718 = vunpack.c.h.b16 %v2056
    %v2719 = vunpack.c.l.b16 %v2057
    %v2720 = vunpack.c.h.b16 %v2057
    %v2721 = vunpack.c.l.b16 %v2058
    %v2722 = vunpack.c.h.b16 %v2058
    %v2723 = vunpack.c.l.b16 %v2059
    %v2724 = vunpack.c.h.b16 %v2059
    %v2725 = vunpack.c.l.b16 %v2060
    %v2726 = vunpack.c.h.b16 %v2060
    %v2727 = vunpack.c.l.b16 %v2061
    %v2728 = vunpack.c.h.b16 %v2061
    %v2729 = vunpack.c.l.b16 %v2062
    %v2730 = vunpack.c.h.b16 %v2062
    %v2731 = vunpack.c.l.b16 %v2063
    %v2732 = vunpack.c.h.b16 %v2063
    %v2733 = vunpack.c.l.b16 %v2064
    %v2734 = vunpack.c.h.b16 %v2064
    %v2735 = vunpack.c.l.b16 %v2065
    %v2736 = vunpack.c.h.b16 %v2065
    %v2737 = vunpack.c.l.b16 %v2066
    %v2738 = vunpack.c.h.b16 %v2066
    %v2739 = vunpack.c.l.b16 %v2067
    %v2740 = vunpack.c.h.b16 %v2067
    %v2741 = vunpack.c.l.b16 %v2068
    %v2742 = vunpack.c.h.b16 %v2068
    %v2743 = vunpack.c.l.b16 %v2069
    %v2744 = vunpack.c.h.b16 %v2069
    %v2745 = vunpack.c.l.b16 %v2070
    %v2746 = vunpack.c.h.b16 %v2070
    %v2747 = vunpack.c.l.b16 %v2071
    %v2748 = vunpack.c.h.b16 %v2071
    %v2749 = vunpack.c.l.b16 %v2072
    %v2750 = vunpack.c.h.b16 %v2072
    %v2751 = vunpack.c.l.b16 %v2073
    %v2752 = vunpack.c.h.b16 %v2073
    %v2753 = vunpack.c.l.b16 %v2074
    %v2754 = vunpack.c.h.b16 %v2074
    %v2755 = vunpack.c.l.b16 %v2075
    %v2756 = vunpack.c.h.b16 %v2075
    %v2757 = vunpack.c.l.b16 %v2076
    %v2758 = vunpack.c.h.b16 %v2076
    %v2759 = vunpack.c.l.b16 %v2077
    %v2760 = vunpack.c.h.b16 %v2077
    %v2761 = vunpack.c.l.b16 %v2078
    %v2762 = vunpack.c.h.b16 %v2078
    %v2763 = vunpack.c.l.b16 %v2079
    %v2764 = vunpack.c.h.b16 %v2079
    %v2765 = vunpack.c.l.b16 %v2080
    %v2766 = vunpack.c.h.b16 %v2080
    %v2767 = vunpack.c.l.b16 %v2081
    %v2768 = vunpack.c.h.b16 %v2081
    %v2769 = vunpack.c.l.b16 %v2082
    %v2770 = vunpack.c.h.b16 %v2082
    %v2771 = vunpack.c.l.b16 %v2083
    %v2772 = vunpack.c.h.b16 %v2083
    %v2773 = vunpack.c.l.b16 %v2084
    %v2774 = vunpack.c.h.b16 %v2084
    %v2775 = vunpack.c.l.b16 %v2085
    %v2776 = vunpack.c.h.b16 %v2085
    %v2777 = vunpack.c.l.b16 %v2086
    %v2778 = vunpack.c.h.b16 %v2086
    %v2779 = vunpack.c.l.b16 %v2087
    %v2780 = vunpack.c.h.b16 %v2087
    %v2781 = vunpack.c.l.b16 %v2088
    %v2782 = vunpack.c.h.b16 %v2088
    %v2783 = vunpack.c.l.b16 %v2089
    %v2784 = vunpack.c.h.b16 %v2089
    %v2785 = vunpack.c.l.b16 %v2090
    %v2786 = vunpack.c.h.b16 %v2090
    %v2787 = vunpack.c.l.b16 %v2091
    %v2788 = vunpack.c.h.b16 %v2091
    %v2789 = vunpack.c.l.b16 %v2092
    %v2790 = vunpack.c.h.b16 %v2092
    %v2791 = vunpack.c.l.b16 %v2093
    %v2792 = vunpack.c.h.b16 %v2093
    %v2793 = vunpack.c.l.b16 %v2094
    %v2794 = vunpack.c.h.b16 %v2094
    %v2795 = vunpack.c.l.b16 %v2095
    %v2796 = vunpack.c.h.b16 %v2095
    %v2797 = vunpack.c.l.b16 %v2096
    %v2798 = vunpack.c.h.b16 %v2096
    %v2799 = vunpack.c.l.b16 %v2097
    %v2800 = vunpack.c.h.b16 %v2097
    %v2801 = vunpack.c.l.b16 %v2098
    %v2802 = vunpack.c.h.b16 %v2098
    %v2803 = vunpack.c.l.b16 %v2099
    %v2804 = vunpack.c.h.b16 %v2099
    %v2805 = vunpack.c.l.b16 %v2100
    %v2806 = vunpack.c.h.b16 %v2100
    %v2807 = vunpack.c.l.b16 %v2101
    %v2808 = vunpack.c.h.b16 %v2101
    %v2809 = vunpack.c.l.b16 %v2102
    %v2810 = vunpack.c.h.b16 %v2102
    %v2811 = vunpack.c.l.b16 %v2103
    %v2812 = vunpack.c.h.b16 %v2103
    %v2813 = vunpack.c.l.b16 %v2104
    %v2814 = vunpack.c.h.b16 %v2104
    %v2815 = vunpack.c.l.b16 %v2105
    %v2816 = vunpack.c.h.b16 %v2105
    %v2817 = vunpack.c.l.b16 %v2106
    %v2818 = vunpack.c.h.b16 %v2106
    %v2819 = vunpack.c.l.b16 %v2107
    %v2820 = vunpack.c.h.b16 %v2107
    %v2821 = vunpack.c.l.b16 %v2108
    %v2822 = vunpack.c.h.b16 %v2108
    %v2823 = vunpack.c.l.b16 %v2109
    %v2824 = vunpack.c.h.b16 %v2109
    %v2825 = vunpack.c.l.b16 %v2110
    %v2826 = vunpack.c.h.b16 %v2110
    %v2827 = vunpack.c.l.b16 %v2111
    %v2828 = vunpack.c.h.b16 %v2111
    %v2829 = vunpack.c.l.b16 %v2112
    %v2830 = vunpack.c.h.b16 %v2112
    %v2831 = vunpack.c.l.b16 %v2113
    %v2832 = vunpack.c.h.b16 %v2113
    %v2833 = vunpack.c.l.b16 %v2114
    %v2834 = vunpack.c.h.b16 %v2114
    %v2835 = vunpack.c.l.b16 %v2115
    %v2836 = vunpack.c.h.b16 %v2115
    %v2837 = vunpack.c.l.b16 %v2116
    %v2838 = vunpack.c.h.b16 %v2116
    %v2839 = vunpack.c.l.b16 %v2117
    %v2840 = vunpack.c.h.b16 %v2117
    %v2841 = vunpack.c.l.b16 %v2118
    %v2842 = vunpack.c.h.b16 %v2118
    %v2843 = vunpack.c.l.b16 %v2119
    %v2844 = vunpack.c.h.b16 %v2119
    %v2845 = vunpack.c.l.b16 %v2120
    %v2846 = vunpack.c.h.b16 %v2120
    %v2847 = vunpack.c.l.b16 %v2121
    %v2848 = vunpack.c.h.b16 %v2121
    %v2849 = vunpack.c.l.b16 %v2122
    %v2850 = vunpack.c.h.b16 %v2122
    %v2851 = vunpack.c.l.b16 %v2123
    %v2852 = vunpack.c.h.b16 %v2123
    %v2853 = vunpack.c.l.b16 %v2124
    %v2854 = vunpack.c.h.b16 %v2124
    %v2855 = vunpack.c.l.b16 %v2125
    %v2856 = vunpack.c.h.b16 %v2125
    %v2857 = vunpack.c.l.b16 %v2126
    %v2858 = vunpack.c.h.b16 %v2126
    %v2859 = vunpack.c.l.b16 %v2127
    %v2860 = vunpack.c.h.b16 %v2127
    %v2861 = vunpack.c.l.b16 %v2128
    %v2862 = vunpack.c.h.b16 %v2128
    %v2863 = vunpack.c.l.b16 %v2129
    %v2864 = vunpack.c.h.b16 %v2129
    %v2865 = vunpack.c.l.b16 %v2130
    %v2866 = vunpack.c.h.b16 %v2130
    %v2867 = vunpack.c.l.b16 %v2131
    %v2868 = vunpack.c.h.b16 %v2131
    %v2869 = vunpack.c.l.b16 %v2132
    %v2870 = vunpack.c.h.b16 %v2132
    %v2871 = vunpack.c.l.b16 %v2133
    %v2872 = vunpack.c.h.b16 %v2133
    %v2873 = vunpack.c.l.b16 %v2134
    %v2874 = vunpack.c.h.b16 %v2134
    %v2875 = vunpack.c.l.b16 %v2135
    %v2876 = vunpack.c.h.b16 %v2135
    %v2877 = vunpack.c.l.b16 %v2136
    %v2878 = vunpack.c.h.b16 %v2136
    %v2879 = vunpack.c.l.b16 %v2137
    %v2880 = vunpack.c.h.b16 %v2137
    %v2881 = vunpack.c.l.b16 %v2138
    %v2882 = vunpack.c.h.b16 %v2138
    %v2883 = vunpack.c.l.b16 %v2139
    %v2884 = vunpack.c.h.b16 %v2139
    %v2885 = vunpack.c.l.b16 %v2140
    %v2886 = vunpack.c.h.b16 %v2140
    %v2887 = vunpack.c.l.b16 %v2141
    %v2888 = vunpack.c.h.b16 %v2141
    %v2889 = vunpack.c.l.b16 %v2142
    %v2890 = vunpack.c.h.b16 %v2142
    %v2891 = vunpack.c.l.b16 %v2143
    %v2892 = vunpack.c.h.b16 %v2143
    %v2893 = vunpack.c.l.b16 %v2144
    %v2894 = vunpack.c.h.b16 %v2144
    %v2895 = vunpack.c.l.b16 %v2145
    %v2896 = vunpack.c.h.b16 %v2145
    %v2897 = vunpack.c.l.b16 %v2146
    %v2898 = vunpack.c.h.b16 %v2146
    %v2899 = vunpack.c.l.b16 %v2147
    %v2900 = vunpack.c.h.b16 %v2147
    %v2901 = vunpack.c.l.b16 %v2148
    %v2902 = vunpack.c.h.b16 %v2148
    %v2903 = vunpack.c.l.b16 %v2149
    %v2904 = vunpack.c.h.b16 %v2149
    %v2905 = vunpack.c.l.b16 %v2150
    %v2906 = vunpack.c.h.b16 %v2150
    %v2907 = vunpack.c.l.b16 %v2151
    %v2908 = vunpack.c.h.b16 %v2151
    %v2909 = vunpack.c.l.b16 %v2152
    %v2910 = vunpack.c.h.b16 %v2152
    %v2911 = vunpack.c.l.b16 %v2153
    %v2912 = vunpack.c.h.b16 %v2153
    %v2913 = vunpack.c.l.b16 %v2154
    %v2914 = vunpack.c.h.b16 %v2154
    %v2915 = vunpack.c.l.b16 %v2155
    %v2916 = vunpack.c.h.b16 %v2155
    %v2917 = vunpack.c.l.b16 %v2156
    %v2918 = vunpack.c.h.b16 %v2156
    %v2919 = vunpack.c.l.b16 %v2157
    %v2920 = vunpack.c.h.b16 %v2157
    %v2921 = vunpack.c.l.b16 %v2158
    %v2922 = vunpack.c.h.b16 %v2158
    %v2923 = vunpack.c.l.b16 %v2159
    %v2924 = vunpack.c.h.b16 %v2159
    %v2925 = vunpack.c.l.b16 %v2160
    %v2926 = vunpack.c.h.b16 %v2160
    %v2927 = vunpack.c.l.b16 %v2161
    %v2928 = vunpack.c.h.b16 %v2161
    %v2929 = vunpack.c.l.b16 %v2162
    %v2930 = vunpack.c.h.b16 %v2162
    %v2931 = vunpack.c.l.b16 %v2163
    %v2932 = vunpack.c.h.b16 %v2163
    %v2933 = vunpack.c.l.b16 %v2164
    %v2934 = vunpack.c.h.b16 %v2164
    %v2935 = vunpack.c.l.b16 %v2165
    %v2936 = vunpack.c.h.b16 %v2165
    %v2937 = vunpack.c.l.b16 %v2166
    %v2938 = vunpack.c.h.b16 %v2166
    %v2939 = vunpack.c.l.b16 %v2167
    %v2940 = vunpack.c.h.b16 %v2167
    %v2941 = vunpack.c.l.b16 %v2168
    %v2942 = vunpack.c.h.b16 %v2168
    %v2943 = vunpack.c.l.b16 %v2169
    %v2944 = vunpack.c.h.b16 %v2169
    %v2945 = vunpack.c.l.b16 %v2170
    %v2946 = vunpack.c.h.b16 %v2170
    %v2947 = vunpack.c.l.b16 %v2171
    %v2948 = vunpack.c.h.b16 %v2171
    %v2949 = vunpack.c.l.b16 %v2172
    %v2950 = vunpack.c.h.b16 %v2172
    %v2951 = vpack.c.b16 %v2443, %v2439
    %v2952 = vpack.c.b16 %v2444, %v2440
    %v2953 = vpack.c.b16 %v2445, %v2441
    %v2954 = vpack.c.b16 %v2446, %v2442
    %v2955 = vpack.c.b16 %v2451, %v2447
    %v2956 = vpack.c.b16 %v2452, %v2448
    %v2957 = vpack.c.b16 %v2453, %v2449
    %v2958 = vpack.c.b16 %v2454, %v2450
    %v2959 = vpack.c.b16 %v2459, %v2455
    %v2960 = vpack.c.b16 %v2460, %v2456
    %v2961 = vpack.c.b16 %v2461, %v2457
    %v2962 = vpack.c.b16 %v2462, %v2458
    %v2963 = vpack.c.b16 %v2467, %v2463
    %v2964 = vpack.c.b16 %v2468, %v2464
    %v2965 = vpack.c.b16 %v2469, %v2465
    %v2966 = vpack.c.b16 %v2470, %v2466
    %v2967 = vpack.c.b16 %v2475, %v2471
    %v2968 = vpack.c.b16 %v2476, %v2472
    %v2969 = vpack.c.b16 %v2477, %v2473
    %v2970 = vpack.c.b16 %v2478, %v2474
    %v2971 = vpack.c.b16 %v2483, %v2479
    %v2972 = vpack.c.b16 %v2484, %v2480
    %v2973 = vpack.c.b16 %v2485, %v2481
    %v2974 = vpack.c.b16 %v2486, %v2482
    %v2975 = vpack.c.b16 %v2491, %v2487
    %v2976 = vpack.c.b16 %v2492, %v2488
    %v2977 = vpack.c.b16 %v2493, %v2489
    %v2978 = vpack.c.b16 %v2494, %v2490
    %v2979 = vpack.c.b16 %v2499, %v2495
    %v2980 = vpack.c.b16 %v2500, %v2496
    %v2981 = vpack.c.b16 %v2501, %v2497
    %v2982 = vpack.c.b16 %v2502, %v2498
    %v2983 = vpack.c.b16 %v2507, %v2503
    %v2984 = vpack.c.b16 %v2508, %v2504
    %v2985 = vpack.c.b16 %v2509, %v2505
    %v2986 = vpack.c.b16 %v2510, %v2506
    %v2987 = vpack.c.b16 %v2515, %v2511
    %v2988 = vpack.c.b16 %v2516, %v2512
    %v2989 = vpack.c.b16 %v2517, %v2513
    %v2990 = vpack.c.b16 %v2518, %v2514
    %v2991 = vpack.c.b16 %v2523, %v2519
    %v2992 = vpack.c.b16 %v2524, %v2520
    %v2993 = vpack.c.b16 %v2525, %v2521
    %v2994 = vpack.c.b16 %v2526, %v2522
    %v2995 = vpack.c.b16 %v2531, %v2527
    %v2996 = vpack.c.b16 %v2532, %v2528
    %v2997 = vpack.c.b16 %v2533, %v2529
    %v2998 = vpack.c.b16 %v2534, %v2530
    %v2999 = vpack.c.b16 %v2539, %v2535
    %v3000 = vpack.c.b16 %v2540, %v2536
    %v3001 = vpack.c.b16 %v2541, %v2537
    %v3002 = vpack.c.b16 %v2542, %v2538
    %v3003 = vpack.c.b16 %v2547, %v2543
    %v3004 = vpack.c.b16 %v2548, %v2544
    %v3005 = vpack.c.b16 %v2549, %v2545
    %v3006 = vpack.c.b16 %v2550, %v2546
    %v3007 = vpack.c.b16 %v2555, %v2551
    %v3008 = vpack.c.b16 %v2556, %v2552
    %v3009 = vpack.c.b16 %v2557, %v2553
    %v3010 = vpack.c.b16 %v2558, %v2554
    %v3011 = vpack.c.b16 %v2563, %v2559
    %v3012 = vpack.c.b16 %v2564, %v2560
    %v3013 = vpack.c.b16 %v2565, %v2561
    %v3014 = vpack.c.b16 %v2566, %v2562
    %v3015 = vpack.c.b16 %v2571, %v2567
    %v3016 = vpack.c.b16 %v2572, %v2568
    %v3017 = vpack.c.b16 %v2573, %v2569
    %v3018 = vpack.c.b16 %v2574, %v2570
    %v3019 = vpack.c.b16 %v2579, %v2575
    %v3020 = vpack.c.b16 %v2580, %v2576
    %v3021 = vpack.c.b16 %v2581, %v2577
    %v3022 = vpack.c.b16 %v2582, %v2578
    %v3023 = vpack.c.b16 %v2587, %v2583
    %v3024 = vpack.c.b16 %v2588, %v2584
    %v3025 = vpack.c.b16 %v2589, %v2585
    %v3026 = vpack.c.b16 %v2590, %v2586
    %v3027 = vpack.c.b16 %v2595, %v2591
    %v3028 = vpack.c.b16 %v2596, %v2592
    %v3029 = vpack.c.b16 %v2597, %v2593
    %v3030 = vpack.c.b16 %v2598, %v2594
    %v3031 = vpack.c.b16 %v2603, %v2599
    %v3032 = vpack.c.b16 %v2604, %v2600
    %v3033 = vpack.c.b16 %v2605, %v2601
    %v3034 = vpack.c.b16 %v2606, %v2602
    %v3035 = vpack.c.b16 %v2611, %v2607
    %v3036 = vpack.c.b16 %v2612, %v2608
    %v3037 = vpack.c.b16 %v2613, %v2609
    %v3038 = vpack.c.b16 %v2614, %v2610
    %v3039 = vpack.c.b16 %v2619, %v2615
    %v3040 = vpack.c.b16 %v2620, %v2616
    %v3041 = vpack.c.b16 %v2621, %v2617
    %v3042 = vpack.c.b16 %v2622, %v2618
    %v3043 = vpack.c.b16 %v2627, %v2623
    %v3044 = vpack.c.b16 %v2628, %v2624
    %v3045 = vpack.c.b16 %v2629, %v2625
    %v3046 = vpack.c.b16 %v2630, %v2626
    %v3047 = vpack.c.b16 %v2635, %v2631
    %v3048 = vpack.c.b16 %v2636, %v2632
    %v3049 = vpack.c.b16 %v2637, %v2633
    %v3050 = vpack.c.b16 %v2638, %v2634
    %v3051 = vpack.c.b16 %v2643, %v2639
    %v3052 = vpack.c.b16 %v2644, %v2640
    %v3053 = vpack.c.b16 %v2645, %v2641
    %v3054 = vpack.c.b16 %v2646, %v2642
    %v3055 = vpack.c.b16 %v2651, %v2647
    %v3056 = vpack.c.b16 %v2652, %v2648
    %v3057 = vpack.c.b16 %v2653, %v2649
    %v3058 = vpack.c.b16 %v2654, %v2650
    %v3059 = vpack.c.b16 %v2659, %v2655
    %v3060 = vpack.c.b16 %v2660, %v2656
    %v3061 = vpack.c.b16 %v2661, %v2657
    %v3062 = vpack.c.b16 %v2662, %v2658
    %v3063 = vpack.c.b16 %v2667, %v2663
    %v3064 = vpack.c.b16 %v2668, %v2664
    %v3065 = vpack.c.b16 %v2669, %v2665
    %v3066 = vpack.c.b16 %v2670, %v2666
    %v3067 = vpack.c.b16 %v2675, %v2671
    %v3068 = vpack.c.b16 %v2676, %v2672
    %v3069 = vpack.c.b16 %v2677, %v2673
    %v3070 = vpack.c.b16 %v2678, %v2674
    %v3071 = vpack.c.b16 %v2683, %v2679
    %v3072 = vpack.c.b16 %v2684, %v2680
    %v3073 = vpack.c.b16 %v2685, %v2681
    %v3074 = vpack.c.b16 %v2686, %v2682
    %v3075 = vpack.c.b16 %v2691, %v2687
    %v3076 = vpack.c.b16 %v2692, %v2688
    %v3077 = vpack.c.b16 %v2693, %v2689
    %v3078 = vpack.c.b16 %v2694, %v2690
    %v3079 = vpack.c.b16 %v2699, %v2695
    %v3080 = vpack.c.b16 %v2700, %v2696
    %v3081 = vpack.c.b16 %v2701, %v2697
    %v3082 = vpack.c.b16 %v2702, %v2698
    %v3083 = vpack.c.b16 %v2707, %v2703
    %v3084 = vpack.c.b16 %v2708, %v2704
    %v3085 = vpack.c.b16 %v2709, %v2705
    %v3086 = vpack.c.b16 %v2710, %v2706
    %v3087 = vpack.c.b16 %v2715, %v2711
    %v3088 = vpack.c.b16 %v2716, %v2712
    %v3089 = vpack.c.b16 %v2717, %v2713
    %v3090 = vpack.c.b16 %v2718, %v2714
    %v3091 = vpack.c.b16 %v2723, %v2719
    %v3092 = vpack.c.b16 %v2724, %v2720
    %v3093 = vpack.c.b16 %v2725, %v2721
    %v3094 = vpack.c.b16 %v2726, %v2722
    %v3095 = vpack.c.b16 %v2731, %v2727
    %v3096 = vpack.c.b16 %v2732, %v2728
    %v3097 = vpack.c.b16 %v2733, %v2729
    %v3098 = vpack.c.b16 %v2734, %v2730
    %v3099 = vpack.c.b16 %v2739, %v2735
    %v3100 = vpack.c.b16 %v2740, %v2736
    %v3101 = vpack.c.b16 %v2741, %v2737
    %v3102 = vpack.c.b16 %v2742, %v2738
    %v3103 = vpack.c.b16 %v2747, %v2743
    %v3104 = vpack.c.b16 %v2748, %v2744
    %v3105 = vpack.c.b16 %v2749, %v2745
    %v3106 = vpack.c.b16 %v2750, %v2746
    %v3107 = vpack.c.b16 %v2755, %v2751
    %v3108 = vpack.c.b16 %v2756, %v2752
    %v3109 = vpack.c.b16 %v2757, %v2753
    %v3110 = vpack.c.b16 %v2758, %v2754
    %v3111 = vpack.c.b16 %v2763, %v2759
    %v3112 = vpack.c.b16 %v2764, %v2760
    %v3113 = vpack.c.b16 %v2765, %v2761
    %v3114 = vpack.c.b16 %v2766, %v2762
    %v3115 = vpack.c.b16 %v2771, %v2767
    %v3116 = vpack.c.b16 %v2772, %v2768
    %v3117 = vpack.c.b16 %v2773, %v2769
    %v3118 = vpack.c.b16 %v2774, %v2770
    %v3119 = vpack.c.b16 %v2779, %v2775
    %v3120 = vpack.c.b16 %v2780, %v2776
    %v3121 = vpack.c.b16 %v2781, %v2777
    %v3122 = vpack.c.b16 %v2782, %v2778
    %v3123 = vpack.c.b16 %v2787, %v2783
    %v3124 = vpack.c.b16 %v2788, %v2784
    %v3125 = vpack.c.b16 %v2789, %v2785
    %v3126 = vpack.c.b16 %v2790, %v2786
    %v3127 = vpack.c.b16 %v2795, %v2791
    %v3128 = vpack.c.b16 %v2796, %v2792
    %v3129 = vpack.c.b16 %v2797, %v2793
    %v3130 = vpack.c.b16 %v2798, %v2794
    %v3131 = vpack.c.b16 %v2803, %v2799
    %v3132 = vpack.c.b16 %v2804, %v2800
    %v3133 = vpack.c.b16 %v2805, %v2801
    %v3134 = vpack.c.b16 %v2806, %v2802
    %v3135 = vpack.c.b16 %v2811, %v2807
    %v3136 = vpack.c.b16 %v2812, %v2808
    %v3137 = vpack.c.b16 %v2813, %v2809
    %v3138 = vpack.c.b16 %v2814, %v2810
    %v3139 = vpack.c.b16 %v2819, %v2815
    %v3140 = vpack.c.b16 %v2820, %v2816
    %v3141 = vpack.c.b16 %v2821, %v2817
    %v3142 = vpack.c.b16 %v2822, %v2818
    %v3143 = vpack.c.b16 %v2827, %v2823
    %v3144 = vpack.c.b16 %v2828, %v2824
    %v3145 = vpack.c.b16 %v2829, %v2825
    %v3146 = vpack.c.b16 %v2830, %v2826
    %v3147 = vpack.c.b16 %v2835, %v2831
    %v3148 = vpack.c.b16 %v2836, %v2832
    %v3149 = vpack.c.b16 %v2837, %v2833
    %v3150 = vpack.c.b16 %v2838, %v2834
    %v3151 = vpack.c.b16 %v2843, %v2839
    %v3152 = vpack.c.b16 %v2844, %v2840
    %v3153 = vpack.c.b16 %v2845, %v2841
    %v3154 = vpack.c.b16 %v2846, %v2842
    %v3155 = vpack.c.b16 %v2851, %v2847
    %v3156 = vpack.c.b16 %v2852, %v2848
    %v3157 = vpack.c.b16 %v2853, %v2849
    %v3158 = vpack.c.b16 %v2854, %v2850
    %v3159 = vpack.c.b16 %v2859, %v2855
    %v3160 = vpack.c.b16 %v2860, %v2856
    %v3161 = vpack.c.b16 %v2861, %v2857
    %v3162 = vpack.c.b16 %v2862, %v2858
    %v3163 = vpack.c.b16 %v2867, %v2863
    %v3164 = vpack.c.b16 %v2868, %v2864
    %v3165 = vpack.c.b16 %v2869, %v2865
    %v3166 = vpack.c.b16 %v2870, %v2866
    %v3167 = vpack.c.b16 %v2875, %v2871
    %v3168 = vpack.c.b16 %v2876, %v2872
    %v3169 = vpack.c.b16 %v2877, %v2873
    %v3170 = vpack.c.b16 %v2878, %v2874
    %v3171 = vpack.c.b16 %v2883, %v2879
    %v3172 = vpack.c.b16 %v2884, %v2880
    %v3173 = vpack.c.b16 %v2885, %v2881
    %v3174 = vpack.c.b16 %v2886, %v2882
    %v3175 = vpack.c.b16 %v2891, %v2887
    %v3176 = vpack.c.b16 %v2892, %v2888
    %v3177 = vpack.c.b16 %v2893, %v2889
    %v3178 = vpack.c.b16 %v2894, %v2890
    %v3179 = vpack.c.b16 %v2899, %v2895
    %v3180 = vpack.c.b16 %v2900, %v2896
    %v3181 = vpack.c.b16 %v2901, %v2897
    %v3182 = vpack.c.b16 %v2902, %v2898
    %v3183 = vpack.c.b16 %v2907, %v2903
    %v3184 = vpack.c.b16 %v2908, %v2904
    %v3185 = vpack.c.b16 %v2909, %v2905
    %v3186 = vpack.c.b16 %v2910, %v2906
    %v3187 = vpack.c.b16 %v2915, %v2911
    %v3188 = vpack.c.b16 %v2916, %v2912
    %v3189 = vpack.c.b16 %v2917, %v2913
    %v3190 = vpack.c.b16 %v2918, %v2914
    %v3191 = vpack.c.b16 %v2923, %v2919
    %v3192 = vpack.c.b16 %v2924, %v2920
    %v3193 = vpack.c.b16 %v2925, %v2921
    %v3194 = vpack.c.b16 %v2926, %v2922
    %v3195 = vpack.c.b16 %v2931, %v2927
    %v3196 = vpack.c.b16 %v2932, %v2928
    %v3197 = vpack.c.b16 %v2933, %v2929
    %v3198 = vpack.c.b16 %v2934, %v2930
    %v3199 = vpack.c.b16 %v2939, %v2935
    %v3200 = vpack.c.b16 %v2940, %v2936
    %v3201 = vpack.c.b16 %v2941, %v2937
    %v3202 = vpack.c.b16 %v2942, %v2938
    %v3203 = vpack.c.b16 %v2947, %v2943
    %v3204 = vpack.c.b16 %v2948, %v2944
    %v3205 = vpack.c.b16 %v2949, %v2945
    %v3206 = vpack.c.b16 %v2950, %v2946
    %3463 = vmatpush.bf16.msra.mxu0 %v2979
    %3464 = vmatpush.bf16.msra.mxu0 %v2975
    %3465 = vmatpush.bf16.msra.mxu0 %v2971
    %3466 = vmatpush.bf16.msra.mxu0 %v2967
    %3467 = vmatpush.bf16.msra.mxu0 %v2963
    %3468 = vmatpush.bf16.msra.mxu0 %v2959
    %3469 = vmatpush.bf16.msra.mxu0 %v2955
    %3470 = vmatpush.bf16.msra.mxu0 %v2951
    %3471 = vmatmul.bf16.gmra.mxu0 %v1909
    %v3472 = vpop.f32.mrf.mxu0
    %v3473 = vadd.f32 %v2175, %v3472
    %v3474 = vpop.f32.mrf.mxu0
    %3475 = vdwg.mxu0
    %3476 = vmatpush.bf16.msra.mxu0 %v3011
    %3477 = vmatpush.bf16.msra.mxu0 %v3007
    %3478 = vmatpush.bf16.msra.mxu0 %v3003
    %3479 = vmatpush.bf16.msra.mxu0 %v2999
    %3480 = vmatpush.bf16.msra.mxu0 %v2995
    %3481 = vmatpush.bf16.msra.mxu0 %v2991
    %3482 = vmatpush.bf16.msra.mxu0 %v2987
    %3483 = vmatpush.bf16.msra.mxu0 %v2983
    %3484 = vmatmul.bf16.gmra.mxu0 %v1910
    %v3485 = vpop.f32.mrf.mxu0
    %v3486 = vadd.f32 %v3473, %v3485
    %v3487 = vpop.f32.mrf.mxu0
    %3488 = vdwg.mxu0
    %3489 = vmatpush.bf16.msra.mxu0 %v3043
    %3490 = vmatpush.bf16.msra.mxu0 %v3039
    %3491 = vmatpush.bf16.msra.mxu0 %v3035
    %3492 = vmatpush.bf16.msra.mxu0 %v3031
    %3493 = vmatpush.bf16.msra.mxu0 %v3027
    %3494 = vmatpush.bf16.msra.mxu0 %v3023
    %3495 = vmatpush.bf16.msra.mxu0 %v3019
    %3496 = vmatpush.bf16.msra.mxu0 %v3015
    %3497 = vmatmul.bf16.gmra.mxu0 %v1911
    %v3498 = vpop.f32.mrf.mxu0
    %v3499 = vadd.f32 %v3486, %v3498
    %v3500 = vpop.f32.mrf.mxu0
    %3501 = vdwg.mxu0
    %3502 = vmatpush.bf16.msra.mxu0 %v3075
    %3503 = vmatpush.bf16.msra.mxu0 %v3071
    %3504 = vmatpush.bf16.msra.mxu0 %v3067
    %3505 = vmatpush.bf16.msra.mxu0 %v3063
    %3506 = vmatpush.bf16.msra.mxu0 %v3059
    %3507 = vmatpush.bf16.msra.mxu0 %v3055
    %3508 = vmatpush.bf16.msra.mxu0 %v3051
    %3509 = vmatpush.bf16.msra.mxu0 %v3047
    %3510 = vmatmul.bf16.gmra.mxu0 %v1912
    %v3511 = vpop.f32.mrf.mxu0
    %v3512 = vadd.f32 %v3499, %v3511
    %v3513 = vpop.f32.mrf.mxu0
    %3514 = vdwg.mxu0
    %3515 = vmatpush.bf16.msra.mxu0 %v3107
    %3516 = vmatpush.bf16.msra.mxu0 %v3103
    %3517 = vmatpush.bf16.msra.mxu0 %v3099
    %3518 = vmatpush.bf16.msra.mxu0 %v3095
    %3519 = vmatpush.bf16.msra.mxu0 %v3091
    %3520 = vmatpush.bf16.msra.mxu0 %v3087
    %3521 = vmatpush.bf16.msra.mxu0 %v3083
    %3522 = vmatpush.bf16.msra.mxu0 %v3079
    %3523 = vmatmul.bf16.gmra.mxu0 %v1913
    %v3524 = vpop.f32.mrf.mxu0
    %v3525 = vadd.f32 %v3512, %v3524
    %v3526 = vpop.f32.mrf.mxu0
    %3527 = vdwg.mxu0
    %3528 = vmatpush.bf16.msra.mxu0 %v3139
    %3529 = vmatpush.bf16.msra.mxu0 %v3135
    %3530 = vmatpush.bf16.msra.mxu0 %v3131
    %3531 = vmatpush.bf16.msra.mxu0 %v3127
    %3532 = vmatpush.bf16.msra.mxu0 %v3123
    %3533 = vmatpush.bf16.msra.mxu0 %v3119
    %3534 = vmatpush.bf16.msra.mxu0 %v3115
    %3535 = vmatpush.bf16.msra.mxu0 %v3111
    %3536 = vmatmul.bf16.gmra.mxu0 %v1914
    %v3537 = vpop.f32.mrf.mxu0
    %v3538 = vadd.f32 %v3525, %v3537
    %v3539 = vpop.f32.mrf.mxu0
    %3540 = vdwg.mxu0
    %3541 = vmatpush.bf16.msra.mxu0 %v3171
    %3542 = vmatpush.bf16.msra.mxu0 %v3167
    %3543 = vmatpush.bf16.msra.mxu0 %v3163
    %3544 = vmatpush.bf16.msra.mxu0 %v3159
    %3545 = vmatpush.bf16.msra.mxu0 %v3155
    %3546 = vmatpush.bf16.msra.mxu0 %v3151
    %3547 = vmatpush.bf16.msra.mxu0 %v3147
    %3548 = vmatpush.bf16.msra.mxu0 %v3143
    %3549 = vmatmul.bf16.gmra.mxu0 %v1915
    %v3550 = vpop.f32.mrf.mxu0
    %v3551 = vadd.f32 %v3538, %v3550
    %v3552 = vpop.f32.mrf.mxu0
    %3553 = vdwg.mxu0
    %3554 = vmatpush.bf16.msra.mxu0 %v3203
    %3555 = vmatpush.bf16.msra.mxu0 %v3199
    %3556 = vmatpush.bf16.msra.mxu0 %v3195
    %3557 = vmatpush.bf16.msra.mxu0 %v3191
    %3558 = vmatpush.bf16.msra.mxu0 %v3187
    %3559 = vmatpush.bf16.msra.mxu0 %v3183
    %3560 = vmatpush.bf16.msra.mxu0 %v3179
    %3561 = vmatpush.bf16.msra.mxu0 %v3175
    %3562 = vmatmul.bf16.gmra.mxu0 %v1916
    %v3563 = vpop.f32.mrf.mxu0
    %v3564 = vadd.f32 %v3551, %v3563
    %v3565 = vpop.f32.mrf.mxu0
    %3566 = vdwg.mxu0
    %3567 = vmatpush.bf16.msra.mxu0 %v2980
    %3568 = vmatpush.bf16.msra.mxu0 %v2976
    %3569 = vmatpush.bf16.msra.mxu0 %v2972
    %3570 = vmatpush.bf16.msra.mxu0 %v2968
    %3571 = vmatpush.bf16.msra.mxu0 %v2964
    %3572 = vmatpush.bf16.msra.mxu0 %v2960
    %3573 = vmatpush.bf16.msra.mxu0 %v2956
    %3574 = vmatpush.bf16.msra.mxu0 %v2952
    %3575 = vmatmul.bf16.gmra.mxu0 %v1909
    %v3576 = vpop.f32.mrf.mxu0
    %v3577 = vadd.f32 %v2176, %v3576
    %v3578 = vpop.f32.mrf.mxu0
    %3579 = vdwg.mxu0
    %3580 = vmatpush.bf16.msra.mxu0 %v3012
    %3581 = vmatpush.bf16.msra.mxu0 %v3008
    %3582 = vmatpush.bf16.msra.mxu0 %v3004
    %3583 = vmatpush.bf16.msra.mxu0 %v3000
    %3584 = vmatpush.bf16.msra.mxu0 %v2996
    %3585 = vmatpush.bf16.msra.mxu0 %v2992
    %3586 = vmatpush.bf16.msra.mxu0 %v2988
    %3587 = vmatpush.bf16.msra.mxu0 %v2984
    %3588 = vmatmul.bf16.gmra.mxu0 %v1910
    %v3589 = vpop.f32.mrf.mxu0
    %v3590 = vadd.f32 %v3577, %v3589
    %v3591 = vpop.f32.mrf.mxu0
    %3592 = vdwg.mxu0
    %3593 = vmatpush.bf16.msra.mxu0 %v3044
    %3594 = vmatpush.bf16.msra.mxu0 %v3040
    %3595 = vmatpush.bf16.msra.mxu0 %v3036
    %3596 = vmatpush.bf16.msra.mxu0 %v3032
    %3597 = vmatpush.bf16.msra.mxu0 %v3028
    %3598 = vmatpush.bf16.msra.mxu0 %v3024
    %3599 = vmatpush.bf16.msra.mxu0 %v3020
    %3600 = vmatpush.bf16.msra.mxu0 %v3016
    %3601 = vmatmul.bf16.gmra.mxu0 %v1911
    %v3602 = vpop.f32.mrf.mxu0
    %v3603 = vadd.f32 %v3590, %v3602
    %v3604 = vpop.f32.mrf.mxu0
    %3605 = vdwg.mxu0
    %3606 = vmatpush.bf16.msra.mxu0 %v3076
    %3607 = vmatpush.bf16.msra.mxu0 %v3072
    %3608 = vmatpush.bf16.msra.mxu0 %v3068
    %3609 = vmatpush.bf16.msra.mxu0 %v3064
    %3610 = vmatpush.bf16.msra.mxu0 %v3060
    %3611 = vmatpush.bf16.msra.mxu0 %v3056
    %3612 = vmatpush.bf16.msra.mxu0 %v3052
    %3613 = vmatpush.bf16.msra.mxu0 %v3048
    %3614 = vmatmul.bf16.gmra.mxu0 %v1912
    %v3615 = vpop.f32.mrf.mxu0
    %v3616 = vadd.f32 %v3603, %v3615
    %v3617 = vpop.f32.mrf.mxu0
    %3618 = vdwg.mxu0
    %3619 = vmatpush.bf16.msra.mxu0 %v3108
    %3620 = vmatpush.bf16.msra.mxu0 %v3104
    %3621 = vmatpush.bf16.msra.mxu0 %v3100
    %3622 = vmatpush.bf16.msra.mxu0 %v3096
    %3623 = vmatpush.bf16.msra.mxu0 %v3092
    %3624 = vmatpush.bf16.msra.mxu0 %v3088
    %3625 = vmatpush.bf16.msra.mxu0 %v3084
    %3626 = vmatpush.bf16.msra.mxu0 %v3080
    %3627 = vmatmul.bf16.gmra.mxu0 %v1913
    %v3628 = vpop.f32.mrf.mxu0
    %v3629 = vadd.f32 %v3616, %v3628
    %v3630 = vpop.f32.mrf.mxu0
    %3631 = vdwg.mxu0
    %3632 = vmatpush.bf16.msra.mxu0 %v3140
    %3633 = vmatpush.bf16.msra.mxu0 %v3136
    %3634 = vmatpush.bf16.msra.mxu0 %v3132
    %3635 = vmatpush.bf16.msra.mxu0 %v3128
    %3636 = vmatpush.bf16.msra.mxu0 %v3124
    %3637 = vmatpush.bf16.msra.mxu0 %v3120
    %3638 = vmatpush.bf16.msra.mxu0 %v3116
    %3639 = vmatpush.bf16.msra.mxu0 %v3112
    %3640 = vmatmul.bf16.gmra.mxu0 %v1914
    %v3641 = vpop.f32.mrf.mxu0
    %v3642 = vadd.f32 %v3629, %v3641
    %v3643 = vpop.f32.mrf.mxu0
    %3644 = vdwg.mxu0
    %3645 = vmatpush.bf16.msra.mxu0 %v3172
    %3646 = vmatpush.bf16.msra.mxu0 %v3168
    %3647 = vmatpush.bf16.msra.mxu0 %v3164
    %3648 = vmatpush.bf16.msra.mxu0 %v3160
    %3649 = vmatpush.bf16.msra.mxu0 %v3156
    %3650 = vmatpush.bf16.msra.mxu0 %v3152
    %3651 = vmatpush.bf16.msra.mxu0 %v3148
    %3652 = vmatpush.bf16.msra.mxu0 %v3144
    %3653 = vmatmul.bf16.gmra.mxu0 %v1915
    %v3654 = vpop.f32.mrf.mxu0
    %v3655 = vadd.f32 %v3642, %v3654
    %v3656 = vpop.f32.mrf.mxu0
    %3657 = vdwg.mxu0
    %3658 = vmatpush.bf16.msra.mxu0 %v3204
    %3659 = vmatpush.bf16.msra.mxu0 %v3200
    %3660 = vmatpush.bf16.msra.mxu0 %v3196
    %3661 = vmatpush.bf16.msra.mxu0 %v3192
    %3662 = vmatpush.bf16.msra.mxu0 %v3188
    %3663 = vmatpush.bf16.msra.mxu0 %v3184
    %3664 = vmatpush.bf16.msra.mxu0 %v3180
    %3665 = vmatpush.bf16.msra.mxu0 %v3176
    %3666 = vmatmul.bf16.gmra.mxu0 %v1916
    %v3667 = vpop.f32.mrf.mxu0
    %v3668 = vadd.f32 %v3655, %v3667
    %v3669 = vpop.f32.mrf.mxu0
    %3670 = vdwg.mxu0
    %3671 = vmatpush.bf16.msra.mxu0 %v2981
    %3672 = vmatpush.bf16.msra.mxu0 %v2977
    %3673 = vmatpush.bf16.msra.mxu0 %v2973
    %3674 = vmatpush.bf16.msra.mxu0 %v2969
    %3675 = vmatpush.bf16.msra.mxu0 %v2965
    %3676 = vmatpush.bf16.msra.mxu0 %v2961
    %3677 = vmatpush.bf16.msra.mxu0 %v2957
    %3678 = vmatpush.bf16.msra.mxu0 %v2953
    %3679 = vmatmul.bf16.gmra.mxu0 %v1909
    %v3680 = vpop.f32.mrf.mxu0
    %v3681 = vadd.f32 %v2177, %v3680
    %v3682 = vpop.f32.mrf.mxu0
    %3683 = vdwg.mxu0
    %3684 = vmatpush.bf16.msra.mxu0 %v3013
    %3685 = vmatpush.bf16.msra.mxu0 %v3009
    %3686 = vmatpush.bf16.msra.mxu0 %v3005
    %3687 = vmatpush.bf16.msra.mxu0 %v3001
    %3688 = vmatpush.bf16.msra.mxu0 %v2997
    %3689 = vmatpush.bf16.msra.mxu0 %v2993
    %3690 = vmatpush.bf16.msra.mxu0 %v2989
    %3691 = vmatpush.bf16.msra.mxu0 %v2985
    %3692 = vmatmul.bf16.gmra.mxu0 %v1910
    %v3693 = vpop.f32.mrf.mxu0
    %v3694 = vadd.f32 %v3681, %v3693
    %v3695 = vpop.f32.mrf.mxu0
    %3696 = vdwg.mxu0
    %3697 = vmatpush.bf16.msra.mxu0 %v3045
    %3698 = vmatpush.bf16.msra.mxu0 %v3041
    %3699 = vmatpush.bf16.msra.mxu0 %v3037
    %3700 = vmatpush.bf16.msra.mxu0 %v3033
    %3701 = vmatpush.bf16.msra.mxu0 %v3029
    %3702 = vmatpush.bf16.msra.mxu0 %v3025
    %3703 = vmatpush.bf16.msra.mxu0 %v3021
    %3704 = vmatpush.bf16.msra.mxu0 %v3017
    %3705 = vmatmul.bf16.gmra.mxu0 %v1911
    %v3706 = vpop.f32.mrf.mxu0
    %v3707 = vadd.f32 %v3694, %v3706
    %v3708 = vpop.f32.mrf.mxu0
    %3709 = vdwg.mxu0
    %3710 = vmatpush.bf16.msra.mxu0 %v3077
    %3711 = vmatpush.bf16.msra.mxu0 %v3073
    %3712 = vmatpush.bf16.msra.mxu0 %v3069
    %3713 = vmatpush.bf16.msra.mxu0 %v3065
    %3714 = vmatpush.bf16.msra.mxu0 %v3061
    %3715 = vmatpush.bf16.msra.mxu0 %v3057
    %3716 = vmatpush.bf16.msra.mxu0 %v3053
    %3717 = vmatpush.bf16.msra.mxu0 %v3049
    %3718 = vmatmul.bf16.gmra.mxu0 %v1912
    %v3719 = vpop.f32.mrf.mxu0
    %v3720 = vadd.f32 %v3707, %v3719
    %v3721 = vpop.f32.mrf.mxu0
    %3722 = vdwg.mxu0
    %3723 = vmatpush.bf16.msra.mxu0 %v3109
    %3724 = vmatpush.bf16.msra.mxu0 %v3105
    %3725 = vmatpush.bf16.msra.mxu0 %v3101
    %3726 = vmatpush.bf16.msra.mxu0 %v3097
    %3727 = vmatpush.bf16.msra.mxu0 %v3093
    %3728 = vmatpush.bf16.msra.mxu0 %v3089
    %3729 = vmatpush.bf16.msra.mxu0 %v3085
    %3730 = vmatpush.bf16.msra.mxu0 %v3081
    %3731 = vmatmul.bf16.gmra.mxu0 %v1913
    %v3732 = vpop.f32.mrf.mxu0
    %v3733 = vadd.f32 %v3720, %v3732
    %v3734 = vpop.f32.mrf.mxu0
    %3735 = vdwg.mxu0
    %3736 = vmatpush.bf16.msra.mxu0 %v3141
    %3737 = vmatpush.bf16.msra.mxu0 %v3137
    %3738 = vmatpush.bf16.msra.mxu0 %v3133
    %3739 = vmatpush.bf16.msra.mxu0 %v3129
    %3740 = vmatpush.bf16.msra.mxu0 %v3125
    %3741 = vmatpush.bf16.msra.mxu0 %v3121
    %3742 = vmatpush.bf16.msra.mxu0 %v3117
    %3743 = vmatpush.bf16.msra.mxu0 %v3113
    %3744 = vmatmul.bf16.gmra.mxu0 %v1914
    %v3745 = vpop.f32.mrf.mxu0
    %v3746 = vadd.f32 %v3733, %v3745
    %v3747 = vpop.f32.mrf.mxu0
    %3748 = vdwg.mxu0
    %3749 = vmatpush.bf16.msra.mxu0 %v3173
    %3750 = vmatpush.bf16.msra.mxu0 %v3169
    %3751 = vmatpush.bf16.msra.mxu0 %v3165
    %3752 = vmatpush.bf16.msra.mxu0 %v3161
    %3753 = vmatpush.bf16.msra.mxu0 %v3157
    %3754 = vmatpush.bf16.msra.mxu0 %v3153
    %3755 = vmatpush.bf16.msra.mxu0 %v3149
    %3756 = vmatpush.bf16.msra.mxu0 %v3145
    %3757 = vmatmul.bf16.gmra.mxu0 %v1915
    %v3758 = vpop.f32.mrf.mxu0
    %v3759 = vadd.f32 %v3746, %v3758
    %v3760 = vpop.f32.mrf.mxu0
    %3761 = vdwg.mxu0
    %3762 = vmatpush.bf16.msra.mxu0 %v3205
    %3763 = vmatpush.bf16.msra.mxu0 %v3201
    %3764 = vmatpush.bf16.msra.mxu0 %v3197
    %3765 = vmatpush.bf16.msra.mxu0 %v3193
    %3766 = vmatpush.bf16.msra.mxu0 %v3189
    %3767 = vmatpush.bf16.msra.mxu0 %v3185
    %3768 = vmatpush.bf16.msra.mxu0 %v3181
    %3769 = vmatpush.bf16.msra.mxu0 %v3177
    %3770 = vmatmul.bf16.gmra.mxu0 %v1916
    %v3771 = vpop.f32.mrf.mxu0
    %v3772 = vadd.f32 %v3759, %v3771
    %v3773 = vpop.f32.mrf.mxu0
    %3774 = vdwg.mxu0
    %3775 = vmatpush.bf16.msra.mxu0 %v2982
    %3776 = vmatpush.bf16.msra.mxu0 %v2978
    %3777 = vmatpush.bf16.msra.mxu0 %v2974
    %3778 = vmatpush.bf16.msra.mxu0 %v2970
    %3779 = vmatpush.bf16.msra.mxu0 %v2966
    %3780 = vmatpush.bf16.msra.mxu0 %v2962
    %3781 = vmatpush.bf16.msra.mxu0 %v2958
    %3782 = vmatpush.bf16.msra.mxu0 %v2954
    %3783 = vmatmul.bf16.gmra.mxu0 %v1909
    %v3784 = vpop.f32.mrf.mxu0
    %v3785 = vadd.f32 %v2178, %v3784
    %v3786 = vpop.f32.mrf.mxu0
    %3787 = vdwg.mxu0
    %3788 = vmatpush.bf16.msra.mxu0 %v3014
    %3789 = vmatpush.bf16.msra.mxu0 %v3010
    %3790 = vmatpush.bf16.msra.mxu0 %v3006
    %3791 = vmatpush.bf16.msra.mxu0 %v3002
    %3792 = vmatpush.bf16.msra.mxu0 %v2998
    %3793 = vmatpush.bf16.msra.mxu0 %v2994
    %3794 = vmatpush.bf16.msra.mxu0 %v2990
    %3795 = vmatpush.bf16.msra.mxu0 %v2986
    %3796 = vmatmul.bf16.gmra.mxu0 %v1910
    %v3797 = vpop.f32.mrf.mxu0
    %v3798 = vadd.f32 %v3785, %v3797
    %v3799 = vpop.f32.mrf.mxu0
    %3800 = vdwg.mxu0
    %3801 = vmatpush.bf16.msra.mxu0 %v3046
    %3802 = vmatpush.bf16.msra.mxu0 %v3042
    %3803 = vmatpush.bf16.msra.mxu0 %v3038
    %3804 = vmatpush.bf16.msra.mxu0 %v3034
    %3805 = vmatpush.bf16.msra.mxu0 %v3030
    %3806 = vmatpush.bf16.msra.mxu0 %v3026
    %3807 = vmatpush.bf16.msra.mxu0 %v3022
    %3808 = vmatpush.bf16.msra.mxu0 %v3018
    %3809 = vmatmul.bf16.gmra.mxu0 %v1911
    %v3810 = vpop.f32.mrf.mxu0
    %v3811 = vadd.f32 %v3798, %v3810
    %v3812 = vpop.f32.mrf.mxu0
    %3813 = vdwg.mxu0
    %3814 = vmatpush.bf16.msra.mxu0 %v3078
    %3815 = vmatpush.bf16.msra.mxu0 %v3074
    %3816 = vmatpush.bf16.msra.mxu0 %v3070
    %3817 = vmatpush.bf16.msra.mxu0 %v3066
    %3818 = vmatpush.bf16.msra.mxu0 %v3062
    %3819 = vmatpush.bf16.msra.mxu0 %v3058
    %3820 = vmatpush.bf16.msra.mxu0 %v3054
    %3821 = vmatpush.bf16.msra.mxu0 %v3050
    %3822 = vmatmul.bf16.gmra.mxu0 %v1912
    %v3823 = vpop.f32.mrf.mxu0
    %v3824 = vadd.f32 %v3811, %v3823
    %v3825 = vpop.f32.mrf.mxu0
    %3826 = vdwg.mxu0
    %3827 = vmatpush.bf16.msra.mxu0 %v3110
    %3828 = vmatpush.bf16.msra.mxu0 %v3106
    %3829 = vmatpush.bf16.msra.mxu0 %v3102
    %3830 = vmatpush.bf16.msra.mxu0 %v3098
    %3831 = vmatpush.bf16.msra.mxu0 %v3094
    %3832 = vmatpush.bf16.msra.mxu0 %v3090
    %3833 = vmatpush.bf16.msra.mxu0 %v3086
    %3834 = vmatpush.bf16.msra.mxu0 %v3082
    %3835 = vmatmul.bf16.gmra.mxu0 %v1913
    %v3836 = vpop.f32.mrf.mxu0
    %v3837 = vadd.f32 %v3824, %v3836
    %v3838 = vpop.f32.mrf.mxu0
    %3839 = vdwg.mxu0
    %3840 = vmatpush.bf16.msra.mxu0 %v3142
    %3841 = vmatpush.bf16.msra.mxu0 %v3138
    %3842 = vmatpush.bf16.msra.mxu0 %v3134
    %3843 = vmatpush.bf16.msra.mxu0 %v3130
    %3844 = vmatpush.bf16.msra.mxu0 %v3126
    %3845 = vmatpush.bf16.msra.mxu0 %v3122
    %3846 = vmatpush.bf16.msra.mxu0 %v3118
    %3847 = vmatpush.bf16.msra.mxu0 %v3114
    %3848 = vmatmul.bf16.gmra.mxu0 %v1914
    %v3849 = vpop.f32.mrf.mxu0
    %v3850 = vadd.f32 %v3837, %v3849
    %v3851 = vpop.f32.mrf.mxu0
    %3852 = vdwg.mxu0
    %3853 = vmatpush.bf16.msra.mxu0 %v3174
    %3854 = vmatpush.bf16.msra.mxu0 %v3170
    %3855 = vmatpush.bf16.msra.mxu0 %v3166
    %3856 = vmatpush.bf16.msra.mxu0 %v3162
    %3857 = vmatpush.bf16.msra.mxu0 %v3158
    %3858 = vmatpush.bf16.msra.mxu0 %v3154
    %3859 = vmatpush.bf16.msra.mxu0 %v3150
    %3860 = vmatpush.bf16.msra.mxu0 %v3146
    %3861 = vmatmul.bf16.gmra.mxu0 %v1915
    %v3862 = vpop.f32.mrf.mxu0
    %v3863 = vadd.f32 %v3850, %v3862
    %v3864 = vpop.f32.mrf.mxu0
    %3865 = vdwg.mxu0
    %3866 = vmatpush.bf16.msra.mxu0 %v3206
    %3867 = vmatpush.bf16.msra.mxu0 %v3202
    %3868 = vmatpush.bf16.msra.mxu0 %v3198
    %3869 = vmatpush.bf16.msra.mxu0 %v3194
    %3870 = vmatpush.bf16.msra.mxu0 %v3190
    %3871 = vmatpush.bf16.msra.mxu0 %v3186
    %3872 = vmatpush.bf16.msra.mxu0 %v3182
    %3873 = vmatpush.bf16.msra.mxu0 %v3178
    %3874 = vmatmul.bf16.gmra.mxu0 %v1916
    %v3875 = vpop.f32.mrf.mxu0
    %v3876 = vadd.f32 %v3863, %v3875
    %v3877 = vpop.f32.mrf.mxu0
    %3878 = vdwg.mxu0
    %vm3879 = vcmp.gt.f32.partialorder %v3564, 20.0
    %vm3880 = vcmp.gt.f32.partialorder %v3668, 20.0
    %vm3881 = vcmp.gt.f32.partialorder %v3772, 20.0
    %vm3882 = vcmp.gt.f32.partialorder %v3876, 20.0
    %v3883 = vmin.f32 %v3564, 20.0
    %v3884 = vmin.f32 %v3668, 20.0
    %v3885 = vmin.f32 %v3772, 20.0
    %v3886 = vmin.f32 %v3876, 20.0
    %v3887 = vmul.f32 %v3883, 1.442695
    %v3888 = vpow.pop %v3887
    %v3889 = vmul.f32 %v3884, 1.442695
    %v3890 = vpow.pop %v3889
    %v3891 = vmul.f32 %v3885, 1.442695
    %v3892 = vpow.pop %v3891
    %v3893 = vmul.f32 %v3886, 1.442695
    %v3894 = vpow.pop %v3893
    %v3895 = vadd.f32 %v3888, 1.0
    %v3896 = vlog2.pop %v3895
    %v3897 = vmul.f32 %v3896, 0.6931472
    %v3898 = vmul.f32 -0.5, %v3888
    %v3899 = vadd.f32 %v3898, 1.0
    %v3900 = vmul.f32 %v3899, %v3888
    %v3901 = vand.u32 2147483647, %v3888
    %vm3902 = vcmp.lt.f32.partialorder %v3901, 0.0004427343
    %v3903 = vsel %vm3902, %v3900, %v3897
    %v3904 = vadd.f32 %v3890, 1.0
    %v3905 = vlog2.pop %v3904
    %v3906 = vmul.f32 %v3905, 0.6931472
    %v3907 = vmul.f32 -0.5, %v3890
    %v3908 = vadd.f32 %v3907, 1.0
    %v3909 = vmul.f32 %v3908, %v3890
    %v3910 = vand.u32 2147483647, %v3890
    %vm3911 = vcmp.lt.f32.partialorder %v3910, 0.0004427343
    %v3912 = vsel %vm3911, %v3909, %v3906
    %v3913 = vadd.f32 %v3892, 1.0
    %v3914 = vlog2.pop %v3913
    %v3915 = vmul.f32 %v3914, 0.6931472
    %v3916 = vmul.f32 -0.5, %v3892
    %v3917 = vadd.f32 %v3916, 1.0
    %v3918 = vmul.f32 %v3917, %v3892
    %v3919 = vand.u32 2147483647, %v3892
    %vm3920 = vcmp.lt.f32.partialorder %v3919, 0.0004427343
    %v3921 = vsel %vm3920, %v3918, %v3915
    %v3922 = vadd.f32 %v3894, 1.0
    %v3923 = vlog2.pop %v3922
    %v3924 = vmul.f32 %v3923, 0.6931472
    %v3925 = vmul.f32 -0.5, %v3894
    %v3926 = vadd.f32 %v3925, 1.0
    %v3927 = vmul.f32 %v3926, %v3894
    %v3928 = vand.u32 2147483647, %v3894
    %vm3929 = vcmp.lt.f32.partialorder %v3928, 0.0004427343
    %v3930 = vsel %vm3929, %v3927, %v3924
    %v3931 = vsel %vm3879, %v3564, %v3903
    %v3932 = vsel %vm3880, %v3668, %v3912
    %v3933 = vsel %vm3881, %v3772, %v3921
    %v3934 = vsel %vm3882, %v3876, %v3930
    %v3935 = vtanh.pop %v3931
    %v3936 = vtanh.pop %v3932
    %v3937 = vtanh.pop %v3933
    %v3938 = vtanh.pop %v3934
    %v3939 = vmul.f32 %v3564, %v3935
    %v3940 = vmul.f32 %v3668, %v3936
    %v3941 = vmul.f32 %v3772, %v3937
    %v3942 = vmul.f32 %v3876, %v3938
    %s3943 = smul.u32 4, 64
    %s3944 = smul.u32 %s3943, 1
    %s3945 = sshll.u32 %s3944, 4
    %3946 = dma.done %s137, %s3945
    %v3947 = vpack.c.bf16 %v3939, %v3939
    %v3948 = vpack.c.bf16 %v3940, %v3940
    %v3949 = vpack.c.bf16 %v3941, %v3941
    %v3950 = vpack.c.bf16 %v3942, %v3942
    %v3951 = vld [vmem:[#allocation4] sm:$0xf]
    %v3952 = vld [vmem:[#allocation4 + $0x4] sm:$0xf]
    %v3953 = vld [vmem:[#allocation4 + $0x8] sm:$0xf]
    %v3954 = vld [vmem:[#allocation4 + $0xc] sm:$0xf]
    %v3955 = vld [vmem:[#allocation4 + $0x10] sm:$0xf]
    %v3956 = vld [vmem:[#allocation4 + $0x14] sm:$0xf]
    %v3957 = vld [vmem:[#allocation4 + $0x18] sm:$0xf]
    %v3958 = vld [vmem:[#allocation4 + $0x1c] sm:$0xf]
    %v3959 = vld [vmem:[#allocation4 + $0x20] sm:$0xf]
    %v3960 = vld [vmem:[#allocation4 + $0x24] sm:$0xf]
    %v3961 = vld [vmem:[#allocation4 + $0x28] sm:$0xf]
    %v3962 = vld [vmem:[#allocation4 + $0x2c] sm:$0xf]
    %v3963 = vld [vmem:[#allocation4 + $0x30] sm:$0xf]
    %v3964 = vld [vmem:[#allocation4 + $0x34] sm:$0xf]
    %v3965 = vld [vmem:[#allocation4 + $0x38] sm:$0xf]
    %v3966 = vld [vmem:[#allocation4 + $0x3c] sm:$0xf]
    %v3967 = vld [vmem:[#allocation4 + $0x40] sm:$0xf]
    %v3968 = vld [vmem:[#allocation4 + $0x44] sm:$0xf]
    %v3969 = vld [vmem:[#allocation4 + $0x48] sm:$0xf]
    %v3970 = vld [vmem:[#allocation4 + $0x4c] sm:$0xf]
    %v3971 = vld [vmem:[#allocation4 + $0x50] sm:$0xf]
    %v3972 = vld [vmem:[#allocation4 + $0x54] sm:$0xf]
    %v3973 = vld [vmem:[#allocation4 + $0x58] sm:$0xf]
    %v3974 = vld [vmem:[#allocation4 + $0x5c] sm:$0xf]
    %v3975 = vld [vmem:[#allocation4 + $0x60] sm:$0xf]
    %v3976 = vld [vmem:[#allocation4 + $0x64] sm:$0xf]
    %v3977 = vld [vmem:[#allocation4 + $0x68] sm:$0xf]
    %v3978 = vld [vmem:[#allocation4 + $0x6c] sm:$0xf]
    %v3979 = vld [vmem:[#allocation4 + $0x70] sm:$0xf]
    %v3980 = vld [vmem:[#allocation4 + $0x74] sm:$0xf]
    %v3981 = vld [vmem:[#allocation4 + $0x78] sm:$0xf]
    %v3982 = vld [vmem:[#allocation4 + $0x7c] sm:$0xf]
    %v3983 = vld [vmem:[#allocation4 + $0x80] sm:$0xf]
    %v3984 = vld [vmem:[#allocation4 + $0x84] sm:$0xf]
    %v3985 = vld [vmem:[#allocation4 + $0x88] sm:$0xf]
    %v3986 = vld [vmem:[#allocation4 + $0x8c] sm:$0xf]
    %v3987 = vld [vmem:[#allocation4 + $0x90] sm:$0xf]
    %v3988 = vld [vmem:[#allocation4 + $0x94] sm:$0xf]
    %v3989 = vld [vmem:[#allocation4 + $0x98] sm:$0xf]
    %v3990 = vld [vmem:[#allocation4 + $0x9c] sm:$0xf]
    %v3991 = vld [vmem:[#allocation4 + $0xa0] sm:$0xf]
    %v3992 = vld [vmem:[#allocation4 + $0xa4] sm:$0xf]
    %v3993 = vld [vmem:[#allocation4 + $0xa8] sm:$0xf]
    %v3994 = vld [vmem:[#allocation4 + $0xac] sm:$0xf]
    %v3995 = vld [vmem:[#allocation4 + $0xb0] sm:$0xf]
    %v3996 = vld [vmem:[#allocation4 + $0xb4] sm:$0xf]
    %v3997 = vld [vmem:[#allocation4 + $0xb8] sm:$0xf]
    %v3998 = vld [vmem:[#allocation4 + $0xbc] sm:$0xf]
    %v3999 = vld [vmem:[#allocation4 + $0xc0] sm:$0xf]
    %v4000 = vld [vmem:[#allocation4 + $0xc4] sm:$0xf]
    %v4001 = vld [vmem:[#allocation4 + $0xc8] sm:$0xf]
    %v4002 = vld [vmem:[#allocation4 + $0xcc] sm:$0xf]
    %v4003 = vld [vmem:[#allocation4 + $0xd0] sm:$0xf]
    %v4004 = vld [vmem:[#allocation4 + $0xd4] sm:$0xf]
    %v4005 = vld [vmem:[#allocation4 + $0xd8] sm:$0xf]
    %v4006 = vld [vmem:[#allocation4 + $0xdc] sm:$0xf]
    %v4007 = vld [vmem:[#allocation4 + $0xe0] sm:$0xf]
    %v4008 = vld [vmem:[#allocation4 + $0xe4] sm:$0xf]
    %v4009 = vld [vmem:[#allocation4 + $0xe8] sm:$0xf]
    %v4010 = vld [vmem:[#allocation4 + $0xec] sm:$0xf]
    %v4011 = vld [vmem:[#allocation4 + $0xf0] sm:$0xf]
    %v4012 = vld [vmem:[#allocation4 + $0xf4] sm:$0xf]
    %v4013 = vld [vmem:[#allocation4 + $0xf8] sm:$0xf]
    %v4014 = vld [vmem:[#allocation4 + $0xfc] sm:$0xf]
    %v4015 = vld [vmem:[%s11] sm:$0x1]
    %v4017 = vperm.slane %v4015, 0
    %v4083 = vunpack.c.l.b16 %v3951
    %v4084 = vunpack.c.l.b16 %v3952
    %v4085 = vunpack.c.l.b16 %v3953
    %v4086 = vunpack.c.l.b16 %v3954
    %v4087 = vunpack.c.l.b16 %v3955
    %v4088 = vunpack.c.l.b16 %v3956
    %v4089 = vunpack.c.l.b16 %v3957
    %v4090 = vunpack.c.l.b16 %v3958
    %v4091 = vunpack.c.l.b16 %v3959
    %v4092 = vunpack.c.l.b16 %v3960
    %v4093 = vunpack.c.l.b16 %v3961
    %v4094 = vunpack.c.l.b16 %v3962
    %v4095 = vunpack.c.l.b16 %v3963
    %v4096 = vunpack.c.l.b16 %v3964
    %v4097 = vunpack.c.l.b16 %v3965
    %v4098 = vunpack.c.l.b16 %v3966
    %v4099 = vunpack.c.l.b16 %v3967
    %v4100 = vunpack.c.l.b16 %v3968
    %v4101 = vunpack.c.l.b16 %v3969
    %v4102 = vunpack.c.l.b16 %v3970
    %v4103 = vunpack.c.l.b16 %v3971
    %v4104 = vunpack.c.l.b16 %v3972
    %v4105 = vunpack.c.l.b16 %v3973
    %v4106 = vunpack.c.l.b16 %v3974
    %v4107 = vunpack.c.l.b16 %v3975
    %v4108 = vunpack.c.l.b16 %v3976
    %v4109 = vunpack.c.l.b16 %v3977
    %v4110 = vunpack.c.l.b16 %v3978
    %v4111 = vunpack.c.l.b16 %v3979
    %v4112 = vunpack.c.l.b16 %v3980
    %v4113 = vunpack.c.l.b16 %v3981
    %v4114 = vunpack.c.l.b16 %v3982
    %v4115 = vunpack.c.l.b16 %v3983
    %v4116 = vunpack.c.l.b16 %v3984
    %v4117 = vunpack.c.l.b16 %v3985
    %v4118 = vunpack.c.l.b16 %v3986
    %v4119 = vunpack.c.l.b16 %v3987
    %v4120 = vunpack.c.l.b16 %v3988
    %v4121 = vunpack.c.l.b16 %v3989
    %v4122 = vunpack.c.l.b16 %v3990
    %v4123 = vunpack.c.l.b16 %v3991
    %v4124 = vunpack.c.l.b16 %v3992
    %v4125 = vunpack.c.l.b16 %v3993
    %v4126 = vunpack.c.l.b16 %v3994
    %v4127 = vunpack.c.l.b16 %v3995
    %v4128 = vunpack.c.l.b16 %v3996
    %v4129 = vunpack.c.l.b16 %v3997
    %v4130 = vunpack.c.l.b16 %v3998
    %v4131 = vunpack.c.l.b16 %v3999
    %v4132 = vunpack.c.l.b16 %v4000
    %v4133 = vunpack.c.l.b16 %v4001
    %v4134 = vunpack.c.l.b16 %v4002
    %v4135 = vunpack.c.l.b16 %v4003
    %v4136 = vunpack.c.l.b16 %v4004
    %v4137 = vunpack.c.l.b16 %v4005
    %v4138 = vunpack.c.l.b16 %v4006
    %v4139 = vunpack.c.l.b16 %v4007
    %v4140 = vunpack.c.l.b16 %v4008
    %v4141 = vunpack.c.l.b16 %v4009
    %v4142 = vunpack.c.l.b16 %v4010
    %v4143 = vunpack.c.l.b16 %v4011
    %v4144 = vunpack.c.l.b16 %v4012
    %v4145 = vunpack.c.l.b16 %v4013
    %v4146 = vunpack.c.l.b16 %v4014
    %v4147 = vpack.c.b16 %v4084, %v4083
    %v4148 = vpack.c.b16 %v4086, %v4085
    %v4149 = vpack.c.b16 %v4088, %v4087
    %v4150 = vpack.c.b16 %v4090, %v4089
    %v4151 = vpack.c.b16 %v4092, %v4091
    %v4152 = vpack.c.b16 %v4094, %v4093
    %v4153 = vpack.c.b16 %v4096, %v4095
    %v4154 = vpack.c.b16 %v4098, %v4097
    %v4155 = vpack.c.b16 %v4100, %v4099
    %v4156 = vpack.c.b16 %v4102, %v4101
    %v4157 = vpack.c.b16 %v4104, %v4103
    %v4158 = vpack.c.b16 %v4106, %v4105
    %v4159 = vpack.c.b16 %v4108, %v4107
    %v4160 = vpack.c.b16 %v4110, %v4109
    %v4161 = vpack.c.b16 %v4112, %v4111
    %v4162 = vpack.c.b16 %v4114, %v4113
    %v4163 = vpack.c.b16 %v4116, %v4115
    %v4164 = vpack.c.b16 %v4118, %v4117
    %v4165 = vpack.c.b16 %v4120, %v4119
    %v4166 = vpack.c.b16 %v4122, %v4121
    %v4167 = vpack.c.b16 %v4124, %v4123
    %v4168 = vpack.c.b16 %v4126, %v4125
    %v4169 = vpack.c.b16 %v4128, %v4127
    %v4170 = vpack.c.b16 %v4130, %v4129
    %v4171 = vpack.c.b16 %v4132, %v4131
    %v4172 = vpack.c.b16 %v4134, %v4133
    %v4173 = vpack.c.b16 %v4136, %v4135
    %v4174 = vpack.c.b16 %v4138, %v4137
    %v4175 = vpack.c.b16 %v4140, %v4139
    %v4176 = vpack.c.b16 %v4142, %v4141
    %v4177 = vpack.c.b16 %v4144, %v4143
    %v4178 = vpack.c.b16 %v4146, %v4145
    %4211 = vmatpush.bf16.msra.mxu0 %v4154
    %4212 = vmatpush.bf16.msra.mxu0 %v4153
    %4213 = vmatpush.bf16.msra.mxu0 %v4152
    %4214 = vmatpush.bf16.msra.mxu0 %v4151
    %4215 = vmatpush.bf16.msra.mxu0 %v4150
    %4216 = vmatpush.bf16.msra.mxu0 %v4149
    %4217 = vmatpush.bf16.msra.mxu0 %v4148
    %4218 = vmatpush.bf16.msra.mxu0 %v4147
    %4219 = vmatmul.bf16.gmra.mxu0 %v3947
    %v4220 = vpop.f32.mrf.mxu0
    %v4221 = vadd.f32 %v4017, %v4220
    %v4222 = vpop.f32.mrf.mxu0
    %4223 = vdwg.mxu0
    %4224 = vmatpush.bf16.msra.mxu0 %v4162
    %4225 = vmatpush.bf16.msra.mxu0 %v4161
    %4226 = vmatpush.bf16.msra.mxu0 %v4160
    %4227 = vmatpush.bf16.msra.mxu0 %v4159
    %4228 = vmatpush.bf16.msra.mxu0 %v4158
    %4229 = vmatpush.bf16.msra.mxu0 %v4157
    %4230 = vmatpush.bf16.msra.mxu0 %v4156
    %4231 = vmatpush.bf16.msra.mxu0 %v4155
    %4232 = vmatmul.bf16.gmra.mxu0 %v3948
    %v4233 = vpop.f32.mrf.mxu0
    %v4234 = vadd.f32 %v4221, %v4233
    %v4235 = vpop.f32.mrf.mxu0
    %4236 = vdwg.mxu0
    %4237 = vmatpush.bf16.msra.mxu0 %v4170
    %4238 = vmatpush.bf16.msra.mxu0 %v4169
    %4239 = vmatpush.bf16.msra.mxu0 %v4168
    %4240 = vmatpush.bf16.msra.mxu0 %v4167
    %4241 = vmatpush.bf16.msra.mxu0 %v4166
    %4242 = vmatpush.bf16.msra.mxu0 %v4165
    %4243 = vmatpush.bf16.msra.mxu0 %v4164
    %4244 = vmatpush.bf16.msra.mxu0 %v4163
    %4245 = vmatmul.bf16.gmra.mxu0 %v3949
    %v4246 = vpop.f32.mrf.mxu0
    %v4247 = vadd.f32 %v4234, %v4246
    %v4248 = vpop.f32.mrf.mxu0
    %4249 = vdwg.mxu0
    %4250 = vmatpush.bf16.msra.mxu0 %v4178
    %4251 = vmatpush.bf16.msra.mxu0 %v4177
    %4252 = vmatpush.bf16.msra.mxu0 %v4176
    %4253 = vmatpush.bf16.msra.mxu0 %v4175
    %4254 = vmatpush.bf16.msra.mxu0 %v4174
    %4255 = vmatpush.bf16.msra.mxu0 %v4173
    %4256 = vmatpush.bf16.msra.mxu0 %v4172
    %4257 = vmatpush.bf16.msra.mxu0 %v4171
    %4258 = vmatmul.bf16.gmra.mxu0 %v3950
    %v4259 = vpop.f32.mrf.mxu0
    %v4260 = vadd.f32 %v4247, %v4259
    %v4261 = vpop.f32.mrf.mxu0
    %4262 = vdwg.mxu0
    %4263 = vst [vmem:[#allocation15] sm:$0xf] %v4260
    // Predicated region
    $region70: #{tpu_custom_call.1} parent=1 // pred_check
      _
    $region71: #{tpu_custom_call.1} parent=1 // pred_check_branch
      %4265 = sbr.rel (0) target = $region73
    $region72: #{tpu_custom_call.1} parent=1 // pred_region
      %4267 = vsyncadd [#allocation8], 0
      %s4269 = sshll.u32 [#allocation15], 4
      %s4270 = int_to_ptr.vmem [resolvable:$true] %s4269
      %s4271 = sshll.u32 %s12, 4
      %s4272 = int_to_ptr.hbm [resolvable:$true] %s4271
      %4274 = dma.vmem_to_hbm [thread:$0]  %s4270, 64, %s4272, [#allocation8]
    $region73: #{tpu_custom_call.1} parent=1 // pred_fallthru
      _
    // Predicated region
    $region74: #{tpu_custom_call.1} parent=1 // pred_check
      _
    $region75: #{tpu_custom_call.1} parent=1 // pred_check_branch
      %4276 = sbr.rel (0) target = $region77
    $region76: #{tpu_custom_call.1} parent=1 // pred_region
      %4278 = dma.done [#allocation8], 64
    $region77: #{tpu_custom_call.1} parent=1 // pred_fallthru
      _
    %4279 = vsyncpa [#allocation7], 1
    %4280 = vsyncpa [#allocation10], 1
    %4281 = vsyncpa [#allocation13], 1
    %4282 = vsyncpa [#allocation8], 1
  %4283 = vsyncmov [#allocation5]
  %s4284 = vpop.sfrf %4283
  %p4285 = scmp.eq.s32.totalorder %s4284, 0
  %p4286 = pneg %p4285
  %4288 = shalt.err (%p4286)
  %s4289 = scalar_lea.sflag [#allocation5], 1
  %4290 = vsyncmov %s4289
  %s4291 = vpop.sfrf %4290
  %p4292 = scmp.eq.s32.totalorder %s4291, 0
  %p4293 = pneg %p4292
  %4295 = shalt.err (%p4293)
  %s4296 = scalar_lea.sflag [#allocation5], 2
  %4297 = vsyncmov %s4296
  %s4298 = vpop.sfrf %4297
  %p4299 = scmp.eq.s32.totalorder %s4298, 0
  %p4300 = pneg %p4299
  %4302 = shalt.err (%p4300)

</llo_original>
